<compile_context>
chip_gen: v5e
topology: v5e:2x2
jax: 0.10.0
libtpu: 0.0.40
codegen_flags: <defaults>
</compile_context>

<pallas_src>
import numpy as np
from functools import partial

import jax
import jax.numpy as jnp
from jax.experimental import pallas as pl
from jax.experimental.pallas import tpu as pltpu


# ----------------------------------------------------------------------------- #
# Kernel 1: fused input embedding + layer-0 GRU gate pre-compute (one big matmul)
#   x (R, In) -> relu(x @ W_in + b_in) @ W_ih0 + b_ih0  -> (R, 3H)
#   If In == 1 (edge RNN) the embedding is a VPU broadcast, not a K=1 matmul.
# ----------------------------------------------------------------------------- #
def _embed_gates_kernel(x_ref, win_ref, bin_ref, wih_ref, bih_ref, o_ref,
                        *, broadcast_input):
    x = x_ref[...]                                                 # (R, In) f32
    if broadcast_input:
        # Linear(1, E): outer-product broadcast on the VPU (MXU K=1 is wasted).
        emb = jnp.maximum(x * win_ref[...] + bin_ref[...], 0.0)    # (R,1)*(1,E)
    else:
        emb = jnp.maximum(
            jnp.dot(x.astype(jnp.bfloat16), win_ref[...],
                    preferred_element_type=jnp.float32) + bin_ref[...], 0.0)
    gi = jnp.dot(emb.astype(jnp.bfloat16), wih_ref[...],
                 preferred_element_type=jnp.float32) + bih_ref[...]
    o_ref[...] = gi


def embed_gates(x_rows, w_in, b_in, w_ih0, b_ih0, *, broadcast_input):
    """x_rows: (R, In) f32 rows (time-major ordering).  Returns (R, 3H) f32."""
    R = x_rows.shape[0]
    G = w_ih0.shape[1]
    # At these sizes one block is the right tile; at scale this kernel would be
    # row-tiled with a "parallel" grid axis (v7x second TensorCore / VMEM budget).
    return pl.pallas_call(
        partial(_embed_gates_kernel, broadcast_input=broadcast_input),
        out_shape=jax.ShapeDtypeStruct((R, G), jnp.float32),
        grid=(1,),
        in_specs=[
            pl.BlockSpec(x_rows.shape, lambda i: (0, 0)),
            pl.BlockSpec(w_in.shape, lambda i: (0, 0)),
            pl.BlockSpec(b_in.shape, lambda i: (0, 0)),
            pl.BlockSpec(w_ih0.shape, lambda i: (0, 0)),
            pl.BlockSpec(b_ih0.shape, lambda i: (0, 0)),
        ],
        out_specs=pl.BlockSpec((R, G), lambda i: (0, 0)),
    )(x_rows, w_in, b_in, w_ih0, b_ih0)


# ----------------------------------------------------------------------------- #
# Kernel 2: fused multi-layer GRU stack, time-chunked, hidden states in VMEM.
#   gi   : (T, B, 3H)  pre-computed layer-0 gate inputs (time-major)
#   h0   : (L, B, H)   initial hidden state of every layer
#   out  : (T, B, H)   last-layer hidden sequence
# Only the recurrent (B,H)x(H,3H) matmuls (and layer>=1 input matmuls, which
# cannot be hoisted without an HBM roundtrip) remain inside the serial loop.
# ----------------------------------------------------------------------------- #
def _gru_stack_kernel(gi_ref, h0_ref, whh_ref, bhh_ref, wih_ref, bih_ref,
                      o_ref, h_scr, *, num_layers, hidden, t_chunk):
    chunk = pl.program_id(0)

    @pl.when(chunk == 0)
    def _():
        h_scr[...] = h0_ref[...]

    H = hidden
    # Hoist weight / bias loads out of the unrolled time loop.
    whh = [whh_ref[l] for l in range(num_layers)]          # bf16 (H, 3H)
    bhh = [bhh_ref[l] for l in range(num_layers)]          # f32  (1, 3H)
    wih = [wih_ref[l] for l in range(num_layers - 1)]      # bf16 (H, 3H)
    bih = [bih_ref[l] for l in range(num_layers - 1)]      # f32  (1, 3H)

    hs = [h_scr[l] for l in range(num_layers)]             # f32 (B, H)

    # Fully unrolled static time loop over the chunk (equivalent to
    # lax.fori_loop(..., unroll=True) since the trip count is static).
    for lt in range(t_chunk):
        gi0 = gi_ref[lt]                                   # (B, 3H) f32
        for l in range(num_layers):
            h_prev = hs[l]
            if l == 0:
                gi_l = gi0                                 # hoisted matmul
            else:
                gi_l = jnp.dot(hs[l - 1].astype(jnp.bfloat16), wih[l - 1],
                               preferred_element_type=jnp.float32) + bih[l - 1]
            gh = jnp.dot(h_prev.astype(jnp.bfloat16), whh[l],
                         preferred_element_type=jnp.float32) + bhh[l]
            # PyTorch GRU gate order: [reset, update, new]; gate math in f32.
            r = jax.nn.sigmoid(gi_l[:, 0:H] + gh[:, 0:H])
            z = jax.nn.sigmoid(gi_l[:, H:2 * H] + gh[:, H:2 * H])
            n = jnp.tanh(gi_l[:, 2 * H:3 * H] + r * gh[:, 2 * H:3 * H])
            hs[l] = (1.0 - z) * n + z * h_prev
        o_ref[lt] = hs[num_layers - 1]

    for l in range(num_layers):
        h_scr[l] = hs[l]


def gru_stack(gi_tm, h0, whh, bhh, wih2, bih2, *, hidden, t_chunk=16):
    """gi_tm: (T, B, 3H) f32.  h0: (L, B, H) f32.  Returns (T, B, H) f32."""
    T, B, G = gi_tm.shape
    L = h0.shape[0]
    Tc = min(T, t_chunk)
    T_pad = ((T + Tc - 1) // Tc) * Tc
    if T_pad != T:
        gi_tm = jnp.concatenate(
            [gi_tm, jnp.zeros((T_pad - T, B, G), gi_tm.dtype)], axis=0)

    out = pl.pallas_call(
        partial(_gru_stack_kernel, num_layers=L, hidden=hidden, t_chunk=Tc),
        out_shape=jax.ShapeDtypeStruct((T_pad, B, hidden), jnp.float32),
        grid=(T_pad // Tc,),
        in_specs=[
            pl.BlockSpec((Tc, B, G), lambda t: (t, 0, 0)),
            pl.BlockSpec(h0.shape, lambda t: (0, 0, 0)),
            pl.BlockSpec(whh.shape, lambda t: (0, 0, 0)),
            pl.BlockSpec(bhh.shape, lambda t: (0, 0, 0)),
            pl.BlockSpec(wih2.shape, lambda t: (0, 0, 0)),
            pl.BlockSpec(bih2.shape, lambda t: (0, 0, 0)),
        ],
        out_specs=pl.BlockSpec((Tc, B, hidden), lambda t: (t, 0, 0)),
        scratch_shapes=[pltpu.VMEM((L, B, hidden), jnp.float32)],
        compiler_params=pltpu.CompilerParams(dimension_semantics=("arbitrary",)),
    )(gi_tm, h0, whh, bhh, wih2, bih2)
    return out[:T] if T_pad != T else out


# ----------------------------------------------------------------------------- #
# Kernel 3: fused graph output head (relu MLP) + node-MSE loss.
#   Only the edge-hidden slab (needed for the edge-RNN init) is written to HBM;
#   node predictions stay in registers and feed the loss reduction directly.
# ----------------------------------------------------------------------------- #
def _graph_head_kernel(h_ref, mask_ref, yg_ref, w1_ref, b1_ref, w2_ref, b2_ref,
                       eh_ref, loss_ref, *, node_dim, inv_batch):
    h = h_ref[...] * mask_ref[...]                                 # pad_packed -> zeros
    o1 = jnp.maximum(jnp.dot(h.astype(jnp.bfloat16), w1_ref[...],
                             preferred_element_type=jnp.float32) + b1_ref[...], 0.0)
    o2 = jnp.dot(o1.astype(jnp.bfloat16), w2_ref[...],
                 preferred_element_type=jnp.float32) + b2_ref[...]  # (R, nd+He)
    node_pred = o2[:, :node_dim]
    eh_ref[...] = o2[:, node_dim:]
    d = yg_ref[...] - node_pred
    loss_ref[...] = (jnp.sum(d * d) * inv_batch) * jnp.ones((1, 1), jnp.float32)


def graph_head(h_rows, mask_rows, yg_rows, w1, b1, w2, b2, *, node_dim, batch_size):
    R, Hg = h_rows.shape
    eh_width = w2.shape[1] - node_dim
    eh, loss = pl.pallas_call(
        partial(_graph_head_kernel, node_dim=node_dim,
                inv_batch=1.0 / float(batch_size)),
        out_shape=(jax.ShapeDtypeStruct((R, eh_width), jnp.float32),
                   jax.ShapeDtypeStruct((1, 1), jnp.float32)),
        grid=(1,),
        in_specs=[
            pl.BlockSpec((R, Hg), lambda i: (0, 0)),
            pl.BlockSpec((R, 1), lambda i: (0, 0)),
            pl.BlockSpec((R, node_dim), lambda i: (0, 0)),
            pl.BlockSpec(w1.shape, lambda i: (0, 0)),
            pl.BlockSpec(b1.shape, lambda i: (0, 0)),
            pl.BlockSpec(w2.shape, lambda i: (0, 0)),
            pl.BlockSpec(b2.shape, lambda i: (0, 0)),
        ],
        out_specs=(pl.BlockSpec((R, eh_width), lambda i: (0, 0)),
                   pl.BlockSpec((1, 1), lambda i: (0, 0))),
    )(h_rows, mask_rows, yg_rows, w1, b1, w2, b2)
    return eh, loss[0, 0]


# ----------------------------------------------------------------------------- #
# Kernel 4: fused edge output head + sigmoid + pack/pad masking + BCE loss.
#   The Ee->1 projection is a VPU broadcast + lane reduction (never materialises
#   a (rows, 1) output block).  Clamp at -100 matches F.binary_cross_entropy.
# ----------------------------------------------------------------------------- #
def _edge_head_kernel(h_ref, mask_ref, y_ref, w1_ref, b1_ref, w2_ref, b2_ref,
                      loss_ref, *, inv_denom):
    m = mask_ref[...]                                              # (R, 1)
    h = h_ref[...] * m                                             # pad_packed -> zeros
    e1 = jnp.maximum(jnp.dot(h.astype(jnp.bfloat16), w1_ref[...],
                             preferred_element_type=jnp.float32) + b1_ref[...], 0.0)
    logit = jnp.sum(e1 * w2_ref[...], axis=1, keepdims=True) + b2_ref[...]
    p = jax.nn.sigmoid(logit) * m                                  # pack/pad roundtrip
    t = y_ref[...] * m
    logp = jnp.maximum(jnp.log(p), -100.0)
    log1mp = jnp.maximum(jnp.log(1.0 - p), -100.0)
    bce = -(t * logp + (1.0 - t) * log1mp)
    loss_ref[...] = (jnp.sum(bce) * inv_denom) * jnp.ones((1, 1), jnp.float32)


def edge_head(h_rows, mask_rows, y_rows, w1, b1, w2_row, b2, *, denom):
    R, He = h_rows.shape
    out = pl.pallas_call(
        partial(_edge_head_kernel, inv_denom=1.0 / float(denom)),
        out_shape=jax.ShapeDtypeStruct((1, 1), jnp.float32),
        grid=(1,),
        in_specs=[
            pl.BlockSpec((R, He), lambda i: (0, 0)),
            pl.BlockSpec((R, 1), lambda i: (0, 0)),
            pl.BlockSpec((R, 1), lambda i: (0, 0)),
            pl.BlockSpec(w1.shape, lambda i: (0, 0)),
            pl.BlockSpec(b1.shape, lambda i: (0, 0)),
            pl.BlockSpec(w2_row.shape, lambda i: (0, 0)),
            pl.BlockSpec(b2.shape, lambda i: (0, 0)),
        ],
        out_specs=pl.BlockSpec((1, 1), lambda i: (0, 0)),
    )(h_rows, mask_rows, y_rows, w1, b1, w2_row, b2)
    return out[0, 0]


# ----------------------------------------------------------------------------- #
# Parameters (deterministic, synthetic; f32 master copies, cast to bf16 at use)
# ----------------------------------------------------------------------------- #
def make_params(key, node_dim, Ee, Eg, He, Hg, Le, Lg, M):
    ks = iter(jax.random.split(key, 64))

    def w(shape, scale=0.2):
        return scale * jax.random.normal(next(ks), shape, jnp.float32)

    p = {}
    # graph_RNN: GRU_plain(node_dim+M, Eg, Hg, Lg, output_size=node_dim+He)
    p["g_in_w"] = w((node_dim + M, Eg)); p["g_in_b"] = jnp.zeros((Eg,), jnp.float32)
    p["g_gru"] = []
    in_sz = Eg
    for _ in range(Lg):
        p["g_gru"].append(dict(
            wih=w((in_sz, 3 * Hg)), whh=w((Hg, 3 * Hg)),
            bih=0.25 * jnp.ones((3 * Hg,), jnp.float32),
            bhh=0.25 * jnp.ones((3 * Hg,), jnp.float32)))
        in_sz = Hg
    p["g_out1_w"] = w((Hg, Eg)); p["g_out1_b"] = jnp.zeros((Eg,), jnp.float32)
    p["g_out2_w"] = w((Eg, node_dim + He)); p["g_out2_b"] = jnp.zeros((node_dim + He,), jnp.float32)

    # edge_RNN: GRU_plain(1, Ee, He, Le, output_size=1)
    p["e_in_w"] = w((1, Ee)); p["e_in_b"] = jnp.zeros((Ee,), jnp.float32)
    p["e_gru"] = []
    in_sz = Ee
    for _ in range(Le):
        p["e_gru"].append(dict(
            wih=w((in_sz, 3 * He)), whh=w((He, 3 * He)),
            bih=0.25 * jnp.ones((3 * He,), jnp.float32),
            bhh=0.25 * jnp.ones((3 * He,), jnp.float32)))
        in_sz = He
    p["e_out1_w"] = w((He, Ee)); p["e_out1_b"] = jnp.zeros((Ee,), jnp.float32)
    p["e_out2_w"] = w((Ee, 1)); p["e_out2_b"] = jnp.zeros((1,), jnp.float32)
    return p


# ----------------------------------------------------------------------------- #
# Device-side forward core (jitted); host prep lives in graphrnn_forward below.
# ----------------------------------------------------------------------------- #
def _forward_core(params, x_edge_u, y_edge_u, x_graph_u, y_graph_u,
                  si, rev_b, rev_t, mask_g_rows, mask_e_rows,
                  *, node_dim, He, Hg, Le, Lg, M, B, S, total, Te):
    f32, bf16 = jnp.float32, jnp.bfloat16

    x_edge = jnp.take(x_edge_u[:, :S, :].astype(f32), si, axis=0)
    y_edge = jnp.take(y_edge_u[:, :S, :].astype(f32), si, axis=0)
    x_graph_o = jnp.take(x_graph_u[:, :S, :].astype(f32), si, axis=0)
    y_graph = jnp.take(y_graph_u[:, :S, :].astype(f32), si, axis=0)

    # graph-RNN inputs / targets, time-major row order (row = t*B + b)
    x_graph = jnp.concatenate([x_edge, x_graph_o], axis=2)         # (B, S, M+nd)
    xg_rows = x_graph.transpose(1, 0, 2).reshape(S * B, M + node_dim)
    yg_rows = y_graph.transpose(1, 0, 2).reshape(S * B, node_dim)

    # ---- graph RNN: hoisted layer-0 gate precompute + fused GRU stack -------- #
    g0 = params["g_gru"][0]
    gi_g = embed_gates(xg_rows,
                       params["g_in_w"].astype(bf16),
                       params["g_in_b"].reshape(1, -1),
                       g0["wih"].astype(bf16),
                       g0["bih"].reshape(1, -1),
                       broadcast_input=False)                      # (S*B, 3Hg)

    g_whh = jnp.stack([lp["whh"] for lp in params["g_gru"]]).astype(bf16)
    g_bhh = jnp.stack([lp["bhh"].reshape(1, -1) for lp in params["g_gru"]])
    if Lg > 1:
        g_wih2 = jnp.stack([params["g_gru"][l]["wih"] for l in range(1, Lg)]).astype(bf16)
        g_bih2 = jnp.stack([params["g_gru"][l]["bih"].reshape(1, -1) for l in range(1, Lg)])
    else:
        g_wih2 = jnp.zeros((1, Hg, 3 * Hg), bf16)
        g_bih2 = jnp.zeros((1, 1, 3 * Hg), f32)
    h0_g = jnp.zeros((Lg, B, Hg), f32)                             # init_hidden = zeros

    out_g = gru_stack(gi_g.reshape(S, B, 3 * Hg), h0_g,
                      g_whh, g_bhh, g_wih2, g_bih2, hidden=Hg)     # (S, B, Hg)

    # ---- graph output head + node-MSE loss (fused) ---------------------------- #
    eh_rows, loss_node = graph_head(
        out_g.reshape(S * B, Hg), mask_g_rows, yg_rows,
        params["g_out1_w"].astype(bf16), params["g_out1_b"].reshape(1, -1),
        params["g_out2_w"].astype(bf16), params["g_out2_b"].reshape(1, -1),
        node_dim=node_dim, batch_size=B)

    # ---- edge-RNN inputs (packed + reversed ordering), time-major rows ------- #
    output_y = y_edge[rev_b, rev_t]                                # (total, M)
    output_x = jnp.concatenate(
        [jnp.ones((total, 1), f32), output_y[:, :M - 1]], axis=1)  # (total, M)
    xe_rows = output_x.T.reshape(M * total, 1)
    ye_rows = output_y.T.reshape(M * total, 1)

    h_edge0 = jnp.take(eh_rows, rev_t * B + rev_b, axis=0)         # (total, He)
    if Le > 1:
        h0_e = jnp.concatenate(
            [h_edge0[None], jnp.zeros((Le - 1, total, He), f32)], axis=0)
    else:
        h0_e = h_edge0[None]

    # ---- edge RNN: broadcast embedding + hoisted gates + fused GRU stack ----- #
    e0 = params["e_gru"][0]
    gi_e = embed_gates(xe_rows,
                       params["e_in_w"].reshape(1, -1),            # K=1 -> VPU broadcast
                       params["e_in_b"].reshape(1, -1),
                       e0["wih"].astype(bf16),
                       e0["bih"].reshape(1, -1),
                       broadcast_input=True)                       # (M*total, 3He)

    e_whh = jnp.stack([lp["whh"] for lp in params["e_gru"]]).astype(bf16)
    e_bhh = jnp.stack([lp["bhh"].reshape(1, -1) for lp in params["e_gru"]])
    if Le > 1:
        e_wih2 = jnp.stack([params["e_gru"][l]["wih"] for l in range(1, Le)]).astype(bf16)
        e_bih2 = jnp.stack([params["e_gru"][l]["bih"].reshape(1, -1) for l in range(1, Le)])
    else:
        e_wih2 = jnp.zeros((1, He, 3 * He), bf16)
        e_bih2 = jnp.zeros((1, 1, 3 * He), f32)

    out_e = gru_stack(gi_e.reshape(M, total, 3 * He), h0_e,
                      e_whh, e_bhh, e_wih2, e_bih2, hidden=He)     # (M, total, He)

    # ---- edge output head + sigmoid + masking + BCE (fused) ------------------- #
    loss = edge_head(out_e.reshape(M * total, He), mask_e_rows, ye_rows,
                     params["e_out1_w"].astype(bf16),
                     params["e_out1_b"].reshape(1, -1),
                     params["e_out2_w"].reshape(1, -1),            # (Ee,1) -> (1,Ee) row
                     params["e_out2_b"].reshape(1, 1),
                     denom=float(total * Te))
    return loss, loss_node


# ----------------------------------------------------------------------------- #
# GraphRNN forward (host prep + jitted device core)
# ----------------------------------------------------------------------------- #
def graphrnn_forward(params, data, *, node_dim, He, Hg, Le, Lg, M):
    y_len_unsorted = list(data["len"])                             # python ints
    B = len(y_len_unsorted)
    S = int(max(y_len_unsorted))

    # sort by length, descending (mirrors torch.sort descending)
    sort_index = np.argsort(-np.asarray(y_len_unsorted), kind="stable").astype(np.int32)
    y_len = [int(y_len_unsorted[i]) for i in sort_index]

    # pack_padded_sequence bookkeeping (host side, static)
    pairs = [(b, t) for t in range(S) for b in range(B) if y_len[b] > t]
    pairs_rev = pairs[::-1]
    rev_b = np.asarray([p[0] for p in pairs_rev], np.int32)
    rev_t = np.asarray([p[1] for p in pairs_rev], np.int32)
    total = len(pairs)

    output_y_len = []
    bins = np.bincount(np.asarray(y_len))
    for i in range(len(bins) - 1, 0, -1):
        count_temp = int(np.sum(bins[i:]))
        output_y_len.extend([min(i, M)] * count_temp)
    output_y_len = np.asarray(output_y_len)                        # (total,)
    Te = int(output_y_len.max())

    # masks built directly in time-major row order (row = t*rows_per_step + idx)
    mask_g_rows = (np.arange(S)[:, None] < np.asarray(y_len)[None, :]) \
        .astype(np.float32).reshape(S * B, 1)
    mask_e_rows = (np.arange(M)[:, None] < output_y_len[None, :]) \
        .astype(np.float32).reshape(M * total, 1)

    core = jax.jit(partial(
        _forward_core, node_dim=node_dim, He=He, Hg=Hg, Le=Le, Lg=Lg, M=M,
        B=B, S=S, total=total, Te=Te))
    return core(params, data["x_edge"], data["y_edge"], data["x_graph"],
                data["y_graph"], jnp.asarray(sort_index), jnp.asarray(rev_b),
                jnp.asarray(rev_t), jnp.asarray(mask_g_rows), jnp.asarray(mask_e_rows))


# ----------------------------------------------------------------------------- #
if __name__ == "__main__":
    # hyper-params (small, consistent with the module's __init__)
    node_dim = 3
    embedding_size_edge, embedding_size_graph = 8, 16
    hidden_size_edge, hidden_size_graph = 16, 32
    num_layers_edge, num_layers_graph = 2, 2
    max_prev_node = 4
    B, S = 4, 8

    key = jax.random.PRNGKey(0)
    kp, k1, k2, k3, k4 = jax.random.split(key, 5)

    params = make_params(kp, node_dim, embedding_size_edge, embedding_size_graph,
                         hidden_size_edge, hidden_size_graph,
                         num_layers_edge, num_layers_graph, max_prev_node)

    data = {
        "x_edge": (jax.random.uniform(k1, (B, S, max_prev_node)) > 0.5).astype(jnp.float32),
        "y_edge": (jax.random.uniform(k2, (B, S, max_prev_node)) > 0.5).astype(jnp.float32),
        "x_graph": jax.random.normal(k3, (B, S, node_dim), jnp.float32),
        "y_graph": jax.random.normal(k4, (B, S, node_dim), jnp.float32),
        "len": [5, 8, 3, 6],
    }

    loss, loss_node = graphrnn_forward(
        params, data, node_dim=node_dim,
        He=hidden_size_edge, Hg=hidden_size_graph,
        Le=num_layers_edge, Lg=num_layers_graph, M=max_prev_node)

    loss = jax.block_until_ready(loss)
    loss_node = jax.block_until_ready(loss_node)
    assert np.isfinite(float(loss)) and np.isfinite(float(loss_node))
    print("KERNEL_OK")
</pallas_src>

<mosaic_0001>
module attributes {stable_mosaic.version = 11 : i64} {
  func.func @_embed_gates_kernel(%arg0: i32, %arg1: memref<32x7xf32, #tpu.memory_space<vmem>>, %arg2: memref<7x16xbf16, #tpu.memory_space<vmem>>, %arg3: memref<1x16xf32, #tpu.memory_space<vmem>>, %arg4: memref<16x96xbf16, #tpu.memory_space<vmem>>, %arg5: memref<1x96xf32, #tpu.memory_space<vmem>>, %arg6: memref<32x96xf32, #tpu.memory_space<vmem>>) attributes {dimension_semantics = [#tpu.dimension_semantics<arbitrary>], iteration_bounds = array<i64: 1>, scalar_prefetch = 0 : i64, scratch_operands = 0 : i64, tpu.core_type = #tpu.core_type<tc>, window_params = [{pipeline_mode = #tpu.pipeline_mode<synchronous>, transform_indices = @transform_0, window_bounds = array<i64: 32, 7>}, {pipeline_mode = #tpu.pipeline_mode<synchronous>, transform_indices = @transform_1, window_bounds = array<i64: 7, 16>}, {pipeline_mode = #tpu.pipeline_mode<synchronous>, transform_indices = @transform_2, window_bounds = array<i64: 1, 16>}, {pipeline_mode = #tpu.pipeline_mode<synchronous>, transform_indices = @transform_3, window_bounds = array<i64: 16, 96>}, {pipeline_mode = #tpu.pipeline_mode<synchronous>, transform_indices = @transform_4, window_bounds = array<i64: 1, 96>}, {pipeline_mode = #tpu.pipeline_mode<synchronous>, transform_indices = @transform_5, window_bounds = array<i64: 32, 96>}]} {
    %c0 = arith.constant 0 : index
    %c0_0 = arith.constant 0 : index
    %0 = vector.load %arg1[%c0, %c0_0] : memref<32x7xf32, #tpu.memory_space<vmem>>, vector<32x7xf32>
    %1 = arith.truncf %0 : vector<32x7xf32> to vector<32x7xbf16>
    %c0_1 = arith.constant 0 : index
    %c0_2 = arith.constant 0 : index
    %2 = vector.load %arg2[%c0_1, %c0_2] : memref<7x16xbf16, #tpu.memory_space<vmem>>, vector<7x16xbf16>
    %cst = arith.constant dense<0.000000e+00> : vector<32x16xf32>
    %3 = tpu.matmul %1, %2, %cst {dimension_numbers = #tpu.dot_dimension_numbers<[1], [0], [0], [1], [0, 0, 1, 1], [], []>} : vector<32x7xbf16>, vector<7x16xbf16>, vector<32x16xf32> -> vector<32x16xf32>
    %c0_3 = arith.constant 0 : index
    %c0_4 = arith.constant 0 : index
    %4 = vector.load %arg3[%c0_3, %c0_4] : memref<1x16xf32, #tpu.memory_space<vmem>>, vector<1x16xf32>
    %5 = vector.broadcast %4 : vector<1x16xf32> to vector<32x16xf32>
    %6 = arith.addf %3, %5 : vector<32x16xf32>
    %cst_5 = arith.constant 0.000000e+00 : f32
    %7 = vector.broadcast %cst_5 : f32 to vector<32x16xf32>
    %8 = arith.maximumf %6, %7 : vector<32x16xf32>
    %9 = arith.truncf %8 : vector<32x16xf32> to vector<32x16xbf16>
    %c0_6 = arith.constant 0 : index
    %c0_7 = arith.constant 0 : index
    %10 = vector.load %arg4[%c0_6, %c0_7] : memref<16x96xbf16, #tpu.memory_space<vmem>>, vector<16x96xbf16>
    %cst_8 = arith.constant dense<0.000000e+00> : vector<32x96xf32>
    %11 = tpu.matmul %9, %10, %cst_8 {dimension_numbers = #tpu.dot_dimension_numbers<[1], [0], [0], [1], [0, 0, 1, 1], [], []>} : vector<32x16xbf16>, vector<16x96xbf16>, vector<32x96xf32> -> vector<32x96xf32>
    %c0_9 = arith.constant 0 : index
    %c0_10 = arith.constant 0 : index
    %12 = vector.load %arg5[%c0_9, %c0_10] : memref<1x96xf32, #tpu.memory_space<vmem>>, vector<1x96xf32>
    %13 = vector.broadcast %12 : vector<1x96xf32> to vector<32x96xf32>
    %14 = arith.addf %11, %13 : vector<32x96xf32>
    %c0_11 = arith.constant 0 : index
    %c0_12 = arith.constant 0 : index
    %15 = vector.load %arg6[%c0_11, %c0_12] : memref<32x96xf32, #tpu.memory_space<vmem>>, vector<32x96xf32>
    tpu.vector_store %arg6[%c0_11, %c0_12], %14 {strides = array<i32>} : memref<32x96xf32, #tpu.memory_space<vmem>>, vector<32x96xf32>,
    return
  }
  func.func @transform_0(%arg0: i32) -> (i32, i32) {
    %c0_i32 = arith.constant 0 : i32
    %c0_i32_0 = arith.constant 0 : i32
    %c0_i32_1 = arith.constant 0 : i32
    return %c0_i32, %c0_i32_0 : i32, i32
  }
  func.func @transform_1(%arg0: i32) -> (i32, i32) {
    %c0_i32 = arith.constant 0 : i32
    %c0_i32_0 = arith.constant 0 : i32
    %c0_i32_1 = arith.constant 0 : i32
    return %c0_i32, %c0_i32_0 : i32, i32
  }
  func.func @transform_2(%arg0: i32) -> (i32, i32) {
    %c0_i32 = arith.constant 0 : i32
    %c0_i32_0 = arith.constant 0 : i32
    %c0_i32_1 = arith.constant 0 : i32
    return %c0_i32, %c0_i32_0 : i32, i32
  }
  func.func @transform_3(%arg0: i32) -> (i32, i32) {
    %c0_i32 = arith.constant 0 : i32
    %c0_i32_0 = arith.constant 0 : i32
    %c0_i32_1 = arith.constant 0 : i32
    return %c0_i32, %c0_i32_0 : i32, i32
  }
  func.func @transform_4(%arg0: i32) -> (i32, i32) {
    %c0_i32 = arith.constant 0 : i32
    %c0_i32_0 = arith.constant 0 : i32
    %c0_i32_1 = arith.constant 0 : i32
    return %c0_i32, %c0_i32_0 : i32, i32
  }
  func.func @transform_5(%arg0: i32) -> (i32, i32) {
    %c0_i32 = arith.constant 0 : i32
    %c0_i32_0 = arith.constant 0 : i32
    %c0_i32_1 = arith.constant 0 : i32
    return %c0_i32, %c0_i32_0 : i32, i32
  }
}

module attributes {stable_mosaic.version = 11 : i64} {
  func.func @_graph_head_kernel(%arg0: i32, %arg1: memref<32x32xf32, #tpu.memory_space<vmem>>, %arg2: memref<32x1xf32, #tpu.memory_space<vmem>>, %arg3: memref<32x3xf32, #tpu.memory_space<vmem>>, %arg4: memref<32x16xbf16, #tpu.memory_space<vmem>>, %arg5: memref<1x16xf32, #tpu.memory_space<vmem>>, %arg6: memref<16x19xbf16, #tpu.memory_space<vmem>>, %arg7: memref<1x19xf32, #tpu.memory_space<vmem>>, %arg8: memref<32x16xf32, #tpu.memory_space<vmem>>, %arg9: memref<1x1xf32, #tpu.memory_space<vmem>>) attributes {dimension_semantics = [#tpu.dimension_semantics<arbitrary>], iteration_bounds = array<i64: 1>, scalar_prefetch = 0 : i64, scratch_operands = 0 : i64, tpu.core_type = #tpu.core_type<tc>, window_params = [{pipeline_mode = #tpu.pipeline_mode<synchronous>, transform_indices = @transform_0, window_bounds = array<i64: 32, 32>}, {pipeline_mode = #tpu.pipeline_mode<synchronous>, transform_indices = @transform_1, window_bounds = array<i64: 32, 1>}, {pipeline_mode = #tpu.pipeline_mode<synchronous>, transform_indices = @transform_2, window_bounds = array<i64: 32, 3>}, {pipeline_mode = #tpu.pipeline_mode<synchronous>, transform_indices = @transform_3, window_bounds = array<i64: 32, 16>}, {pipeline_mode = #tpu.pipeline_mode<synchronous>, transform_indices = @transform_4, window_bounds = array<i64: 1, 16>}, {pipeline_mode = #tpu.pipeline_mode<synchronous>, transform_indices = @transform_5, window_bounds = array<i64: 16, 19>}, {pipeline_mode = #tpu.pipeline_mode<synchronous>, transform_indices = @transform_6, window_bounds = array<i64: 1, 19>}, {pipeline_mode = #tpu.pipeline_mode<synchronous>, transform_indices = @transform_7, window_bounds = array<i64: 32, 16>}, {pipeline_mode = #tpu.pipeline_mode<synchronous>, transform_indices = @transform_8, window_bounds = array<i64: 1, 1>}]} {
    %c0 = arith.constant 0 : index
    %c0_0 = arith.constant 0 : index
    %0 = vector.load %arg1[%c0, %c0_0] : memref<32x32xf32, #tpu.memory_space<vmem>>, vector<32x32xf32>
    %c0_1 = arith.constant 0 : index
    %c0_2 = arith.constant 0 : index
    %1 = vector.load %arg2[%c0_1, %c0_2] : memref<32x1xf32, #tpu.memory_space<vmem>>, vector<32x1xf32>
    %2 = vector.broadcast %1 : vector<32x1xf32> to vector<32x32xf32>
    %3 = arith.mulf %0, %2 : vector<32x32xf32>
    %4 = arith.truncf %3 : vector<32x32xf32> to vector<32x32xbf16>
    %c0_3 = arith.constant 0 : index
    %c0_4 = arith.constant 0 : index
    %5 = vector.load %arg4[%c0_3, %c0_4] : memref<32x16xbf16, #tpu.memory_space<vmem>>, vector<32x16xbf16>
    %cst = arith.constant dense<0.000000e+00> : vector<32x16xf32>
    %6 = tpu.matmul %4, %5, %cst {dimension_numbers = #tpu.dot_dimension_numbers<[1], [0], [0], [1], [0, 0, 1, 1], [], []>} : vector<32x32xbf16>, vector<32x16xbf16>, vector<32x16xf32> -> vector<32x16xf32>
    %c0_5 = arith.constant 0 : index
    %c0_6 = arith.constant 0 : index
    %7 = vector.load %arg5[%c0_5, %c0_6] : memref<1x16xf32, #tpu.memory_space<vmem>>, vector<1x16xf32>
    %8 = vector.broadcast %7 : vector<1x16xf32> to vector<32x16xf32>
    %9 = arith.addf %6, %8 : vector<32x16xf32>
    %cst_7 = arith.constant 0.000000e+00 : f32
    %10 = vector.broadcast %cst_7 : f32 to vector<32x16xf32>
    %11 = arith.maximumf %9, %10 : vector<32x16xf32>
    %12 = arith.truncf %11 : vector<32x16xf32> to vector<32x16xbf16>
    %c0_8 = arith.constant 0 : index
    %c0_9 = arith.constant 0 : index
    %13 = vector.load %arg6[%c0_8, %c0_9] : memref<16x19xbf16, #tpu.memory_space<vmem>>, vector<16x19xbf16>
    %cst_10 = arith.constant dense<0.000000e+00> : vector<32x19xf32>
    %14 = tpu.matmul %12, %13, %cst_10 {dimension_numbers = #tpu.dot_dimension_numbers<[1], [0], [0], [1], [0, 0, 1, 1], [], []>} : vector<32x16xbf16>, vector<16x19xbf16>, vector<32x19xf32> -> vector<32x19xf32>
    %c0_11 = arith.constant 0 : index
    %c0_12 = arith.constant 0 : index
    %15 = vector.load %arg7[%c0_11, %c0_12] : memref<1x19xf32, #tpu.memory_space<vmem>>, vector<1x19xf32>
    %16 = vector.broadcast %15 : vector<1x19xf32> to vector<32x19xf32>
    %17 = arith.addf %14, %16 : vector<32x19xf32>
    %18 = vector.extract_strided_slice %17 {offsets = [0, 0], sizes = [32, 3], strides = [1, 1]} : vector<32x19xf32> to vector<32x3xf32>
    %19 = vector.extract_strided_slice %17 {offsets = [0, 3], sizes = [32, 16], strides = [1, 1]} : vector<32x19xf32> to vector<32x16xf32>
    %c0_13 = arith.constant 0 : index
    %c0_14 = arith.constant 0 : index
    %20 = vector.load %arg8[%c0_13, %c0_14] : memref<32x16xf32, #tpu.memory_space<vmem>>, vector<32x16xf32>
    tpu.vector_store %arg8[%c0_13, %c0_14], %19 {strides = array<i32>} : memref<32x16xf32, #tpu.memory_space<vmem>>, vector<32x16xf32>,
    %c0_15 = arith.constant 0 : index
    %c0_16 = arith.constant 0 : index
    %21 = vector.load %arg3[%c0_15, %c0_16] : memref<32x3xf32, #tpu.memory_space<vmem>>, vector<32x3xf32>
    %22 = arith.subf %21, %18 : vector<32x3xf32>
    %23 = arith.mulf %22, %22 : vector<32x3xf32>
    %24 = vector.shape_cast %23 : vector<32x3xf32> to vector<1x32x3xf32>
    %cst_17 = arith.constant dense<0.000000e+00> : vector<1xf32>
    %25 = vector.multi_reduction <add>, %24, %cst_17 [1, 2] : vector<1x32x3xf32> to vector<1xf32>
    %26 = vector.shape_cast %25 : vector<1xf32> to vector<1x1x1xf32>
    %27 = vector.extract %26[0, 0, 0] : f32 from vector<1x1x1xf32>
    %cst_18 = arith.constant 2.500000e-01 : f32
    %28 = arith.mulf %27, %cst_18 : f32
    %cst_19 = arith.constant 1.000000e+00 : f32
    %29 = vector.broadcast %cst_19 : f32 to vector<1x1xf32>
    %30 = vector.broadcast %28 : f32 to vector<1x1xf32>
    %31 = arith.mulf %30, %29 : vector<1x1xf32>
    %c0_20 = arith.constant 0 : index
    %c0_21 = arith.constant 0 : index
    %32 = vector.load %arg9[%c0_20, %c0_21] : memref<1x1xf32, #tpu.memory_space<vmem>>, vector<1x1xf32>
    tpu.vector_store %arg9[%c0_20, %c0_21], %31 {strides = array<i32>} : memref<1x1xf32, #tpu.memory_space<vmem>>, vector<1x1xf32>,
    return
  }
  func.func @transform_0(%arg0: i32) -> (i32, i32) {
    %c0_i32 = arith.constant 0 : i32
    %c0_i32_0 = arith.constant 0 : i32
    %c0_i32_1 = arith.constant 0 : i32
    return %c0_i32, %c0_i32_0 : i32, i32
  }
  func.func @transform_1(%arg0: i32) -> (i32, i32) {
    %c0_i32 = arith.constant 0 : i32
    %c0_i32_0 = arith.constant 0 : i32
    %c0_i32_1 = arith.constant 0 : i32
    return %c0_i32, %c0_i32_0 : i32, i32
  }
  func.func @transform_2(%arg0: i32) -> (i32, i32) {
    %c0_i32 = arith.constant 0 : i32
    %c0_i32_0 = arith.constant 0 : i32
    %c0_i32_1 = arith.constant 0 : i32
    return %c0_i32, %c0_i32_0 : i32, i32
  }
  func.func @transform_3(%arg0: i32) -> (i32, i32) {
    %c0_i32 = arith.constant 0 : i32
    %c0_i32_0 = arith.constant 0 : i32
    %c0_i32_1 = arith.constant 0 : i32
    return %c0_i32, %c0_i32_0 : i32, i32
  }
  func.func @transform_4(%arg0: i32) -> (i32, i32) {
    %c0_i32 = arith.constant 0 : i32
    %c0_i32_0 = arith.constant 0 : i32
    %c0_i32_1 = arith.constant 0 : i32
    return %c0_i32, %c0_i32_0 : i32, i32
  }
  func.func @transform_5(%arg0: i32) -> (i32, i32) {
    %c0_i32 = arith.constant 0 : i32
    %c0_i32_0 = arith.constant 0 : i32
    %c0_i32_1 = arith.constant 0 : i32
    return %c0_i32, %c0_i32_0 : i32, i32
  }
  func.func @transform_6(%arg0: i32) -> (i32, i32) {
    %c0_i32 = arith.constant 0 : i32
    %c0_i32_0 = arith.constant 0 : i32
    %c0_i32_1 = arith.constant 0 : i32
    return %c0_i32, %c0_i32_0 : i32, i32
  }
  func.func @transform_7(%arg0: i32) -> (i32, i32) {
    %c0_i32 = arith.constant 0 : i32
    %c0_i32_0 = arith.constant 0 : i32
    %c0_i32_1 = arith.constant 0 : i32
    return %c0_i32, %c0_i32_0 : i32, i32
  }
  func.func @transform_8(%arg0: i32) -> (i32, i32) {
    %c0_i32 = arith.constant 0 : i32
    %c0_i32_0 = arith.constant 0 : i32
    %c0_i32_1 = arith.constant 0 : i32
    return %c0_i32, %c0_i32_0 : i32, i32
  }
}

module attributes {stable_mosaic.version = 11 : i64} {
  func.func @_gru_stack_kernel(%arg0: i32, %arg1: memref<8x4x96xf32, #tpu.memory_space<vmem>>, %arg2: memref<2x4x32xf32, #tpu.memory_space<vmem>>, %arg3: memref<2x32x96xbf16, #tpu.memory_space<vmem>>, %arg4: memref<2x1x96xf32, #tpu.memory_space<vmem>>, %arg5: memref<1x32x96xbf16, #tpu.memory_space<vmem>>, %arg6: memref<1x1x96xf32, #tpu.memory_space<vmem>>, %arg7: memref<8x4x32xf32, #tpu.memory_space<vmem>>, %arg8: memref<2x4x32xf32, #tpu.memory_space<vmem>>) attributes {dimension_semantics = [#tpu.dimension_semantics<arbitrary>], iteration_bounds = array<i64: 1>, scalar_prefetch = 0 : i64, scratch_operands = 1 : i64, tpu.core_type = #tpu.core_type<tc>, window_params = [{transform_indices = @transform_0, window_bounds = array<i64: 8, 4, 96>}, {pipeline_mode = #tpu.pipeline_mode<synchronous>, transform_indices = @transform_1, window_bounds = array<i64: 2, 4, 32>}, {pipeline_mode = #tpu.pipeline_mode<synchronous>, transform_indices = @transform_2, window_bounds = array<i64: 2, 32, 96>}, {pipeline_mode = #tpu.pipeline_mode<synchronous>, transform_indices = @transform_3, window_bounds = array<i64: 2, 1, 96>}, {pipeline_mode = #tpu.pipeline_mode<synchronous>, transform_indices = @transform_4, window_bounds = array<i64: 1, 32, 96>}, {pipeline_mode = #tpu.pipeline_mode<synchronous>, transform_indices = @transform_5, window_bounds = array<i64: 1, 1, 96>}, {transform_indices = @transform_6, window_bounds = array<i64: 8, 4, 32>}]} {
    %c0_i32 = arith.constant 0 : i32
    %0 = arith.cmpi eq, %arg0, %c0_i32 : i32
    %1 = arith.extui %0 : i1 to i32
    %c0_i32_0 = arith.constant 0 : i32
    %2 = arith.cmpi ne, %1, %c0_i32_0 : i32
    scf.if %2 {
      %c0_142 = arith.constant 0 : index
      %c0_143 = arith.constant 0 : index
      %c0_144 = arith.constant 0 : index
      %577 = vector.load %arg2[%c0_142, %c0_143, %c0_144] : memref<2x4x32xf32, #tpu.memory_space<vmem>>, vector<2x4x32xf32>
      %c0_145 = arith.constant 0 : index
      %c0_146 = arith.constant 0 : index
      %c0_147 = arith.constant 0 : index
      %578 = vector.load %arg8[%c0_145, %c0_146, %c0_147] : memref<2x4x32xf32, #tpu.memory_space<vmem>>, vector<2x4x32xf32>
      tpu.vector_store %arg8[%c0_145, %c0_146, %c0_147], %577 {strides = array<i32>} : memref<2x4x32xf32, #tpu.memory_space<vmem>>, vector<2x4x32xf32>,
    } else {
    }
    %c0 = arith.constant 0 : index
    %c0_1 = arith.constant 0 : index
    %c0_2 = arith.constant 0 : index
    %3 = vector.load %arg3[%c0, %c0_1, %c0_2] : memref<2x32x96xbf16, #tpu.memory_space<vmem>>, vector<1x32x96xbf16>
    %4 = vector.shape_cast %3 : vector<1x32x96xbf16> to vector<32x96xbf16>
    %c1 = arith.constant 1 : index
    %c0_3 = arith.constant 0 : index
    %c0_4 = arith.constant 0 : index
    %5 = vector.load %arg3[%c1, %c0_3, %c0_4] : memref<2x32x96xbf16, #tpu.memory_space<vmem>>, vector<1x32x96xbf16>
    %6 = vector.shape_cast %5 : vector<1x32x96xbf16> to vector<32x96xbf16>
    %c0_5 = arith.constant 0 : index
    %c0_6 = arith.constant 0 : index
    %c0_7 = arith.constant 0 : index
    %7 = vector.load %arg4[%c0_5, %c0_6, %c0_7] : memref<2x1x96xf32, #tpu.memory_space<vmem>>, vector<1x1x96xf32>
    %8 = vector.shape_cast %7 : vector<1x1x96xf32> to vector<1x96xf32>
    %c1_8 = arith.constant 1 : index
    %c0_9 = arith.constant 0 : index
    %c0_10 = arith.constant 0 : index
    %9 = vector.load %arg4[%c1_8, %c0_9, %c0_10] : memref<2x1x96xf32, #tpu.memory_space<vmem>>, vector<1x1x96xf32>
    %10 = vector.shape_cast %9 : vector<1x1x96xf32> to vector<1x96xf32>
    %c0_11 = arith.constant 0 : index
    %c0_12 = arith.constant 0 : index
    %c0_13 = arith.constant 0 : index
    %11 = vector.load %arg5[%c0_11, %c0_12, %c0_13] : memref<1x32x96xbf16, #tpu.memory_space<vmem>>, vector<1x32x96xbf16>
    %12 = vector.shape_cast %11 : vector<1x32x96xbf16> to vector<32x96xbf16>
    %c0_14 = arith.constant 0 : index
    %c0_15 = arith.constant 0 : index
    %c0_16 = arith.constant 0 : index
    %13 = vector.load %arg6[%c0_14, %c0_15, %c0_16] : memref<1x1x96xf32, #tpu.memory_space<vmem>>, vector<1x1x96xf32>
    %14 = vector.shape_cast %13 : vector<1x1x96xf32> to vector<1x96xf32>
    %c0_17 = arith.constant 0 : index
    %c0_18 = arith.constant 0 : index
    %c0_19 = arith.constant 0 : index
    %15 = vector.load %arg8[%c0_17, %c0_18, %c0_19] : memref<2x4x32xf32, #tpu.memory_space<vmem>>, vector<1x4x32xf32>
    %16 = vector.shape_cast %15 : vector<1x4x32xf32> to vector<4x32xf32>
    %c1_20 = arith.constant 1 : index
    %c0_21 = arith.constant 0 : index
    %c0_22 = arith.constant 0 : index
    %17 = vector.load %arg8[%c1_20, %c0_21, %c0_22] : memref<2x4x32xf32, #tpu.memory_space<vmem>>, vector<1x4x32xf32>
    %18 = vector.shape_cast %17 : vector<1x4x32xf32> to vector<4x32xf32>
    %c0_23 = arith.constant 0 : index
    %c0_24 = arith.constant 0 : index
    %c0_25 = arith.constant 0 : index
    %19 = vector.load %arg1[%c0_23, %c0_24, %c0_25] : memref<8x4x96xf32, #tpu.memory_space<vmem>>, vector<1x4x96xf32>
    %20 = vector.shape_cast %19 : vector<1x4x96xf32> to vector<4x96xf32>
    %21 = arith.truncf %16 : vector<4x32xf32> to vector<4x32xbf16>
    %cst = arith.constant dense<0.000000e+00> : vector<4x96xf32>
    %22 = tpu.matmul %21, %4, %cst {dimension_numbers = #tpu.dot_dimension_numbers<[1], [0], [0], [1], [0, 0, 1, 1], [], []>} : vector<4x32xbf16>, vector<32x96xbf16>, vector<4x96xf32> -> vector<4x96xf32>
    %23 = vector.broadcast %8 : vector<1x96xf32> to vector<4x96xf32>
    %24 = arith.addf %22, %23 : vector<4x96xf32>
    %25 = vector.extract_strided_slice %20 {offsets = [0, 0], sizes = [4, 32], strides = [1, 1]} : vector<4x96xf32> to vector<4x32xf32>
    %26 = vector.extract_strided_slice %24 {offsets = [0, 0], sizes = [4, 32], strides = [1, 1]} : vector<4x96xf32> to vector<4x32xf32>
    %27 = arith.addf %25, %26 : vector<4x32xf32>
    %28 = arith.negf %27 : vector<4x32xf32>
    %29 = math.exp %28 : vector<4x32xf32>
    %cst_26 = arith.constant 1.000000e+00 : f32
    %30 = vector.broadcast %cst_26 : f32 to vector<4x32xf32>
    %31 = arith.addf %30, %29 : vector<4x32xf32>
    %32 = arith.divf %30, %31 : vector<4x32xf32>
    %33 = vector.extract_strided_slice %20 {offsets = [0, 32], sizes = [4, 32], strides = [1, 1]} : vector<4x96xf32> to vector<4x32xf32>
    %34 = vector.extract_strided_slice %24 {offsets = [0, 32], sizes = [4, 32], strides = [1, 1]} : vector<4x96xf32> to vector<4x32xf32>
    %35 = arith.addf %33, %34 : vector<4x32xf32>
    %36 = arith.negf %35 : vector<4x32xf32>
    %37 = math.exp %36 : vector<4x32xf32>
    %cst_27 = arith.constant 1.000000e+00 : f32
    %38 = vector.broadcast %cst_27 : f32 to vector<4x32xf32>
    %39 = arith.addf %38, %37 : vector<4x32xf32>
    %40 = arith.divf %38, %39 : vector<4x32xf32>
    %41 = vector.extract_strided_slice %20 {offsets = [0, 64], sizes = [4, 32], strides = [1, 1]} : vector<4x96xf32> to vector<4x32xf32>
    %42 = vector.extract_strided_slice %24 {offsets = [0, 64], sizes = [4, 32], strides = [1, 1]} : vector<4x96xf32> to vector<4x32xf32>
    %43 = arith.mulf %32, %42 : vector<4x32xf32>
    %44 = arith.addf %41, %43 : vector<4x32xf32>
    %45 = math.tanh %44 : vector<4x32xf32>
    %cst_28 = arith.constant 1.000000e+00 : f32
    %46 = vector.broadcast %cst_28 : f32 to vector<4x32xf32>
    %47 = arith.subf %46, %40 : vector<4x32xf32>
    %48 = arith.mulf %47, %45 : vector<4x32xf32>
    %49 = arith.mulf %40, %16 : vector<4x32xf32>
    %50 = arith.addf %48, %49 : vector<4x32xf32>
    %51 = arith.truncf %50 : vector<4x32xf32> to vector<4x32xbf16>
    %cst_29 = arith.constant dense<0.000000e+00> : vector<4x96xf32>
    %52 = tpu.matmul %51, %12, %cst_29 {dimension_numbers = #tpu.dot_dimension_numbers<[1], [0], [0], [1], [0, 0, 1, 1], [], []>} : vector<4x32xbf16>, vector<32x96xbf16>, vector<4x96xf32> -> vector<4x96xf32>
    %53 = vector.broadcast %14 : vector<1x96xf32> to vector<4x96xf32>
    %54 = arith.addf %52, %53 : vector<4x96xf32>
    %55 = arith.truncf %18 : vector<4x32xf32> to vector<4x32xbf16>
    %cst_30 = arith.constant dense<0.000000e+00> : vector<4x96xf32>
    %56 = tpu.matmul %55, %6, %cst_30 {dimension_numbers = #tpu.dot_dimension_numbers<[1], [0], [0], [1], [0, 0, 1, 1], [], []>} : vector<4x32xbf16>, vector<32x96xbf16>, vector<4x96xf32> -> vector<4x96xf32>
    %57 = vector.broadcast %10 : vector<1x96xf32> to vector<4x96xf32>
    %58 = arith.addf %56, %57 : vector<4x96xf32>
    %59 = vector.extract_strided_slice %54 {offsets = [0, 0], sizes = [4, 32], strides = [1, 1]} : vector<4x96xf32> to vector<4x32xf32>
    %60 = vector.extract_strided_slice %58 {offsets = [0, 0], sizes = [4, 32], strides = [1, 1]} : vector<4x96xf32> to vector<4x32xf32>
    %61 = arith.addf %59, %60 : vector<4x32xf32>
    %62 = arith.negf %61 : vector<4x32xf32>
    %63 = math.exp %62 : vector<4x32xf32>
    %cst_31 = arith.constant 1.000000e+00 : f32
    %64 = vector.broadcast %cst_31 : f32 to vector<4x32xf32>
    %65 = arith.addf %64, %63 : vector<4x32xf32>
    %66 = arith.divf %64, %65 : vector<4x32xf32>
    %67 = vector.extract_strided_slice %54 {offsets = [0, 32], sizes = [4, 32], strides = [1, 1]} : vector<4x96xf32> to vector<4x32xf32>
    %68 = vector.extract_strided_slice %58 {offsets = [0, 32], sizes = [4, 32], strides = [1, 1]} : vector<4x96xf32> to vector<4x32xf32>
    %69 = arith.addf %67, %68 : vector<4x32xf32>
    %70 = arith.negf %69 : vector<4x32xf32>
    %71 = math.exp %70 : vector<4x32xf32>
    %cst_32 = arith.constant 1.000000e+00 : f32
    %72 = vector.broadcast %cst_32 : f32 to vector<4x32xf32>
    %73 = arith.addf %72, %71 : vector<4x32xf32>
    %74 = arith.divf %72, %73 : vector<4x32xf32>
    %75 = vector.extract_strided_slice %54 {offsets = [0, 64], sizes = [4, 32], strides = [1, 1]} : vector<4x96xf32> to vector<4x32xf32>
    %76 = vector.extract_strided_slice %58 {offsets = [0, 64], sizes = [4, 32], strides = [1, 1]} : vector<4x96xf32> to vector<4x32xf32>
    %77 = arith.mulf %66, %76 : vector<4x32xf32>
    %78 = arith.addf %75, %77 : vector<4x32xf32>
    %79 = math.tanh %78 : vector<4x32xf32>
    %cst_33 = arith.constant 1.000000e+00 : f32
    %80 = vector.broadcast %cst_33 : f32 to vector<4x32xf32>
    %81 = arith.subf %80, %74 : vector<4x32xf32>
    %82 = arith.mulf %81, %79 : vector<4x32xf32>
    %83 = arith.mulf %74, %18 : vector<4x32xf32>
    %84 = arith.addf %82, %83 : vector<4x32xf32>
    %c0_34 = arith.constant 0 : index
    %c0_35 = arith.constant 0 : index
    %c0_36 = arith.constant 0 : index
    %85 = vector.load %arg7[%c0_34, %c0_35, %c0_36] : memref<8x4x32xf32, #tpu.memory_space<vmem>>, vector<1x4x32xf32>
    %86 = vector.shape_cast %85 : vector<1x4x32xf32> to vector<4x32xf32>
    %87 = vector.shape_cast %84 : vector<4x32xf32> to vector<1x4x32xf32>
    tpu.vector_store %arg7[%c0_34, %c0_35, %c0_36], %87 {strides = array<i32>} : memref<8x4x32xf32, #tpu.memory_space<vmem>>, vector<1x4x32xf32>,
    %c1_37 = arith.constant 1 : index
    %c0_38 = arith.constant 0 : index
    %c0_39 = arith.constant 0 : index
    %88 = vector.load %arg1[%c1_37, %c0_38, %c0_39] : memref<8x4x96xf32, #tpu.memory_space<vmem>>, vector<1x4x96xf32>
    %89 = vector.shape_cast %88 : vector<1x4x96xf32> to vector<4x96xf32>
    %90 = arith.truncf %50 : vector<4x32xf32> to vector<4x32xbf16>
    %cst_40 = arith.constant dense<0.000000e+00> : vector<4x96xf32>
    %91 = tpu.matmul %90, %4, %cst_40 {dimension_numbers = #tpu.dot_dimension_numbers<[1], [0], [0], [1], [0, 0, 1, 1], [], []>} : vector<4x32xbf16>, vector<32x96xbf16>, vector<4x96xf32> -> vector<4x96xf32>
    %92 = vector.broadcast %8 : vector<1x96xf32> to vector<4x96xf32>
    %93 = arith.addf %91, %92 : vector<4x96xf32>
    %94 = vector.extract_strided_slice %89 {offsets = [0, 0], sizes = [4, 32], strides = [1, 1]} : vector<4x96xf32> to vector<4x32xf32>
    %95 = vector.extract_strided_slice %93 {offsets = [0, 0], sizes = [4, 32], strides = [1, 1]} : vector<4x96xf32> to vector<4x32xf32>
    %96 = arith.addf %94, %95 : vector<4x32xf32>
    %97 = arith.negf %96 : vector<4x32xf32>
    %98 = math.exp %97 : vector<4x32xf32>
    %cst_41 = arith.constant 1.000000e+00 : f32
    %99 = vector.broadcast %cst_41 : f32 to vector<4x32xf32>
    %100 = arith.addf %99, %98 : vector<4x32xf32>
    %101 = arith.divf %99, %100 : vector<4x32xf32>
    %102 = vector.extract_strided_slice %89 {offsets = [0, 32], sizes = [4, 32], strides = [1, 1]} : vector<4x96xf32> to vector<4x32xf32>
    %103 = vector.extract_strided_slice %93 {offsets = [0, 32], sizes = [4, 32], strides = [1, 1]} : vector<4x96xf32> to vector<4x32xf32>
    %104 = arith.addf %102, %103 : vector<4x32xf32>
    %105 = arith.negf %104 : vector<4x32xf32>
    %106 = math.exp %105 : vector<4x32xf32>
    %cst_42 = arith.constant 1.000000e+00 : f32
    %107 = vector.broadcast %cst_42 : f32 to vector<4x32xf32>
    %108 = arith.addf %107, %106 : vector<4x32xf32>
    %109 = arith.divf %107, %108 : vector<4x32xf32>
    %110 = vector.extract_strided_slice %89 {offsets = [0, 64], sizes = [4, 32], strides = [1, 1]} : vector<4x96xf32> to vector<4x32xf32>
    %111 = vector.extract_strided_slice %93 {offsets = [0, 64], sizes = [4, 32], strides = [1, 1]} : vector<4x96xf32> to vector<4x32xf32>
    %112 = arith.mulf %101, %111 : vector<4x32xf32>
    %113 = arith.addf %110, %112 : vector<4x32xf32>
    %114 = math.tanh %113 : vector<4x32xf32>
    %cst_43 = arith.constant 1.000000e+00 : f32
    %115 = vector.broadcast %cst_43 : f32 to vector<4x32xf32>
    %116 = arith.subf %115, %109 : vector<4x32xf32>
    %117 = arith.mulf %116, %114 : vector<4x32xf32>
    %118 = arith.mulf %109, %50 : vector<4x32xf32>
    %119 = arith.addf %117, %118 : vector<4x32xf32>
    %120 = arith.truncf %119 : vector<4x32xf32> to vector<4x32xbf16>
    %cst_44 = arith.constant dense<0.000000e+00> : vector<4x96xf32>
    %121 = tpu.matmul %120, %12, %cst_44 {dimension_numbers = #tpu.dot_dimension_numbers<[1], [0], [0], [1], [0, 0, 1, 1], [], []>} : vector<4x32xbf16>, vector<32x96xbf16>, vector<4x96xf32> -> vector<4x96xf32>
    %122 = vector.broadcast %14 : vector<1x96xf32> to vector<4x96xf32>
    %123 = arith.addf %121, %122 : vector<4x96xf32>
    %124 = arith.truncf %84 : vector<4x32xf32> to vector<4x32xbf16>
    %cst_45 = arith.constant dense<0.000000e+00> : vector<4x96xf32>
    %125 = tpu.matmul %124, %6, %cst_45 {dimension_numbers = #tpu.dot_dimension_numbers<[1], [0], [0], [1], [0, 0, 1, 1], [], []>} : vector<4x32xbf16>, vector<32x96xbf16>, vector<4x96xf32> -> vector<4x96xf32>
    %126 = vector.broadcast %10 : vector<1x96xf32> to vector<4x96xf32>
    %127 = arith.addf %125, %126 : vector<4x96xf32>
    %128 = vector.extract_strided_slice %123 {offsets = [0, 0], sizes = [4, 32], strides = [1, 1]} : vector<4x96xf32> to vector<4x32xf32>
    %129 = vector.extract_strided_slice %127 {offsets = [0, 0], sizes = [4, 32], strides = [1, 1]} : vector<4x96xf32> to vector<4x32xf32>
    %130 = arith.addf %128, %129 : vector<4x32xf32>
    %131 = arith.negf %130 : vector<4x32xf32>
    %132 = math.exp %131 : vector<4x32xf32>
    %cst_46 = arith.constant 1.000000e+00 : f32
    %133 = vector.broadcast %cst_46 : f32 to vector<4x32xf32>
    %134 = arith.addf %133, %132 : vector<4x32xf32>
    %135 = arith.divf %133, %134 : vector<4x32xf32>
    %136 = vector.extract_strided_slice %123 {offsets = [0, 32], sizes = [4, 32], strides = [1, 1]} : vector<4x96xf32> to vector<4x32xf32>
    %137 = vector.extract_strided_slice %127 {offsets = [0, 32], sizes = [4, 32], strides = [1, 1]} : vector<4x96xf32> to vector<4x32xf32>
    %138 = arith.addf %136, %137 : vector<4x32xf32>
    %139 = arith.negf %138 : vector<4x32xf32>
    %140 = math.exp %139 : vector<4x32xf32>
    %cst_47 = arith.constant 1.000000e+00 : f32
    %141 = vector.broadcast %cst_47 : f32 to vector<4x32xf32>
    %142 = arith.addf %141, %140 : vector<4x32xf32>
    %143 = arith.divf %141, %142 : vector<4x32xf32>
    %144 = vector.extract_strided_slice %123 {offsets = [0, 64], sizes = [4, 32], strides = [1, 1]} : vector<4x96xf32> to vector<4x32xf32>
    %145 = vector.extract_strided_slice %127 {offsets = [0, 64], sizes = [4, 32], strides = [1, 1]} : vector<4x96xf32> to vector<4x32xf32>
    %146 = arith.mulf %135, %145 : vector<4x32xf32>
    %147 = arith.addf %144, %146 : vector<4x32xf32>
    %148 = math.tanh %147 : vector<4x32xf32>
    %cst_48 = arith.constant 1.000000e+00 : f32
    %149 = vector.broadcast %cst_48 : f32 to vector<4x32xf32>
    %150 = arith.subf %149, %143 : vector<4x32xf32>
    %151 = arith.mulf %150, %148 : vector<4x32xf32>
    %152 = arith.mulf %143, %84 : vector<4x32xf32>
    %153 = arith.addf %151, %152 : vector<4x32xf32>
    %c1_49 = arith.constant 1 : index
    %c0_50 = arith.constant 0 : index
    %c0_51 = arith.constant 0 : index
    %154 = vector.load %arg7[%c1_49, %c0_50, %c0_51] : memref<8x4x32xf32, #tpu.memory_space<vmem>>, vector<1x4x32xf32>
    %155 = vector.shape_cast %154 : vector<1x4x32xf32> to vector<4x32xf32>
    %156 = vector.shape_cast %153 : vector<4x32xf32> to vector<1x4x32xf32>
    tpu.vector_store %arg7[%c1_49, %c0_50, %c0_51], %156 {strides = array<i32>} : memref<8x4x32xf32, #tpu.memory_space<vmem>>, vector<1x4x32xf32>,
    %c2 = arith.constant 2 : index
    %c0_52 = arith.constant 0 : index
    %c0_53 = arith.constant 0 : index
    %157 = vector.load %arg1[%c2, %c0_52, %c0_53] : memref<8x4x96xf32, #tpu.memory_space<vmem>>, vector<1x4x96xf32>
    %158 = vector.shape_cast %157 : vector<1x4x96xf32> to vector<4x96xf32>
    %159 = arith.truncf %119 : vector<4x32xf32> to vector<4x32xbf16>
    %cst_54 = arith.constant dense<0.000000e+00> : vector<4x96xf32>
    %160 = tpu.matmul %159, %4, %cst_54 {dimension_numbers = #tpu.dot_dimension_numbers<[1], [0], [0], [1], [0, 0, 1, 1], [], []>} : vector<4x32xbf16>, vector<32x96xbf16>, vector<4x96xf32> -> vector<4x96xf32>
    %161 = vector.broadcast %8 : vector<1x96xf32> to vector<4x96xf32>
    %162 = arith.addf %160, %161 : vector<4x96xf32>
    %163 = vector.extract_strided_slice %158 {offsets = [0, 0], sizes = [4, 32], strides = [1, 1]} : vector<4x96xf32> to vector<4x32xf32>
    %164 = vector.extract_strided_slice %162 {offsets = [0, 0], sizes = [4, 32], strides = [1, 1]} : vector<4x96xf32> to vector<4x32xf32>
    %165 = arith.addf %163, %164 : vector<4x32xf32>
    %166 = arith.negf %165 : vector<4x32xf32>
    %167 = math.exp %166 : vector<4x32xf32>
    %cst_55 = arith.constant 1.000000e+00 : f32
    %168 = vector.broadcast %cst_55 : f32 to vector<4x32xf32>
    %169 = arith.addf %168, %167 : vector<4x32xf32>
    %170 = arith.divf %168, %169 : vector<4x32xf32>
    %171 = vector.extract_strided_slice %158 {offsets = [0, 32], sizes = [4, 32], strides = [1, 1]} : vector<4x96xf32> to vector<4x32xf32>
    %172 = vector.extract_strided_slice %162 {offsets = [0, 32], sizes = [4, 32], strides = [1, 1]} : vector<4x96xf32> to vector<4x32xf32>
    %173 = arith.addf %171, %172 : vector<4x32xf32>
    %174 = arith.negf %173 : vector<4x32xf32>
    %175 = math.exp %174 : vector<4x32xf32>
    %cst_56 = arith.constant 1.000000e+00 : f32
    %176 = vector.broadcast %cst_56 : f32 to vector<4x32xf32>
    %177 = arith.addf %176, %175 : vector<4x32xf32>
    %178 = arith.divf %176, %177 : vector<4x32xf32>
    %179 = vector.extract_strided_slice %158 {offsets = [0, 64], sizes = [4, 32], strides = [1, 1]} : vector<4x96xf32> to vector<4x32xf32>
    %180 = vector.extract_strided_slice %162 {offsets = [0, 64], sizes = [4, 32], strides = [1, 1]} : vector<4x96xf32> to vector<4x32xf32>
    %181 = arith.mulf %170, %180 : vector<4x32xf32>
    %182 = arith.addf %179, %181 : vector<4x32xf32>
    %183 = math.tanh %182 : vector<4x32xf32>
    %cst_57 = arith.constant 1.000000e+00 : f32
    %184 = vector.broadcast %cst_57 : f32 to vector<4x32xf32>
    %185 = arith.subf %184, %178 : vector<4x32xf32>
    %186 = arith.mulf %185, %183 : vector<4x32xf32>
    %187 = arith.mulf %178, %119 : vector<4x32xf32>
    %188 = arith.addf %186, %187 : vector<4x32xf32>
    %189 = arith.truncf %188 : vector<4x32xf32> to vector<4x32xbf16>
    %cst_58 = arith.constant dense<0.000000e+00> : vector<4x96xf32>
    %190 = tpu.matmul %189, %12, %cst_58 {dimension_numbers = #tpu.dot_dimension_numbers<[1], [0], [0], [1], [0, 0, 1, 1], [], []>} : vector<4x32xbf16>, vector<32x96xbf16>, vector<4x96xf32> -> vector<4x96xf32>
    %191 = vector.broadcast %14 : vector<1x96xf32> to vector<4x96xf32>
    %192 = arith.addf %190, %191 : vector<4x96xf32>
    %193 = arith.truncf %153 : vector<4x32xf32> to vector<4x32xbf16>
    %cst_59 = arith.constant dense<0.000000e+00> : vector<4x96xf32>
    %194 = tpu.matmul %193, %6, %cst_59 {dimension_numbers = #tpu.dot_dimension_numbers<[1], [0], [0], [1], [0, 0, 1, 1], [], []>} : vector<4x32xbf16>, vector<32x96xbf16>, vector<4x96xf32> -> vector<4x96xf32>
    %195 = vector.broadcast %10 : vector<1x96xf32> to vector<4x96xf32>
    %196 = arith.addf %194, %195 : vector<4x96xf32>
    %197 = vector.extract_strided_slice %192 {offsets = [0, 0], sizes = [4, 32], strides = [1, 1]} : vector<4x96xf32> to vector<4x32xf32>
    %198 = vector.extract_strided_slice %196 {offsets = [0, 0], sizes = [4, 32], strides = [1, 1]} : vector<4x96xf32> to vector<4x32xf32>
    %199 = arith.addf %197, %198 : vector<4x32xf32>
    %200 = arith.negf %199 : vector<4x32xf32>
    %201 = math.exp %200 : vector<4x32xf32>
    %cst_60 = arith.constant 1.000000e+00 : f32
    %202 = vector.broadcast %cst_60 : f32 to vector<4x32xf32>
    %203 = arith.addf %202, %201 : vector<4x32xf32>
    %204 = arith.divf %202, %203 : vector<4x32xf32>
    %205 = vector.extract_strided_slice %192 {offsets = [0, 32], sizes = [4, 32], strides = [1, 1]} : vector<4x96xf32> to vector<4x32xf32>
    %206 = vector.extract_strided_slice %196 {offsets = [0, 32], sizes = [4, 32], strides = [1, 1]} : vector<4x96xf32> to vector<4x32xf32>
    %207 = arith.addf %205, %206 : vector<4x32xf32>
    %208 = arith.negf %207 : vector<4x32xf32>
    %209 = math.exp %208 : vector<4x32xf32>
    %cst_61 = arith.constant 1.000000e+00 : f32
    %210 = vector.broadcast %cst_61 : f32 to vector<4x32xf32>
    %211 = arith.addf %210, %209 : vector<4x32xf32>
    %212 = arith.divf %210, %211 : vector<4x32xf32>
    %213 = vector.extract_strided_slice %192 {offsets = [0, 64], sizes = [4, 32], strides = [1, 1]} : vector<4x96xf32> to vector<4x32xf32>
    %214 = vector.extract_strided_slice %196 {offsets = [0, 64], sizes = [4, 32], strides = [1, 1]} : vector<4x96xf32> to vector<4x32xf32>
    %215 = arith.mulf %204, %214 : vector<4x32xf32>
    %216 = arith.addf %213, %215 : vector<4x32xf32>
    %217 = math.tanh %216 : vector<4x32xf32>
    %cst_62 = arith.constant 1.000000e+00 : f32
    %218 = vector.broadcast %cst_62 : f32 to vector<4x32xf32>
    %219 = arith.subf %218, %212 : vector<4x32xf32>
    %220 = arith.mulf %219, %217 : vector<4x32xf32>
    %221 = arith.mulf %212, %153 : vector<4x32xf32>
    %222 = arith.addf %220, %221 : vector<4x32xf32>
    %c2_63 = arith.constant 2 : index
    %c0_64 = arith.constant 0 : index
    %c0_65 = arith.constant 0 : index
    %223 = vector.load %arg7[%c2_63, %c0_64, %c0_65] : memref<8x4x32xf32, #tpu.memory_space<vmem>>, vector<1x4x32xf32>
    %224 = vector.shape_cast %223 : vector<1x4x32xf32> to vector<4x32xf32>
    %225 = vector.shape_cast %222 : vector<4x32xf32> to vector<1x4x32xf32>
    tpu.vector_store %arg7[%c2_63, %c0_64, %c0_65], %225 {strides = array<i32>} : memref<8x4x32xf32, #tpu.memory_space<vmem>>, vector<1x4x32xf32>,
    %c3 = arith.constant 3 : index
    %c0_66 = arith.constant 0 : index
    %c0_67 = arith.constant 0 : index
    %226 = vector.load %arg1[%c3, %c0_66, %c0_67] : memref<8x4x96xf32, #tpu.memory_space<vmem>>, vector<1x4x96xf32>
    %227 = vector.shape_cast %226 : vector<1x4x96xf32> to vector<4x96xf32>
    %228 = arith.truncf %188 : vector<4x32xf32> to vector<4x32xbf16>
    %cst_68 = arith.constant dense<0.000000e+00> : vector<4x96xf32>
    %229 = tpu.matmul %228, %4, %cst_68 {dimension_numbers = #tpu.dot_dimension_numbers<[1], [0], [0], [1], [0, 0, 1, 1], [], []>} : vector<4x32xbf16>, vector<32x96xbf16>, vector<4x96xf32> -> vector<4x96xf32>
    %230 = vector.broadcast %8 : vector<1x96xf32> to vector<4x96xf32>
    %231 = arith.addf %229, %230 : vector<4x96xf32>
    %232 = vector.extract_strided_slice %227 {offsets = [0, 0], sizes = [4, 32], strides = [1, 1]} : vector<4x96xf32> to vector<4x32xf32>
    %233 = vector.extract_strided_slice %231 {offsets = [0, 0], sizes = [4, 32], strides = [1, 1]} : vector<4x96xf32> to vector<4x32xf32>
    %234 = arith.addf %232, %233 : vector<4x32xf32>
    %235 = arith.negf %234 : vector<4x32xf32>
    %236 = math.exp %235 : vector<4x32xf32>
    %cst_69 = arith.constant 1.000000e+00 : f32
    %237 = vector.broadcast %cst_69 : f32 to vector<4x32xf32>
    %238 = arith.addf %237, %236 : vector<4x32xf32>
    %239 = arith.divf %237, %238 : vector<4x32xf32>
    %240 = vector.extract_strided_slice %227 {offsets = [0, 32], sizes = [4, 32], strides = [1, 1]} : vector<4x96xf32> to vector<4x32xf32>
    %241 = vector.extract_strided_slice %231 {offsets = [0, 32], sizes = [4, 32], strides = [1, 1]} : vector<4x96xf32> to vector<4x32xf32>
    %242 = arith.addf %240, %241 : vector<4x32xf32>
    %243 = arith.negf %242 : vector<4x32xf32>
    %244 = math.exp %243 : vector<4x32xf32>
    %cst_70 = arith.constant 1.000000e+00 : f32
    %245 = vector.broadcast %cst_70 : f32 to vector<4x32xf32>
    %246 = arith.addf %245, %244 : vector<4x32xf32>
    %247 = arith.divf %245, %246 : vector<4x32xf32>
    %248 = vector.extract_strided_slice %227 {offsets = [0, 64], sizes = [4, 32], strides = [1, 1]} : vector<4x96xf32> to vector<4x32xf32>
    %249 = vector.extract_strided_slice %231 {offsets = [0, 64], sizes = [4, 32], strides = [1, 1]} : vector<4x96xf32> to vector<4x32xf32>
    %250 = arith.mulf %239, %249 : vector<4x32xf32>
    %251 = arith.addf %248, %250 : vector<4x32xf32>
    %252 = math.tanh %251 : vector<4x32xf32>
    %cst_71 = arith.constant 1.000000e+00 : f32
    %253 = vector.broadcast %cst_71 : f32 to vector<4x32xf32>
    %254 = arith.subf %253, %247 : vector<4x32xf32>
    %255 = arith.mulf %254, %252 : vector<4x32xf32>
    %256 = arith.mulf %247, %188 : vector<4x32xf32>
    %257 = arith.addf %255, %256 : vector<4x32xf32>
    %258 = arith.truncf %257 : vector<4x32xf32> to vector<4x32xbf16>
    %cst_72 = arith.constant dense<0.000000e+00> : vector<4x96xf32>
    %259 = tpu.matmul %258, %12, %cst_72 {dimension_numbers = #tpu.dot_dimension_numbers<[1], [0], [0], [1], [0, 0, 1, 1], [], []>} : vector<4x32xbf16>, vector<32x96xbf16>, vector<4x96xf32> -> vector<4x96xf32>
    %260 = vector.broadcast %14 : vector<1x96xf32> to vector<4x96xf32>
    %261 = arith.addf %259, %260 : vector<4x96xf32>
    %262 = arith.truncf %222 : vector<4x32xf32> to vector<4x32xbf16>
    %cst_73 = arith.constant dense<0.000000e+00> : vector<4x96xf32>
    %263 = tpu.matmul %262, %6, %cst_73 {dimension_numbers = #tpu.dot_dimension_numbers<[1], [0], [0], [1], [0, 0, 1, 1], [], []>} : vector<4x32xbf16>, vector<32x96xbf16>, vector<4x96xf32> -> vector<4x96xf32>
    %264 = vector.broadcast %10 : vector<1x96xf32> to vector<4x96xf32>
    %265 = arith.addf %263, %264 : vector<4x96xf32>
    %266 = vector.extract_strided_slice %261 {offsets = [0, 0], sizes = [4, 32], strides = [1, 1]} : vector<4x96xf32> to vector<4x32xf32>
    %267 = vector.extract_strided_slice %265 {offsets = [0, 0], sizes = [4, 32], strides = [1, 1]} : vector<4x96xf32> to vector<4x32xf32>
    %268 = arith.addf %266, %267 : vector<4x32xf32>
    %269 = arith.negf %268 : vector<4x32xf32>
    %270 = math.exp %269 : vector<4x32xf32>
    %cst_74 = arith.constant 1.000000e+00 : f32
    %271 = vector.broadcast %cst_74 : f32 to vector<4x32xf32>
    %272 = arith.addf %271, %270 : vector<4x32xf32>
    %273 = arith.divf %271, %272 : vector<4x32xf32>
    %274 = vector.extract_strided_slice %261 {offsets = [0, 32], sizes = [4, 32], strides = [1, 1]} : vector<4x96xf32> to vector<4x32xf32>
    %275 = vector.extract_strided_slice %265 {offsets = [0, 32], sizes = [4, 32], strides = [1, 1]} : vector<4x96xf32> to vector<4x32xf32>
    %276 = arith.addf %274, %275 : vector<4x32xf32>
    %277 = arith.negf %276 : vector<4x32xf32>
    %278 = math.exp %277 : vector<4x32xf32>
    %cst_75 = arith.constant 1.000000e+00 : f32
    %279 = vector.broadcast %cst_75 : f32 to vector<4x32xf32>
    %280 = arith.addf %279, %278 : vector<4x32xf32>
    %281 = arith.divf %279, %280 : vector<4x32xf32>
    %282 = vector.extract_strided_slice %261 {offsets = [0, 64], sizes = [4, 32], strides = [1, 1]} : vector<4x96xf32> to vector<4x32xf32>
    %283 = vector.extract_strided_slice %265 {offsets = [0, 64], sizes = [4, 32], strides = [1, 1]} : vector<4x96xf32> to vector<4x32xf32>
    %284 = arith.mulf %273, %283 : vector<4x32xf32>
    %285 = arith.addf %282, %284 : vector<4x32xf32>
    %286 = math.tanh %285 : vector<4x32xf32>
    %cst_76 = arith.constant 1.000000e+00 : f32
    %287 = vector.broadcast %cst_76 : f32 to vector<4x32xf32>
    %288 = arith.subf %287, %281 : vector<4x32xf32>
    %289 = arith.mulf %288, %286 : vector<4x32xf32>
    %290 = arith.mulf %281, %222 : vector<4x32xf32>
    %291 = arith.addf %289, %290 : vector<4x32xf32>
    %c3_77 = arith.constant 3 : index
    %c0_78 = arith.constant 0 : index
    %c0_79 = arith.constant 0 : index
    %292 = vector.load %arg7[%c3_77, %c0_78, %c0_79] : memref<8x4x32xf32, #tpu.memory_space<vmem>>, vector<1x4x32xf32>
    %293 = vector.shape_cast %292 : vector<1x4x32xf32> to vector<4x32xf32>
    %294 = vector.shape_cast %291 : vector<4x32xf32> to vector<1x4x32xf32>
    tpu.vector_store %arg7[%c3_77, %c0_78, %c0_79], %294 {strides = array<i32>} : memref<8x4x32xf32, #tpu.memory_space<vmem>>, vector<1x4x32xf32>,
    %c4 = arith.constant 4 : index
    %c0_80 = arith.constant 0 : index
    %c0_81 = arith.constant 0 : index
    %295 = vector.load %arg1[%c4, %c0_80, %c0_81] : memref<8x4x96xf32, #tpu.memory_space<vmem>>, vector<1x4x96xf32>
    %296 = vector.shape_cast %295 : vector<1x4x96xf32> to vector<4x96xf32>
    %297 = arith.truncf %257 : vector<4x32xf32> to vector<4x32xbf16>
    %cst_82 = arith.constant dense<0.000000e+00> : vector<4x96xf32>
    %298 = tpu.matmul %297, %4, %cst_82 {dimension_numbers = #tpu.dot_dimension_numbers<[1], [0], [0], [1], [0, 0, 1, 1], [], []>} : vector<4x32xbf16>, vector<32x96xbf16>, vector<4x96xf32> -> vector<4x96xf32>
    %299 = vector.broadcast %8 : vector<1x96xf32> to vector<4x96xf32>
    %300 = arith.addf %298, %299 : vector<4x96xf32>
    %301 = vector.extract_strided_slice %296 {offsets = [0, 0], sizes = [4, 32], strides = [1, 1]} : vector<4x96xf32> to vector<4x32xf32>
    %302 = vector.extract_strided_slice %300 {offsets = [0, 0], sizes = [4, 32], strides = [1, 1]} : vector<4x96xf32> to vector<4x32xf32>
    %303 = arith.addf %301, %302 : vector<4x32xf32>
    %304 = arith.negf %303 : vector<4x32xf32>
    %305 = math.exp %304 : vector<4x32xf32>
    %cst_83 = arith.constant 1.000000e+00 : f32
    %306 = vector.broadcast %cst_83 : f32 to vector<4x32xf32>
    %307 = arith.addf %306, %305 : vector<4x32xf32>
    %308 = arith.divf %306, %307 : vector<4x32xf32>
    %309 = vector.extract_strided_slice %296 {offsets = [0, 32], sizes = [4, 32], strides = [1, 1]} : vector<4x96xf32> to vector<4x32xf32>
    %310 = vector.extract_strided_slice %300 {offsets = [0, 32], sizes = [4, 32], strides = [1, 1]} : vector<4x96xf32> to vector<4x32xf32>
    %311 = arith.addf %309, %310 : vector<4x32xf32>
    %312 = arith.negf %311 : vector<4x32xf32>
    %313 = math.exp %312 : vector<4x32xf32>
    %cst_84 = arith.constant 1.000000e+00 : f32
    %314 = vector.broadcast %cst_84 : f32 to vector<4x32xf32>
    %315 = arith.addf %314, %313 : vector<4x32xf32>
    %316 = arith.divf %314, %315 : vector<4x32xf32>
    %317 = vector.extract_strided_slice %296 {offsets = [0, 64], sizes = [4, 32], strides = [1, 1]} : vector<4x96xf32> to vector<4x32xf32>
    %318 = vector.extract_strided_slice %300 {offsets = [0, 64], sizes = [4, 32], strides = [1, 1]} : vector<4x96xf32> to vector<4x32xf32>
    %319 = arith.mulf %308, %318 : vector<4x32xf32>
    %320 = arith.addf %317, %319 : vector<4x32xf32>
    %321 = math.tanh %320 : vector<4x32xf32>
    %cst_85 = arith.constant 1.000000e+00 : f32
    %322 = vector.broadcast %cst_85 : f32 to vector<4x32xf32>
    %323 = arith.subf %322, %316 : vector<4x32xf32>
    %324 = arith.mulf %323, %321 : vector<4x32xf32>
    %325 = arith.mulf %316, %257 : vector<4x32xf32>
    %326 = arith.addf %324, %325 : vector<4x32xf32>
    %327 = arith.truncf %326 : vector<4x32xf32> to vector<4x32xbf16>
    %cst_86 = arith.constant dense<0.000000e+00> : vector<4x96xf32>
    %328 = tpu.matmul %327, %12, %cst_86 {dimension_numbers = #tpu.dot_dimension_numbers<[1], [0], [0], [1], [0, 0, 1, 1], [], []>} : vector<4x32xbf16>, vector<32x96xbf16>, vector<4x96xf32> -> vector<4x96xf32>
    %329 = vector.broadcast %14 : vector<1x96xf32> to vector<4x96xf32>
    %330 = arith.addf %328, %329 : vector<4x96xf32>
    %331 = arith.truncf %291 : vector<4x32xf32> to vector<4x32xbf16>
    %cst_87 = arith.constant dense<0.000000e+00> : vector<4x96xf32>
    %332 = tpu.matmul %331, %6, %cst_87 {dimension_numbers = #tpu.dot_dimension_numbers<[1], [0], [0], [1], [0, 0, 1, 1], [], []>} : vector<4x32xbf16>, vector<32x96xbf16>, vector<4x96xf32> -> vector<4x96xf32>
    %333 = vector.broadcast %10 : vector<1x96xf32> to vector<4x96xf32>
    %334 = arith.addf %332, %333 : vector<4x96xf32>
    %335 = vector.extract_strided_slice %330 {offsets = [0, 0], sizes = [4, 32], strides = [1, 1]} : vector<4x96xf32> to vector<4x32xf32>
    %336 = vector.extract_strided_slice %334 {offsets = [0, 0], sizes = [4, 32], strides = [1, 1]} : vector<4x96xf32> to vector<4x32xf32>
    %337 = arith.addf %335, %336 : vector<4x32xf32>
    %338 = arith.negf %337 : vector<4x32xf32>
    %339 = math.exp %338 : vector<4x32xf32>
    %cst_88 = arith.constant 1.000000e+00 : f32
    %340 = vector.broadcast %cst_88 : f32 to vector<4x32xf32>
    %341 = arith.addf %340, %339 : vector<4x32xf32>
    %342 = arith.divf %340, %341 : vector<4x32xf32>
    %343 = vector.extract_strided_slice %330 {offsets = [0, 32], sizes = [4, 32], strides = [1, 1]} : vector<4x96xf32> to vector<4x32xf32>
    %344 = vector.extract_strided_slice %334 {offsets = [0, 32], sizes = [4, 32], strides = [1, 1]} : vector<4x96xf32> to vector<4x32xf32>
    %345 = arith.addf %343, %344 : vector<4x32xf32>
    %346 = arith.negf %345 : vector<4x32xf32>
    %347 = math.exp %346 : vector<4x32xf32>
    %cst_89 = arith.constant 1.000000e+00 : f32
    %348 = vector.broadcast %cst_89 : f32 to vector<4x32xf32>
    %349 = arith.addf %348, %347 : vector<4x32xf32>
    %350 = arith.divf %348, %349 : vector<4x32xf32>
    %351 = vector.extract_strided_slice %330 {offsets = [0, 64], sizes = [4, 32], strides = [1, 1]} : vector<4x96xf32> to vector<4x32xf32>
    %352 = vector.extract_strided_slice %334 {offsets = [0, 64], sizes = [4, 32], strides = [1, 1]} : vector<4x96xf32> to vector<4x32xf32>
    %353 = arith.mulf %342, %352 : vector<4x32xf32>
    %354 = arith.addf %351, %353 : vector<4x32xf32>
    %355 = math.tanh %354 : vector<4x32xf32>
    %cst_90 = arith.constant 1.000000e+00 : f32
    %356 = vector.broadcast %cst_90 : f32 to vector<4x32xf32>
    %357 = arith.subf %356, %350 : vector<4x32xf32>
    %358 = arith.mulf %357, %355 : vector<4x32xf32>
    %359 = arith.mulf %350, %291 : vector<4x32xf32>
    %360 = arith.addf %358, %359 : vector<4x32xf32>
    %c4_91 = arith.constant 4 : index
    %c0_92 = arith.constant 0 : index
    %c0_93 = arith.constant 0 : index
    %361 = vector.load %arg7[%c4_91, %c0_92, %c0_93] : memref<8x4x32xf32, #tpu.memory_space<vmem>>, vector<1x4x32xf32>
    %362 = vector.shape_cast %361 : vector<1x4x32xf32> to vector<4x32xf32>
    %363 = vector.shape_cast %360 : vector<4x32xf32> to vector<1x4x32xf32>
    tpu.vector_store %arg7[%c4_91, %c0_92, %c0_93], %363 {strides = array<i32>} : memref<8x4x32xf32, #tpu.memory_space<vmem>>, vector<1x4x32xf32>,
    %c5 = arith.constant 5 : index
    %c0_94 = arith.constant 0 : index
    %c0_95 = arith.constant 0 : index
    %364 = vector.load %arg1[%c5, %c0_94, %c0_95] : memref<8x4x96xf32, #tpu.memory_space<vmem>>, vector<1x4x96xf32>
    %365 = vector.shape_cast %364 : vector<1x4x96xf32> to vector<4x96xf32>
    %366 = arith.truncf %326 : vector<4x32xf32> to vector<4x32xbf16>
    %cst_96 = arith.constant dense<0.000000e+00> : vector<4x96xf32>
    %367 = tpu.matmul %366, %4, %cst_96 {dimension_numbers = #tpu.dot_dimension_numbers<[1], [0], [0], [1], [0, 0, 1, 1], [], []>} : vector<4x32xbf16>, vector<32x96xbf16>, vector<4x96xf32> -> vector<4x96xf32>
    %368 = vector.broadcast %8 : vector<1x96xf32> to vector<4x96xf32>
    %369 = arith.addf %367, %368 : vector<4x96xf32>
    %370 = vector.extract_strided_slice %365 {offsets = [0, 0], sizes = [4, 32], strides = [1, 1]} : vector<4x96xf32> to vector<4x32xf32>
    %371 = vector.extract_strided_slice %369 {offsets = [0, 0], sizes = [4, 32], strides = [1, 1]} : vector<4x96xf32> to vector<4x32xf32>
    %372 = arith.addf %370, %371 : vector<4x32xf32>
    %373 = arith.negf %372 : vector<4x32xf32>
    %374 = math.exp %373 : vector<4x32xf32>
    %cst_97 = arith.constant 1.000000e+00 : f32
    %375 = vector.broadcast %cst_97 : f32 to vector<4x32xf32>
    %376 = arith.addf %375, %374 : vector<4x32xf32>
    %377 = arith.divf %375, %376 : vector<4x32xf32>
    %378 = vector.extract_strided_slice %365 {offsets = [0, 32], sizes = [4, 32], strides = [1, 1]} : vector<4x96xf32> to vector<4x32xf32>
    %379 = vector.extract_strided_slice %369 {offsets = [0, 32], sizes = [4, 32], strides = [1, 1]} : vector<4x96xf32> to vector<4x32xf32>
    %380 = arith.addf %378, %379 : vector<4x32xf32>
    %381 = arith.negf %380 : vector<4x32xf32>
    %382 = math.exp %381 : vector<4x32xf32>
    %cst_98 = arith.constant 1.000000e+00 : f32
    %383 = vector.broadcast %cst_98 : f32 to vector<4x32xf32>
    %384 = arith.addf %383, %382 : vector<4x32xf32>
    %385 = arith.divf %383, %384 : vector<4x32xf32>
    %386 = vector.extract_strided_slice %365 {offsets = [0, 64], sizes = [4, 32], strides = [1, 1]} : vector<4x96xf32> to vector<4x32xf32>
    %387 = vector.extract_strided_slice %369 {offsets = [0, 64], sizes = [4, 32], strides = [1, 1]} : vector<4x96xf32> to vector<4x32xf32>
    %388 = arith.mulf %377, %387 : vector<4x32xf32>
    %389 = arith.addf %386, %388 : vector<4x32xf32>
    %390 = math.tanh %389 : vector<4x32xf32>
    %cst_99 = arith.constant 1.000000e+00 : f32
    %391 = vector.broadcast %cst_99 : f32 to vector<4x32xf32>
    %392 = arith.subf %391, %385 : vector<4x32xf32>
    %393 = arith.mulf %392, %390 : vector<4x32xf32>
    %394 = arith.mulf %385, %326 : vector<4x32xf32>
    %395 = arith.addf %393, %394 : vector<4x32xf32>
    %396 = arith.truncf %395 : vector<4x32xf32> to vector<4x32xbf16>
    %cst_100 = arith.constant dense<0.000000e+00> : vector<4x96xf32>
    %397 = tpu.matmul %396, %12, %cst_100 {dimension_numbers = #tpu.dot_dimension_numbers<[1], [0], [0], [1], [0, 0, 1, 1], [], []>} : vector<4x32xbf16>, vector<32x96xbf16>, vector<4x96xf32> -> vector<4x96xf32>
    %398 = vector.broadcast %14 : vector<1x96xf32> to vector<4x96xf32>
    %399 = arith.addf %397, %398 : vector<4x96xf32>
    %400 = arith.truncf %360 : vector<4x32xf32> to vector<4x32xbf16>
    %cst_101 = arith.constant dense<0.000000e+00> : vector<4x96xf32>
    %401 = tpu.matmul %400, %6, %cst_101 {dimension_numbers = #tpu.dot_dimension_numbers<[1], [0], [0], [1], [0, 0, 1, 1], [], []>} : vector<4x32xbf16>, vector<32x96xbf16>, vector<4x96xf32> -> vector<4x96xf32>
    %402 = vector.broadcast %10 : vector<1x96xf32> to vector<4x96xf32>
    %403 = arith.addf %401, %402 : vector<4x96xf32>
    %404 = vector.extract_strided_slice %399 {offsets = [0, 0], sizes = [4, 32], strides = [1, 1]} : vector<4x96xf32> to vector<4x32xf32>
    %405 = vector.extract_strided_slice %403 {offsets = [0, 0], sizes = [4, 32], strides = [1, 1]} : vector<4x96xf32> to vector<4x32xf32>
    %406 = arith.addf %404, %405 : vector<4x32xf32>
    %407 = arith.negf %406 : vector<4x32xf32>
    %408 = math.exp %407 : vector<4x32xf32>
    %cst_102 = arith.constant 1.000000e+00 : f32
    %409 = vector.broadcast %cst_102 : f32 to vector<4x32xf32>
    %410 = arith.addf %409, %408 : vector<4x32xf32>
    %411 = arith.divf %409, %410 : vector<4x32xf32>
    %412 = vector.extract_strided_slice %399 {offsets = [0, 32], sizes = [4, 32], strides = [1, 1]} : vector<4x96xf32> to vector<4x32xf32>
    %413 = vector.extract_strided_slice %403 {offsets = [0, 32], sizes = [4, 32], strides = [1, 1]} : vector<4x96xf32> to vector<4x32xf32>
    %414 = arith.addf %412, %413 : vector<4x32xf32>
    %415 = arith.negf %414 : vector<4x32xf32>
    %416 = math.exp %415 : vector<4x32xf32>
    %cst_103 = arith.constant 1.000000e+00 : f32
    %417 = vector.broadcast %cst_103 : f32 to vector<4x32xf32>
    %418 = arith.addf %417, %416 : vector<4x32xf32>
    %419 = arith.divf %417, %418 : vector<4x32xf32>
    %420 = vector.extract_strided_slice %399 {offsets = [0, 64], sizes = [4, 32], strides = [1, 1]} : vector<4x96xf32> to vector<4x32xf32>
    %421 = vector.extract_strided_slice %403 {offsets = [0, 64], sizes = [4, 32], strides = [1, 1]} : vector<4x96xf32> to vector<4x32xf32>
    %422 = arith.mulf %411, %421 : vector<4x32xf32>
    %423 = arith.addf %420, %422 : vector<4x32xf32>
    %424 = math.tanh %423 : vector<4x32xf32>
    %cst_104 = arith.constant 1.000000e+00 : f32
    %425 = vector.broadcast %cst_104 : f32 to vector<4x32xf32>
    %426 = arith.subf %425, %419 : vector<4x32xf32>
    %427 = arith.mulf %426, %424 : vector<4x32xf32>
    %428 = arith.mulf %419, %360 : vector<4x32xf32>
    %429 = arith.addf %427, %428 : vector<4x32xf32>
    %c5_105 = arith.constant 5 : index
    %c0_106 = arith.constant 0 : index
    %c0_107 = arith.constant 0 : index
    %430 = vector.load %arg7[%c5_105, %c0_106, %c0_107] : memref<8x4x32xf32, #tpu.memory_space<vmem>>, vector<1x4x32xf32>
    %431 = vector.shape_cast %430 : vector<1x4x32xf32> to vector<4x32xf32>
    %432 = vector.shape_cast %429 : vector<4x32xf32> to vector<1x4x32xf32>
    tpu.vector_store %arg7[%c5_105, %c0_106, %c0_107], %432 {strides = array<i32>} : memref<8x4x32xf32, #tpu.memory_space<vmem>>, vector<1x4x32xf32>,
    %c6 = arith.constant 6 : index
    %c0_108 = arith.constant 0 : index
    %c0_109 = arith.constant 0 : index
    %433 = vector.load %arg1[%c6, %c0_108, %c0_109] : memref<8x4x96xf32, #tpu.memory_space<vmem>>, vector<1x4x96xf32>
    %434 = vector.shape_cast %433 : vector<1x4x96xf32> to vector<4x96xf32>
    %435 = arith.truncf %395 : vector<4x32xf32> to vector<4x32xbf16>
    %cst_110 = arith.constant dense<0.000000e+00> : vector<4x96xf32>
    %436 = tpu.matmul %435, %4, %cst_110 {dimension_numbers = #tpu.dot_dimension_numbers<[1], [0], [0], [1], [0, 0, 1, 1], [], []>} : vector<4x32xbf16>, vector<32x96xbf16>, vector<4x96xf32> -> vector<4x96xf32>
    %437 = vector.broadcast %8 : vector<1x96xf32> to vector<4x96xf32>
    %438 = arith.addf %436, %437 : vector<4x96xf32>
    %439 = vector.extract_strided_slice %434 {offsets = [0, 0], sizes = [4, 32], strides = [1, 1]} : vector<4x96xf32> to vector<4x32xf32>
    %440 = vector.extract_strided_slice %438 {offsets = [0, 0], sizes = [4, 32], strides = [1, 1]} : vector<4x96xf32> to vector<4x32xf32>
    %441 = arith.addf %439, %440 : vector<4x32xf32>
    %442 = arith.negf %441 : vector<4x32xf32>
    %443 = math.exp %442 : vector<4x32xf32>
    %cst_111 = arith.constant 1.000000e+00 : f32
    %444 = vector.broadcast %cst_111 : f32 to vector<4x32xf32>
    %445 = arith.addf %444, %443 : vector<4x32xf32>
    %446 = arith.divf %444, %445 : vector<4x32xf32>
    %447 = vector.extract_strided_slice %434 {offsets = [0, 32], sizes = [4, 32], strides = [1, 1]} : vector<4x96xf32> to vector<4x32xf32>
    %448 = vector.extract_strided_slice %438 {offsets = [0, 32], sizes = [4, 32], strides = [1, 1]} : vector<4x96xf32> to vector<4x32xf32>
    %449 = arith.addf %447, %448 : vector<4x32xf32>
    %450 = arith.negf %449 : vector<4x32xf32>
    %451 = math.exp %450 : vector<4x32xf32>
    %cst_112 = arith.constant 1.000000e+00 : f32
    %452 = vector.broadcast %cst_112 : f32 to vector<4x32xf32>
    %453 = arith.addf %452, %451 : vector<4x32xf32>
    %454 = arith.divf %452, %453 : vector<4x32xf32>
    %455 = vector.extract_strided_slice %434 {offsets = [0, 64], sizes = [4, 32], strides = [1, 1]} : vector<4x96xf32> to vector<4x32xf32>
    %456 = vector.extract_strided_slice %438 {offsets = [0, 64], sizes = [4, 32], strides = [1, 1]} : vector<4x96xf32> to vector<4x32xf32>
    %457 = arith.mulf %446, %456 : vector<4x32xf32>
    %458 = arith.addf %455, %457 : vector<4x32xf32>
    %459 = math.tanh %458 : vector<4x32xf32>
    %cst_113 = arith.constant 1.000000e+00 : f32
    %460 = vector.broadcast %cst_113 : f32 to vector<4x32xf32>
    %461 = arith.subf %460, %454 : vector<4x32xf32>
    %462 = arith.mulf %461, %459 : vector<4x32xf32>
    %463 = arith.mulf %454, %395 : vector<4x32xf32>
    %464 = arith.addf %462, %463 : vector<4x32xf32>
    %465 = arith.truncf %464 : vector<4x32xf32> to vector<4x32xbf16>
    %cst_114 = arith.constant dense<0.000000e+00> : vector<4x96xf32>
    %466 = tpu.matmul %465, %12, %cst_114 {dimension_numbers = #tpu.dot_dimension_numbers<[1], [0], [0], [1], [0, 0, 1, 1], [], []>} : vector<4x32xbf16>, vector<32x96xbf16>, vector<4x96xf32> -> vector<4x96xf32>
    %467 = vector.broadcast %14 : vector<1x96xf32> to vector<4x96xf32>
    %468 = arith.addf %466, %467 : vector<4x96xf32>
    %469 = arith.truncf %429 : vector<4x32xf32> to vector<4x32xbf16>
    %cst_115 = arith.constant dense<0.000000e+00> : vector<4x96xf32>
    %470 = tpu.matmul %469, %6, %cst_115 {dimension_numbers = #tpu.dot_dimension_numbers<[1], [0], [0], [1], [0, 0, 1, 1], [], []>} : vector<4x32xbf16>, vector<32x96xbf16>, vector<4x96xf32> -> vector<4x96xf32>
    %471 = vector.broadcast %10 : vector<1x96xf32> to vector<4x96xf32>
    %472 = arith.addf %470, %471 : vector<4x96xf32>
    %473 = vector.extract_strided_slice %468 {offsets = [0, 0], sizes = [4, 32], strides = [1, 1]} : vector<4x96xf32> to vector<4x32xf32>
    %474 = vector.extract_strided_slice %472 {offsets = [0, 0], sizes = [4, 32], strides = [1, 1]} : vector<4x96xf32> to vector<4x32xf32>
    %475 = arith.addf %473, %474 : vector<4x32xf32>
    %476 = arith.negf %475 : vector<4x32xf32>
    %477 = math.exp %476 : vector<4x32xf32>
    %cst_116 = arith.constant 1.000000e+00 : f32
    %478 = vector.broadcast %cst_116 : f32 to vector<4x32xf32>
    %479 = arith.addf %478, %477 : vector<4x32xf32>
    %480 = arith.divf %478, %479 : vector<4x32xf32>
    %481 = vector.extract_strided_slice %468 {offsets = [0, 32], sizes = [4, 32], strides = [1, 1]} : vector<4x96xf32> to vector<4x32xf32>
    %482 = vector.extract_strided_slice %472 {offsets = [0, 32], sizes = [4, 32], strides = [1, 1]} : vector<4x96xf32> to vector<4x32xf32>
    %483 = arith.addf %481, %482 : vector<4x32xf32>
    %484 = arith.negf %483 : vector<4x32xf32>
    %485 = math.exp %484 : vector<4x32xf32>
    %cst_117 = arith.constant 1.000000e+00 : f32
    %486 = vector.broadcast %cst_117 : f32 to vector<4x32xf32>
    %487 = arith.addf %486, %485 : vector<4x32xf32>
    %488 = arith.divf %486, %487 : vector<4x32xf32>
    %489 = vector.extract_strided_slice %468 {offsets = [0, 64], sizes = [4, 32], strides = [1, 1]} : vector<4x96xf32> to vector<4x32xf32>
    %490 = vector.extract_strided_slice %472 {offsets = [0, 64], sizes = [4, 32], strides = [1, 1]} : vector<4x96xf32> to vector<4x32xf32>
    %491 = arith.mulf %480, %490 : vector<4x32xf32>
    %492 = arith.addf %489, %491 : vector<4x32xf32>
    %493 = math.tanh %492 : vector<4x32xf32>
    %cst_118 = arith.constant 1.000000e+00 : f32
    %494 = vector.broadcast %cst_118 : f32 to vector<4x32xf32>
    %495 = arith.subf %494, %488 : vector<4x32xf32>
    %496 = arith.mulf %495, %493 : vector<4x32xf32>
    %497 = arith.mulf %488, %429 : vector<4x32xf32>
    %498 = arith.addf %496, %497 : vector<4x32xf32>
    %c6_119 = arith.constant 6 : index
    %c0_120 = arith.constant 0 : index
    %c0_121 = arith.constant 0 : index
    %499 = vector.load %arg7[%c6_119, %c0_120, %c0_121] : memref<8x4x32xf32, #tpu.memory_space<vmem>>, vector<1x4x32xf32>
    %500 = vector.shape_cast %499 : vector<1x4x32xf32> to vector<4x32xf32>
    %501 = vector.shape_cast %498 : vector<4x32xf32> to vector<1x4x32xf32>
    tpu.vector_store %arg7[%c6_119, %c0_120, %c0_121], %501 {strides = array<i32>} : memref<8x4x32xf32, #tpu.memory_space<vmem>>, vector<1x4x32xf32>,
    %c7 = arith.constant 7 : index
    %c0_122 = arith.constant 0 : index
    %c0_123 = arith.constant 0 : index
    %502 = vector.load %arg1[%c7, %c0_122, %c0_123] : memref<8x4x96xf32, #tpu.memory_space<vmem>>, vector<1x4x96xf32>
    %503 = vector.shape_cast %502 : vector<1x4x96xf32> to vector<4x96xf32>
    %504 = arith.truncf %464 : vector<4x32xf32> to vector<4x32xbf16>
    %cst_124 = arith.constant dense<0.000000e+00> : vector<4x96xf32>
    %505 = tpu.matmul %504, %4, %cst_124 {dimension_numbers = #tpu.dot_dimension_numbers<[1], [0], [0], [1], [0, 0, 1, 1], [], []>} : vector<4x32xbf16>, vector<32x96xbf16>, vector<4x96xf32> -> vector<4x96xf32>
    %506 = vector.broadcast %8 : vector<1x96xf32> to vector<4x96xf32>
    %507 = arith.addf %505, %506 : vector<4x96xf32>
    %508 = vector.extract_strided_slice %503 {offsets = [0, 0], sizes = [4, 32], strides = [1, 1]} : vector<4x96xf32> to vector<4x32xf32>
    %509 = vector.extract_strided_slice %507 {offsets = [0, 0], sizes = [4, 32], strides = [1, 1]} : vector<4x96xf32> to vector<4x32xf32>
    %510 = arith.addf %508, %509 : vector<4x32xf32>
    %511 = arith.negf %510 : vector<4x32xf32>
    %512 = math.exp %511 : vector<4x32xf32>
    %cst_125 = arith.constant 1.000000e+00 : f32
    %513 = vector.broadcast %cst_125 : f32 to vector<4x32xf32>
    %514 = arith.addf %513, %512 : vector<4x32xf32>
    %515 = arith.divf %513, %514 : vector<4x32xf32>
    %516 = vector.extract_strided_slice %503 {offsets = [0, 32], sizes = [4, 32], strides = [1, 1]} : vector<4x96xf32> to vector<4x32xf32>
    %517 = vector.extract_strided_slice %507 {offsets = [0, 32], sizes = [4, 32], strides = [1, 1]} : vector<4x96xf32> to vector<4x32xf32>
    %518 = arith.addf %516, %517 : vector<4x32xf32>
    %519 = arith.negf %518 : vector<4x32xf32>
    %520 = math.exp %519 : vector<4x32xf32>
    %cst_126 = arith.constant 1.000000e+00 : f32
    %521 = vector.broadcast %cst_126 : f32 to vector<4x32xf32>
    %522 = arith.addf %521, %520 : vector<4x32xf32>
    %523 = arith.divf %521, %522 : vector<4x32xf32>
    %524 = vector.extract_strided_slice %503 {offsets = [0, 64], sizes = [4, 32], strides = [1, 1]} : vector<4x96xf32> to vector<4x32xf32>
    %525 = vector.extract_strided_slice %507 {offsets = [0, 64], sizes = [4, 32], strides = [1, 1]} : vector<4x96xf32> to vector<4x32xf32>
    %526 = arith.mulf %515, %525 : vector<4x32xf32>
    %527 = arith.addf %524, %526 : vector<4x32xf32>
    %528 = math.tanh %527 : vector<4x32xf32>
    %cst_127 = arith.constant 1.000000e+00 : f32
    %529 = vector.broadcast %cst_127 : f32 to vector<4x32xf32>
    %530 = arith.subf %529, %523 : vector<4x32xf32>
    %531 = arith.mulf %530, %528 : vector<4x32xf32>
    %532 = arith.mulf %523, %464 : vector<4x32xf32>
    %533 = arith.addf %531, %532 : vector<4x32xf32>
    %534 = arith.truncf %533 : vector<4x32xf32> to vector<4x32xbf16>
    %cst_128 = arith.constant dense<0.000000e+00> : vector<4x96xf32>
    %535 = tpu.matmul %534, %12, %cst_128 {dimension_numbers = #tpu.dot_dimension_numbers<[1], [0], [0], [1], [0, 0, 1, 1], [], []>} : vector<4x32xbf16>, vector<32x96xbf16>, vector<4x96xf32> -> vector<4x96xf32>
    %536 = vector.broadcast %14 : vector<1x96xf32> to vector<4x96xf32>
    %537 = arith.addf %535, %536 : vector<4x96xf32>
    %538 = arith.truncf %498 : vector<4x32xf32> to vector<4x32xbf16>
    %cst_129 = arith.constant dense<0.000000e+00> : vector<4x96xf32>
    %539 = tpu.matmul %538, %6, %cst_129 {dimension_numbers = #tpu.dot_dimension_numbers<[1], [0], [0], [1], [0, 0, 1, 1], [], []>} : vector<4x32xbf16>, vector<32x96xbf16>, vector<4x96xf32> -> vector<4x96xf32>
    %540 = vector.broadcast %10 : vector<1x96xf32> to vector<4x96xf32>
    %541 = arith.addf %539, %540 : vector<4x96xf32>
    %542 = vector.extract_strided_slice %537 {offsets = [0, 0], sizes = [4, 32], strides = [1, 1]} : vector<4x96xf32> to vector<4x32xf32>
    %543 = vector.extract_strided_slice %541 {offsets = [0, 0], sizes = [4, 32], strides = [1, 1]} : vector<4x96xf32> to vector<4x32xf32>
    %544 = arith.addf %542, %543 : vector<4x32xf32>
    %545 = arith.negf %544 : vector<4x32xf32>
    %546 = math.exp %545 : vector<4x32xf32>
    %cst_130 = arith.constant 1.000000e+00 : f32
    %547 = vector.broadcast %cst_130 : f32 to vector<4x32xf32>
    %548 = arith.addf %547, %546 : vector<4x32xf32>
    %549 = arith.divf %547, %548 : vector<4x32xf32>
    %550 = vector.extract_strided_slice %537 {offsets = [0, 32], sizes = [4, 32], strides = [1, 1]} : vector<4x96xf32> to vector<4x32xf32>
    %551 = vector.extract_strided_slice %541 {offsets = [0, 32], sizes = [4, 32], strides = [1, 1]} : vector<4x96xf32> to vector<4x32xf32>
    %552 = arith.addf %550, %551 : vector<4x32xf32>
    %553 = arith.negf %552 : vector<4x32xf32>
    %554 = math.exp %553 : vector<4x32xf32>
    %cst_131 = arith.constant 1.000000e+00 : f32
    %555 = vector.broadcast %cst_131 : f32 to vector<4x32xf32>
    %556 = arith.addf %555, %554 : vector<4x32xf32>
    %557 = arith.divf %555, %556 : vector<4x32xf32>
    %558 = vector.extract_strided_slice %537 {offsets = [0, 64], sizes = [4, 32], strides = [1, 1]} : vector<4x96xf32> to vector<4x32xf32>
    %559 = vector.extract_strided_slice %541 {offsets = [0, 64], sizes = [4, 32], strides = [1, 1]} : vector<4x96xf32> to vector<4x32xf32>
    %560 = arith.mulf %549, %559 : vector<4x32xf32>
    %561 = arith.addf %558, %560 : vector<4x32xf32>
    %562 = math.tanh %561 : vector<4x32xf32>
    %cst_132 = arith.constant 1.000000e+00 : f32
    %563 = vector.broadcast %cst_132 : f32 to vector<4x32xf32>
    %564 = arith.subf %563, %557 : vector<4x32xf32>
    %565 = arith.mulf %564, %562 : vector<4x32xf32>
    %566 = arith.mulf %557, %498 : vector<4x32xf32>
    %567 = arith.addf %565, %566 : vector<4x32xf32>
    %c7_133 = arith.constant 7 : index
    %c0_134 = arith.constant 0 : index
    %c0_135 = arith.constant 0 : index
    %568 = vector.load %arg7[%c7_133, %c0_134, %c0_135] : memref<8x4x32xf32, #tpu.memory_space<vmem>>, vector<1x4x32xf32>
    %569 = vector.shape_cast %568 : vector<1x4x32xf32> to vector<4x32xf32>
    %570 = vector.shape_cast %567 : vector<4x32xf32> to vector<1x4x32xf32>
    tpu.vector_store %arg7[%c7_133, %c0_134, %c0_135], %570 {strides = array<i32>} : memref<8x4x32xf32, #tpu.memory_space<vmem>>, vector<1x4x32xf32>,
    %c0_136 = arith.constant 0 : index
    %c0_137 = arith.constant 0 : index
    %c0_138 = arith.constant 0 : index
    %571 = vector.load %arg8[%c0_136, %c0_137, %c0_138] : memref<2x4x32xf32, #tpu.memory_space<vmem>>, vector<1x4x32xf32>
    %572 = vector.shape_cast %571 : vector<1x4x32xf32> to vector<4x32xf32>
    %573 = vector.shape_cast %533 : vector<4x32xf32> to vector<1x4x32xf32>
    tpu.vector_store %arg8[%c0_136, %c0_137, %c0_138], %573 {strides = array<i32>} : memref<2x4x32xf32, #tpu.memory_space<vmem>>, vector<1x4x32xf32>,
    %c1_139 = arith.constant 1 : index
    %c0_140 = arith.constant 0 : index
    %c0_141 = arith.constant 0 : index
    %574 = vector.load %arg8[%c1_139, %c0_140, %c0_141] : memref<2x4x32xf32, #tpu.memory_space<vmem>>, vector<1x4x32xf32>
    %575 = vector.shape_cast %574 : vector<1x4x32xf32> to vector<4x32xf32>
    %576 = vector.shape_cast %567 : vector<4x32xf32> to vector<1x4x32xf32>
    tpu.vector_store %arg8[%c1_139, %c0_140, %c0_141], %576 {strides = array<i32>} : memref<2x4x32xf32, #tpu.memory_space<vmem>>, vector<1x4x32xf32>,
    return
  }
  func.func @transform_0(%arg0: i32) -> (i32, i32, i32) {
    %c0_i32 = arith.constant 0 : i32
    %c0_i32_0 = arith.constant 0 : i32
    %c0_i32_1 = arith.constant 0 : i32
    return %arg0, %c0_i32, %c0_i32_0 : i32, i32, i32
  }
  func.func @transform_1(%arg0: i32) -> (i32, i32, i32) {
    %c0_i32 = arith.constant 0 : i32
    %c0_i32_0 = arith.constant 0 : i32
    %c0_i32_1 = arith.constant 0 : i32
    %c0_i32_2 = arith.constant 0 : i32
    return %c0_i32, %c0_i32_0, %c0_i32_1 : i32, i32, i32
  }
  func.func @transform_2(%arg0: i32) -> (i32, i32, i32) {
    %c0_i32 = arith.constant 0 : i32
    %c0_i32_0 = arith.constant 0 : i32
    %c0_i32_1 = arith.constant 0 : i32
    %c0_i32_2 = arith.constant 0 : i32
    return %c0_i32, %c0_i32_0, %c0_i32_1 : i32, i32, i32
  }
  func.func @transform_3(%arg0: i32) -> (i32, i32, i32) {
    %c0_i32 = arith.constant 0 : i32
    %c0_i32_0 = arith.constant 0 : i32
    %c0_i32_1 = arith.constant 0 : i32
    %c0_i32_2 = arith.constant 0 : i32
    return %c0_i32, %c0_i32_0, %c0_i32_1 : i32, i32, i32
  }
  func.func @transform_4(%arg0: i32) -> (i32, i32, i32) {
    %c0_i32 = arith.constant 0 : i32
    %c0_i32_0 = arith.constant 0 : i32
    %c0_i32_1 = arith.constant 0 : i32
    %c0_i32_2 = arith.constant 0 : i32
    return %c0_i32, %c0_i32_0, %c0_i32_1 : i32, i32, i32
  }
  func.func @transform_5(%arg0: i32) -> (i32, i32, i32) {
    %c0_i32 = arith.constant 0 : i32
    %c0_i32_0 = arith.constant 0 : i32
    %c0_i32_1 = arith.constant 0 : i32
    %c0_i32_2 = arith.constant 0 : i32
    return %c0_i32, %c0_i32_0, %c0_i32_1 : i32, i32, i32
  }
  func.func @transform_6(%arg0: i32) -> (i32, i32, i32) {
    %c0_i32 = arith.constant 0 : i32
    %c0_i32_0 = arith.constant 0 : i32
    %c0_i32_1 = arith.constant 0 : i32
    return %arg0, %c0_i32, %c0_i32_0 : i32, i32, i32
  }
}

module attributes {stable_mosaic.version = 11 : i64} {
  func.func @_embed_gates_kernel(%arg0: i32, %arg1: memref<88x1xf32, #tpu.memory_space<vmem>>, %arg2: memref<1x8xf32, #tpu.memory_space<vmem>>, %arg3: memref<1x8xf32, #tpu.memory_space<vmem>>, %arg4: memref<8x48xbf16, #tpu.memory_space<vmem>>, %arg5: memref<1x48xf32, #tpu.memory_space<vmem>>, %arg6: memref<88x48xf32, #tpu.memory_space<vmem>>) attributes {dimension_semantics = [#tpu.dimension_semantics<arbitrary>], iteration_bounds = array<i64: 1>, scalar_prefetch = 0 : i64, scratch_operands = 0 : i64, tpu.core_type = #tpu.core_type<tc>, window_params = [{pipeline_mode = #tpu.pipeline_mode<synchronous>, transform_indices = @transform_0, window_bounds = array<i64: 88, 1>}, {pipeline_mode = #tpu.pipeline_mode<synchronous>, transform_indices = @transform_1, window_bounds = array<i64: 1, 8>}, {pipeline_mode = #tpu.pipeline_mode<synchronous>, transform_indices = @transform_2, window_bounds = array<i64: 1, 8>}, {pipeline_mode = #tpu.pipeline_mode<synchronous>, transform_indices = @transform_3, window_bounds = array<i64: 8, 48>}, {pipeline_mode = #tpu.pipeline_mode<synchronous>, transform_indices = @transform_4, window_bounds = array<i64: 1, 48>}, {pipeline_mode = #tpu.pipeline_mode<synchronous>, transform_indices = @transform_5, window_bounds = array<i64: 88, 48>}]} {
    %c0 = arith.constant 0 : index
    %c0_0 = arith.constant 0 : index
    %0 = vector.load %arg1[%c0, %c0_0] : memref<88x1xf32, #tpu.memory_space<vmem>>, vector<88x1xf32>
    %c0_1 = arith.constant 0 : index
    %c0_2 = arith.constant 0 : index
    %1 = vector.load %arg2[%c0_1, %c0_2] : memref<1x8xf32, #tpu.memory_space<vmem>>, vector<1x8xf32>
    %2 = vector.broadcast %0 : vector<88x1xf32> to vector<88x8xf32>
    %3 = vector.broadcast %1 : vector<1x8xf32> to vector<88x8xf32>
    %4 = arith.mulf %2, %3 : vector<88x8xf32>
    %c0_3 = arith.constant 0 : index
    %c0_4 = arith.constant 0 : index
    %5 = vector.load %arg3[%c0_3, %c0_4] : memref<1x8xf32, #tpu.memory_space<vmem>>, vector<1x8xf32>
    %6 = vector.broadcast %5 : vector<1x8xf32> to vector<88x8xf32>
    %7 = arith.addf %4, %6 : vector<88x8xf32>
    %cst = arith.constant 0.000000e+00 : f32
    %8 = vector.broadcast %cst : f32 to vector<88x8xf32>
    %9 = arith.maximumf %7, %8 : vector<88x8xf32>
    %10 = arith.truncf %9 : vector<88x8xf32> to vector<88x8xbf16>
    %c0_5 = arith.constant 0 : index
    %c0_6 = arith.constant 0 : index
    %11 = vector.load %arg4[%c0_5, %c0_6] : memref<8x48xbf16, #tpu.memory_space<vmem>>, vector<8x48xbf16>
    %cst_7 = arith.constant dense<0.000000e+00> : vector<88x48xf32>
    %12 = tpu.matmul %10, %11, %cst_7 {dimension_numbers = #tpu.dot_dimension_numbers<[1], [0], [0], [1], [0, 0, 1, 1], [], []>} : vector<88x8xbf16>, vector<8x48xbf16>, vector<88x48xf32> -> vector<88x48xf32>
    %c0_8 = arith.constant 0 : index
    %c0_9 = arith.constant 0 : index
    %13 = vector.load %arg5[%c0_8, %c0_9] : memref<1x48xf32, #tpu.memory_space<vmem>>, vector<1x48xf32>
    %14 = vector.broadcast %13 : vector<1x48xf32> to vector<88x48xf32>
    %15 = arith.addf %12, %14 : vector<88x48xf32>
    %c0_10 = arith.constant 0 : index
    %c0_11 = arith.constant 0 : index
    %16 = vector.load %arg6[%c0_10, %c0_11] : memref<88x48xf32, #tpu.memory_space<vmem>>, vector<88x48xf32>
    tpu.vector_store %arg6[%c0_10, %c0_11], %15 {strides = array<i32>} : memref<88x48xf32, #tpu.memory_space<vmem>>, vector<88x48xf32>,
    return
  }
  func.func @transform_0(%arg0: i32) -> (i32, i32) {
    %c0_i32 = arith.constant 0 : i32
    %c0_i32_0 = arith.constant 0 : i32
    %c0_i32_1 = arith.constant 0 : i32
    return %c0_i32, %c0_i32_0 : i32, i32
  }
  func.func @transform_1(%arg0: i32) -> (i32, i32) {
    %c0_i32 = arith.constant 0 : i32
    %c0_i32_0 = arith.constant 0 : i32
    %c0_i32_1 = arith.constant 0 : i32
    return %c0_i32, %c0_i32_0 : i32, i32
  }
  func.func @transform_2(%arg0: i32) -> (i32, i32) {
    %c0_i32 = arith.constant 0 : i32
    %c0_i32_0 = arith.constant 0 : i32
    %c0_i32_1 = arith.constant 0 : i32
    return %c0_i32, %c0_i32_0 : i32, i32
  }
  func.func @transform_3(%arg0: i32) -> (i32, i32) {
    %c0_i32 = arith.constant 0 : i32
    %c0_i32_0 = arith.constant 0 : i32
    %c0_i32_1 = arith.constant 0 : i32
    return %c0_i32, %c0_i32_0 : i32, i32
  }
  func.func @transform_4(%arg0: i32) -> (i32, i32) {
    %c0_i32 = arith.constant 0 : i32
    %c0_i32_0 = arith.constant 0 : i32
    %c0_i32_1 = arith.constant 0 : i32
    return %c0_i32, %c0_i32_0 : i32, i32
  }
  func.func @transform_5(%arg0: i32) -> (i32, i32) {
    %c0_i32 = arith.constant 0 : i32
    %c0_i32_0 = arith.constant 0 : i32
    %c0_i32_1 = arith.constant 0 : i32
    return %c0_i32, %c0_i32_0 : i32, i32
  }
}

module attributes {stable_mosaic.version = 11 : i64} {
  func.func @_gru_stack_kernel(%arg0: i32, %arg1: memref<4x22x48xf32, #tpu.memory_space<vmem>>, %arg2: memref<2x22x16xf32, #tpu.memory_space<vmem>>, %arg3: memref<2x16x48xbf16, #tpu.memory_space<vmem>>, %arg4: memref<2x1x48xf32, #tpu.memory_space<vmem>>, %arg5: memref<1x16x48xbf16, #tpu.memory_space<vmem>>, %arg6: memref<1x1x48xf32, #tpu.memory_space<vmem>>, %arg7: memref<4x22x16xf32, #tpu.memory_space<vmem>>, %arg8: memref<2x22x16xf32, #tpu.memory_space<vmem>>) attributes {dimension_semantics = [#tpu.dimension_semantics<arbitrary>], iteration_bounds = array<i64: 1>, scalar_prefetch = 0 : i64, scratch_operands = 1 : i64, tpu.core_type = #tpu.core_type<tc>, window_params = [{transform_indices = @transform_0, window_bounds = array<i64: 4, 22, 48>}, {pipeline_mode = #tpu.pipeline_mode<synchronous>, transform_indices = @transform_1, window_bounds = array<i64: 2, 22, 16>}, {pipeline_mode = #tpu.pipeline_mode<synchronous>, transform_indices = @transform_2, window_bounds = array<i64: 2, 16, 48>}, {pipeline_mode = #tpu.pipeline_mode<synchronous>, transform_indices = @transform_3, window_bounds = array<i64: 2, 1, 48>}, {pipeline_mode = #tpu.pipeline_mode<synchronous>, transform_indices = @transform_4, window_bounds = array<i64: 1, 16, 48>}, {pipeline_mode = #tpu.pipeline_mode<synchronous>, transform_indices = @transform_5, window_bounds = array<i64: 1, 1, 48>}, {transform_indices = @transform_6, window_bounds = array<i64: 4, 22, 16>}]} {
    %c0_i32 = arith.constant 0 : i32
    %0 = arith.cmpi eq, %arg0, %c0_i32 : i32
    %1 = arith.extui %0 : i1 to i32
    %c0_i32_0 = arith.constant 0 : i32
    %2 = arith.cmpi ne, %1, %c0_i32_0 : i32
    scf.if %2 {
      %c0_86 = arith.constant 0 : index
      %c0_87 = arith.constant 0 : index
      %c0_88 = arith.constant 0 : index
      %301 = vector.load %arg2[%c0_86, %c0_87, %c0_88] : memref<2x22x16xf32, #tpu.memory_space<vmem>>, vector<2x22x16xf32>
      %c0_89 = arith.constant 0 : index
      %c0_90 = arith.constant 0 : index
      %c0_91 = arith.constant 0 : index
      %302 = vector.load %arg8[%c0_89, %c0_90, %c0_91] : memref<2x22x16xf32, #tpu.memory_space<vmem>>, vector<2x22x16xf32>
      tpu.vector_store %arg8[%c0_89, %c0_90, %c0_91], %301 {strides = array<i32>} : memref<2x22x16xf32, #tpu.memory_space<vmem>>, vector<2x22x16xf32>,
    } else {
    }
    %c0 = arith.constant 0 : index
    %c0_1 = arith.constant 0 : index
    %c0_2 = arith.constant 0 : index
    %3 = vector.load %arg3[%c0, %c0_1, %c0_2] : memref<2x16x48xbf16, #tpu.memory_space<vmem>>, vector<1x16x48xbf16>
    %4 = vector.shape_cast %3 : vector<1x16x48xbf16> to vector<16x48xbf16>
    %c1 = arith.constant 1 : index
    %c0_3 = arith.constant 0 : index
    %c0_4 = arith.constant 0 : index
    %5 = vector.load %arg3[%c1, %c0_3, %c0_4] : memref<2x16x48xbf16, #tpu.memory_space<vmem>>, vector<1x16x48xbf16>
    %6 = vector.shape_cast %5 : vector<1x16x48xbf16> to vector<16x48xbf16>
    %c0_5 = arith.constant 0 : index
    %c0_6 = arith.constant 0 : index
    %c0_7 = arith.constant 0 : index
    %7 = vector.load %arg4[%c0_5, %c0_6, %c0_7] : memref<2x1x48xf32, #tpu.memory_space<vmem>>, vector<1x1x48xf32>
    %8 = vector.shape_cast %7 : vector<1x1x48xf32> to vector<1x48xf32>
    %c1_8 = arith.constant 1 : index
    %c0_9 = arith.constant 0 : index
    %c0_10 = arith.constant 0 : index
    %9 = vector.load %arg4[%c1_8, %c0_9, %c0_10] : memref<2x1x48xf32, #tpu.memory_space<vmem>>, vector<1x1x48xf32>
    %10 = vector.shape_cast %9 : vector<1x1x48xf32> to vector<1x48xf32>
    %c0_11 = arith.constant 0 : index
    %c0_12 = arith.constant 0 : index
    %c0_13 = arith.constant 0 : index
    %11 = vector.load %arg5[%c0_11, %c0_12, %c0_13] : memref<1x16x48xbf16, #tpu.memory_space<vmem>>, vector<1x16x48xbf16>
    %12 = vector.shape_cast %11 : vector<1x16x48xbf16> to vector<16x48xbf16>
    %c0_14 = arith.constant 0 : index
    %c0_15 = arith.constant 0 : index
    %c0_16 = arith.constant 0 : index
    %13 = vector.load %arg6[%c0_14, %c0_15, %c0_16] : memref<1x1x48xf32, #tpu.memory_space<vmem>>, vector<1x1x48xf32>
    %14 = vector.shape_cast %13 : vector<1x1x48xf32> to vector<1x48xf32>
    %c0_17 = arith.constant 0 : index
    %c0_18 = arith.constant 0 : index
    %c0_19 = arith.constant 0 : index
    %15 = vector.load %arg8[%c0_17, %c0_18, %c0_19] : memref<2x22x16xf32, #tpu.memory_space<vmem>>, vector<1x22x16xf32>
    %16 = vector.shape_cast %15 : vector<1x22x16xf32> to vector<22x16xf32>
    %c1_20 = arith.constant 1 : index
    %c0_21 = arith.constant 0 : index
    %c0_22 = arith.constant 0 : index
    %17 = vector.load %arg8[%c1_20, %c0_21, %c0_22] : memref<2x22x16xf32, #tpu.memory_space<vmem>>, vector<1x22x16xf32>
    %18 = vector.shape_cast %17 : vector<1x22x16xf32> to vector<22x16xf32>
    %c0_23 = arith.constant 0 : index
    %c0_24 = arith.constant 0 : index
    %c0_25 = arith.constant 0 : index
    %19 = vector.load %arg1[%c0_23, %c0_24, %c0_25] : memref<4x22x48xf32, #tpu.memory_space<vmem>>, vector<1x22x48xf32>
    %20 = vector.shape_cast %19 : vector<1x22x48xf32> to vector<22x48xf32>
    %21 = arith.truncf %16 : vector<22x16xf32> to vector<22x16xbf16>
    %cst = arith.constant dense<0.000000e+00> : vector<22x48xf32>
    %22 = tpu.matmul %21, %4, %cst {dimension_numbers = #tpu.dot_dimension_numbers<[1], [0], [0], [1], [0, 0, 1, 1], [], []>} : vector<22x16xbf16>, vector<16x48xbf16>, vector<22x48xf32> -> vector<22x48xf32>
    %23 = vector.broadcast %8 : vector<1x48xf32> to vector<22x48xf32>
    %24 = arith.addf %22, %23 : vector<22x48xf32>
    %25 = vector.extract_strided_slice %20 {offsets = [0, 0], sizes = [22, 16], strides = [1, 1]} : vector<22x48xf32> to vector<22x16xf32>
    %26 = vector.extract_strided_slice %24 {offsets = [0, 0], sizes = [22, 16], strides = [1, 1]} : vector<22x48xf32> to vector<22x16xf32>
    %27 = arith.addf %25, %26 : vector<22x16xf32>
    %28 = arith.negf %27 : vector<22x16xf32>
    %29 = math.exp %28 : vector<22x16xf32>
    %cst_26 = arith.constant 1.000000e+00 : f32
    %30 = vector.broadcast %cst_26 : f32 to vector<22x16xf32>
    %31 = arith.addf %30, %29 : vector<22x16xf32>
    %32 = arith.divf %30, %31 : vector<22x16xf32>
    %33 = vector.extract_strided_slice %20 {offsets = [0, 16], sizes = [22, 16], strides = [1, 1]} : vector<22x48xf32> to vector<22x16xf32>
    %34 = vector.extract_strided_slice %24 {offsets = [0, 16], sizes = [22, 16], strides = [1, 1]} : vector<22x48xf32> to vector<22x16xf32>
    %35 = arith.addf %33, %34 : vector<22x16xf32>
    %36 = arith.negf %35 : vector<22x16xf32>
    %37 = math.exp %36 : vector<22x16xf32>
    %cst_27 = arith.constant 1.000000e+00 : f32
    %38 = vector.broadcast %cst_27 : f32 to vector<22x16xf32>
    %39 = arith.addf %38, %37 : vector<22x16xf32>
    %40 = arith.divf %38, %39 : vector<22x16xf32>
    %41 = vector.extract_strided_slice %20 {offsets = [0, 32], sizes = [22, 16], strides = [1, 1]} : vector<22x48xf32> to vector<22x16xf32>
    %42 = vector.extract_strided_slice %24 {offsets = [0, 32], sizes = [22, 16], strides = [1, 1]} : vector<22x48xf32> to vector<22x16xf32>
    %43 = arith.mulf %32, %42 : vector<22x16xf32>
    %44 = arith.addf %41, %43 : vector<22x16xf32>
    %45 = math.tanh %44 : vector<22x16xf32>
    %cst_28 = arith.constant 1.000000e+00 : f32
    %46 = vector.broadcast %cst_28 : f32 to vector<22x16xf32>
    %47 = arith.subf %46, %40 : vector<22x16xf32>
    %48 = arith.mulf %47, %45 : vector<22x16xf32>
    %49 = arith.mulf %40, %16 : vector<22x16xf32>
    %50 = arith.addf %48, %49 : vector<22x16xf32>
    %51 = arith.truncf %50 : vector<22x16xf32> to vector<22x16xbf16>
    %cst_29 = arith.constant dense<0.000000e+00> : vector<22x48xf32>
    %52 = tpu.matmul %51, %12, %cst_29 {dimension_numbers = #tpu.dot_dimension_numbers<[1], [0], [0], [1], [0, 0, 1, 1], [], []>} : vector<22x16xbf16>, vector<16x48xbf16>, vector<22x48xf32> -> vector<22x48xf32>
    %53 = vector.broadcast %14 : vector<1x48xf32> to vector<22x48xf32>
    %54 = arith.addf %52, %53 : vector<22x48xf32>
    %55 = arith.truncf %18 : vector<22x16xf32> to vector<22x16xbf16>
    %cst_30 = arith.constant dense<0.000000e+00> : vector<22x48xf32>
    %56 = tpu.matmul %55, %6, %cst_30 {dimension_numbers = #tpu.dot_dimension_numbers<[1], [0], [0], [1], [0, 0, 1, 1], [], []>} : vector<22x16xbf16>, vector<16x48xbf16>, vector<22x48xf32> -> vector<22x48xf32>
    %57 = vector.broadcast %10 : vector<1x48xf32> to vector<22x48xf32>
    %58 = arith.addf %56, %57 : vector<22x48xf32>
    %59 = vector.extract_strided_slice %54 {offsets = [0, 0], sizes = [22, 16], strides = [1, 1]} : vector<22x48xf32> to vector<22x16xf32>
    %60 = vector.extract_strided_slice %58 {offsets = [0, 0], sizes = [22, 16], strides = [1, 1]} : vector<22x48xf32> to vector<22x16xf32>
    %61 = arith.addf %59, %60 : vector<22x16xf32>
    %62 = arith.negf %61 : vector<22x16xf32>
    %63 = math.exp %62 : vector<22x16xf32>
    %cst_31 = arith.constant 1.000000e+00 : f32
    %64 = vector.broadcast %cst_31 : f32 to vector<22x16xf32>
    %65 = arith.addf %64, %63 : vector<22x16xf32>
    %66 = arith.divf %64, %65 : vector<22x16xf32>
    %67 = vector.extract_strided_slice %54 {offsets = [0, 16], sizes = [22, 16], strides = [1, 1]} : vector<22x48xf32> to vector<22x16xf32>
    %68 = vector.extract_strided_slice %58 {offsets = [0, 16], sizes = [22, 16], strides = [1, 1]} : vector<22x48xf32> to vector<22x16xf32>
    %69 = arith.addf %67, %68 : vector<22x16xf32>
    %70 = arith.negf %69 : vector<22x16xf32>
    %71 = math.exp %70 : vector<22x16xf32>
    %cst_32 = arith.constant 1.000000e+00 : f32
    %72 = vector.broadcast %cst_32 : f32 to vector<22x16xf32>
    %73 = arith.addf %72, %71 : vector<22x16xf32>
    %74 = arith.divf %72, %73 : vector<22x16xf32>
    %75 = vector.extract_strided_slice %54 {offsets = [0, 32], sizes = [22, 16], strides = [1, 1]} : vector<22x48xf32> to vector<22x16xf32>
    %76 = vector.extract_strided_slice %58 {offsets = [0, 32], sizes = [22, 16], strides = [1, 1]} : vector<22x48xf32> to vector<22x16xf32>
    %77 = arith.mulf %66, %76 : vector<22x16xf32>
    %78 = arith.addf %75, %77 : vector<22x16xf32>
    %79 = math.tanh %78 : vector<22x16xf32>
    %cst_33 = arith.constant 1.000000e+00 : f32
    %80 = vector.broadcast %cst_33 : f32 to vector<22x16xf32>
    %81 = arith.subf %80, %74 : vector<22x16xf32>
    %82 = arith.mulf %81, %79 : vector<22x16xf32>
    %83 = arith.mulf %74, %18 : vector<22x16xf32>
    %84 = arith.addf %82, %83 : vector<22x16xf32>
    %c0_34 = arith.constant 0 : index
    %c0_35 = arith.constant 0 : index
    %c0_36 = arith.constant 0 : index
    %85 = vector.load %arg7[%c0_34, %c0_35, %c0_36] : memref<4x22x16xf32, #tpu.memory_space<vmem>>, vector<1x22x16xf32>
    %86 = vector.shape_cast %85 : vector<1x22x16xf32> to vector<22x16xf32>
    %87 = vector.shape_cast %84 : vector<22x16xf32> to vector<1x22x16xf32>
    tpu.vector_store %arg7[%c0_34, %c0_35, %c0_36], %87 {strides = array<i32>} : memref<4x22x16xf32, #tpu.memory_space<vmem>>, vector<1x22x16xf32>,
    %c1_37 = arith.constant 1 : index
    %c0_38 = arith.constant 0 : index
    %c0_39 = arith.constant 0 : index
    %88 = vector.load %arg1[%c1_37, %c0_38, %c0_39] : memref<4x22x48xf32, #tpu.memory_space<vmem>>, vector<1x22x48xf32>
    %89 = vector.shape_cast %88 : vector<1x22x48xf32> to vector<22x48xf32>
    %90 = arith.truncf %50 : vector<22x16xf32> to vector<22x16xbf16>
    %cst_40 = arith.constant dense<0.000000e+00> : vector<22x48xf32>
    %91 = tpu.matmul %90, %4, %cst_40 {dimension_numbers = #tpu.dot_dimension_numbers<[1], [0], [0], [1], [0, 0, 1, 1], [], []>} : vector<22x16xbf16>, vector<16x48xbf16>, vector<22x48xf32> -> vector<22x48xf32>
    %92 = vector.broadcast %8 : vector<1x48xf32> to vector<22x48xf32>
    %93 = arith.addf %91, %92 : vector<22x48xf32>
    %94 = vector.extract_strided_slice %89 {offsets = [0, 0], sizes = [22, 16], strides = [1, 1]} : vector<22x48xf32> to vector<22x16xf32>
    %95 = vector.extract_strided_slice %93 {offsets = [0, 0], sizes = [22, 16], strides = [1, 1]} : vector<22x48xf32> to vector<22x16xf32>
    %96 = arith.addf %94, %95 : vector<22x16xf32>
    %97 = arith.negf %96 : vector<22x16xf32>
    %98 = math.exp %97 : vector<22x16xf32>
    %cst_41 = arith.constant 1.000000e+00 : f32
    %99 = vector.broadcast %cst_41 : f32 to vector<22x16xf32>
    %100 = arith.addf %99, %98 : vector<22x16xf32>
    %101 = arith.divf %99, %100 : vector<22x16xf32>
    %102 = vector.extract_strided_slice %89 {offsets = [0, 16], sizes = [22, 16], strides = [1, 1]} : vector<22x48xf32> to vector<22x16xf32>
    %103 = vector.extract_strided_slice %93 {offsets = [0, 16], sizes = [22, 16], strides = [1, 1]} : vector<22x48xf32> to vector<22x16xf32>
    %104 = arith.addf %102, %103 : vector<22x16xf32>
    %105 = arith.negf %104 : vector<22x16xf32>
    %106 = math.exp %105 : vector<22x16xf32>
    %cst_42 = arith.constant 1.000000e+00 : f32
    %107 = vector.broadcast %cst_42 : f32 to vector<22x16xf32>
    %108 = arith.addf %107, %106 : vector<22x16xf32>
    %109 = arith.divf %107, %108 : vector<22x16xf32>
    %110 = vector.extract_strided_slice %89 {offsets = [0, 32], sizes = [22, 16], strides = [1, 1]} : vector<22x48xf32> to vector<22x16xf32>
    %111 = vector.extract_strided_slice %93 {offsets = [0, 32], sizes = [22, 16], strides = [1, 1]} : vector<22x48xf32> to vector<22x16xf32>
    %112 = arith.mulf %101, %111 : vector<22x16xf32>
    %113 = arith.addf %110, %112 : vector<22x16xf32>
    %114 = math.tanh %113 : vector<22x16xf32>
    %cst_43 = arith.constant 1.000000e+00 : f32
    %115 = vector.broadcast %cst_43 : f32 to vector<22x16xf32>
    %116 = arith.subf %115, %109 : vector<22x16xf32>
    %117 = arith.mulf %116, %114 : vector<22x16xf32>
    %118 = arith.mulf %109, %50 : vector<22x16xf32>
    %119 = arith.addf %117, %118 : vector<22x16xf32>
    %120 = arith.truncf %119 : vector<22x16xf32> to vector<22x16xbf16>
    %cst_44 = arith.constant dense<0.000000e+00> : vector<22x48xf32>
    %121 = tpu.matmul %120, %12, %cst_44 {dimension_numbers = #tpu.dot_dimension_numbers<[1], [0], [0], [1], [0, 0, 1, 1], [], []>} : vector<22x16xbf16>, vector<16x48xbf16>, vector<22x48xf32> -> vector<22x48xf32>
    %122 = vector.broadcast %14 : vector<1x48xf32> to vector<22x48xf32>
    %123 = arith.addf %121, %122 : vector<22x48xf32>
    %124 = arith.truncf %84 : vector<22x16xf32> to vector<22x16xbf16>
    %cst_45 = arith.constant dense<0.000000e+00> : vector<22x48xf32>
    %125 = tpu.matmul %124, %6, %cst_45 {dimension_numbers = #tpu.dot_dimension_numbers<[1], [0], [0], [1], [0, 0, 1, 1], [], []>} : vector<22x16xbf16>, vector<16x48xbf16>, vector<22x48xf32> -> vector<22x48xf32>
    %126 = vector.broadcast %10 : vector<1x48xf32> to vector<22x48xf32>
    %127 = arith.addf %125, %126 : vector<22x48xf32>
    %128 = vector.extract_strided_slice %123 {offsets = [0, 0], sizes = [22, 16], strides = [1, 1]} : vector<22x48xf32> to vector<22x16xf32>
    %129 = vector.extract_strided_slice %127 {offsets = [0, 0], sizes = [22, 16], strides = [1, 1]} : vector<22x48xf32> to vector<22x16xf32>
    %130 = arith.addf %128, %129 : vector<22x16xf32>
    %131 = arith.negf %130 : vector<22x16xf32>
    %132 = math.exp %131 : vector<22x16xf32>
    %cst_46 = arith.constant 1.000000e+00 : f32
    %133 = vector.broadcast %cst_46 : f32 to vector<22x16xf32>
    %134 = arith.addf %133, %132 : vector<22x16xf32>
    %135 = arith.divf %133, %134 : vector<22x16xf32>
    %136 = vector.extract_strided_slice %123 {offsets = [0, 16], sizes = [22, 16], strides = [1, 1]} : vector<22x48xf32> to vector<22x16xf32>
    %137 = vector.extract_strided_slice %127 {offsets = [0, 16], sizes = [22, 16], strides = [1, 1]} : vector<22x48xf32> to vector<22x16xf32>
    %138 = arith.addf %136, %137 : vector<22x16xf32>
    %139 = arith.negf %138 : vector<22x16xf32>
    %140 = math.exp %139 : vector<22x16xf32>
    %cst_47 = arith.constant 1.000000e+00 : f32
    %141 = vector.broadcast %cst_47 : f32 to vector<22x16xf32>
    %142 = arith.addf %141, %140 : vector<22x16xf32>
    %143 = arith.divf %141, %142 : vector<22x16xf32>
    %144 = vector.extract_strided_slice %123 {offsets = [0, 32], sizes = [22, 16], strides = [1, 1]} : vector<22x48xf32> to vector<22x16xf32>
    %145 = vector.extract_strided_slice %127 {offsets = [0, 32], sizes = [22, 16], strides = [1, 1]} : vector<22x48xf32> to vector<22x16xf32>
    %146 = arith.mulf %135, %145 : vector<22x16xf32>
    %147 = arith.addf %144, %146 : vector<22x16xf32>
    %148 = math.tanh %147 : vector<22x16xf32>
    %cst_48 = arith.constant 1.000000e+00 : f32
    %149 = vector.broadcast %cst_48 : f32 to vector<22x16xf32>
    %150 = arith.subf %149, %143 : vector<22x16xf32>
    %151 = arith.mulf %150, %148 : vector<22x16xf32>
    %152 = arith.mulf %143, %84 : vector<22x16xf32>
    %153 = arith.addf %151, %152 : vector<22x16xf32>
    %c1_49 = arith.constant 1 : index
    %c0_50 = arith.constant 0 : index
    %c0_51 = arith.constant 0 : index
    %154 = vector.load %arg7[%c1_49, %c0_50, %c0_51] : memref<4x22x16xf32, #tpu.memory_space<vmem>>, vector<1x22x16xf32>
    %155 = vector.shape_cast %154 : vector<1x22x16xf32> to vector<22x16xf32>
    %156 = vector.shape_cast %153 : vector<22x16xf32> to vector<1x22x16xf32>
    tpu.vector_store %arg7[%c1_49, %c0_50, %c0_51], %156 {strides = array<i32>} : memref<4x22x16xf32, #tpu.memory_space<vmem>>, vector<1x22x16xf32>,
    %c2 = arith.constant 2 : index
    %c0_52 = arith.constant 0 : index
    %c0_53 = arith.constant 0 : index
    %157 = vector.load %arg1[%c2, %c0_52, %c0_53] : memref<4x22x48xf32, #tpu.memory_space<vmem>>, vector<1x22x48xf32>
    %158 = vector.shape_cast %157 : vector<1x22x48xf32> to vector<22x48xf32>
    %159 = arith.truncf %119 : vector<22x16xf32> to vector<22x16xbf16>
    %cst_54 = arith.constant dense<0.000000e+00> : vector<22x48xf32>
    %160 = tpu.matmul %159, %4, %cst_54 {dimension_numbers = #tpu.dot_dimension_numbers<[1], [0], [0], [1], [0, 0, 1, 1], [], []>} : vector<22x16xbf16>, vector<16x48xbf16>, vector<22x48xf32> -> vector<22x48xf32>
    %161 = vector.broadcast %8 : vector<1x48xf32> to vector<22x48xf32>
    %162 = arith.addf %160, %161 : vector<22x48xf32>
    %163 = vector.extract_strided_slice %158 {offsets = [0, 0], sizes = [22, 16], strides = [1, 1]} : vector<22x48xf32> to vector<22x16xf32>
    %164 = vector.extract_strided_slice %162 {offsets = [0, 0], sizes = [22, 16], strides = [1, 1]} : vector<22x48xf32> to vector<22x16xf32>
    %165 = arith.addf %163, %164 : vector<22x16xf32>
    %166 = arith.negf %165 : vector<22x16xf32>
    %167 = math.exp %166 : vector<22x16xf32>
    %cst_55 = arith.constant 1.000000e+00 : f32
    %168 = vector.broadcast %cst_55 : f32 to vector<22x16xf32>
    %169 = arith.addf %168, %167 : vector<22x16xf32>
    %170 = arith.divf %168, %169 : vector<22x16xf32>
    %171 = vector.extract_strided_slice %158 {offsets = [0, 16], sizes = [22, 16], strides = [1, 1]} : vector<22x48xf32> to vector<22x16xf32>
    %172 = vector.extract_strided_slice %162 {offsets = [0, 16], sizes = [22, 16], strides = [1, 1]} : vector<22x48xf32> to vector<22x16xf32>
    %173 = arith.addf %171, %172 : vector<22x16xf32>
    %174 = arith.negf %173 : vector<22x16xf32>
    %175 = math.exp %174 : vector<22x16xf32>
    %cst_56 = arith.constant 1.000000e+00 : f32
    %176 = vector.broadcast %cst_56 : f32 to vector<22x16xf32>
    %177 = arith.addf %176, %175 : vector<22x16xf32>
    %178 = arith.divf %176, %177 : vector<22x16xf32>
    %179 = vector.extract_strided_slice %158 {offsets = [0, 32], sizes = [22, 16], strides = [1, 1]} : vector<22x48xf32> to vector<22x16xf32>
    %180 = vector.extract_strided_slice %162 {offsets = [0, 32], sizes = [22, 16], strides = [1, 1]} : vector<22x48xf32> to vector<22x16xf32>
    %181 = arith.mulf %170, %180 : vector<22x16xf32>
    %182 = arith.addf %179, %181 : vector<22x16xf32>
    %183 = math.tanh %182 : vector<22x16xf32>
    %cst_57 = arith.constant 1.000000e+00 : f32
    %184 = vector.broadcast %cst_57 : f32 to vector<22x16xf32>
    %185 = arith.subf %184, %178 : vector<22x16xf32>
    %186 = arith.mulf %185, %183 : vector<22x16xf32>
    %187 = arith.mulf %178, %119 : vector<22x16xf32>
    %188 = arith.addf %186, %187 : vector<22x16xf32>
    %189 = arith.truncf %188 : vector<22x16xf32> to vector<22x16xbf16>
    %cst_58 = arith.constant dense<0.000000e+00> : vector<22x48xf32>
    %190 = tpu.matmul %189, %12, %cst_58 {dimension_numbers = #tpu.dot_dimension_numbers<[1], [0], [0], [1], [0, 0, 1, 1], [], []>} : vector<22x16xbf16>, vector<16x48xbf16>, vector<22x48xf32> -> vector<22x48xf32>
    %191 = vector.broadcast %14 : vector<1x48xf32> to vector<22x48xf32>
    %192 = arith.addf %190, %191 : vector<22x48xf32>
    %193 = arith.truncf %153 : vector<22x16xf32> to vector<22x16xbf16>
    %cst_59 = arith.constant dense<0.000000e+00> : vector<22x48xf32>
    %194 = tpu.matmul %193, %6, %cst_59 {dimension_numbers = #tpu.dot_dimension_numbers<[1], [0], [0], [1], [0, 0, 1, 1], [], []>} : vector<22x16xbf16>, vector<16x48xbf16>, vector<22x48xf32> -> vector<22x48xf32>
    %195 = vector.broadcast %10 : vector<1x48xf32> to vector<22x48xf32>
    %196 = arith.addf %194, %195 : vector<22x48xf32>
    %197 = vector.extract_strided_slice %192 {offsets = [0, 0], sizes = [22, 16], strides = [1, 1]} : vector<22x48xf32> to vector<22x16xf32>
    %198 = vector.extract_strided_slice %196 {offsets = [0, 0], sizes = [22, 16], strides = [1, 1]} : vector<22x48xf32> to vector<22x16xf32>
    %199 = arith.addf %197, %198 : vector<22x16xf32>
    %200 = arith.negf %199 : vector<22x16xf32>
    %201 = math.exp %200 : vector<22x16xf32>
    %cst_60 = arith.constant 1.000000e+00 : f32
    %202 = vector.broadcast %cst_60 : f32 to vector<22x16xf32>
    %203 = arith.addf %202, %201 : vector<22x16xf32>
    %204 = arith.divf %202, %203 : vector<22x16xf32>
    %205 = vector.extract_strided_slice %192 {offsets = [0, 16], sizes = [22, 16], strides = [1, 1]} : vector<22x48xf32> to vector<22x16xf32>
    %206 = vector.extract_strided_slice %196 {offsets = [0, 16], sizes = [22, 16], strides = [1, 1]} : vector<22x48xf32> to vector<22x16xf32>
    %207 = arith.addf %205, %206 : vector<22x16xf32>
    %208 = arith.negf %207 : vector<22x16xf32>
    %209 = math.exp %208 : vector<22x16xf32>
    %cst_61 = arith.constant 1.000000e+00 : f32
    %210 = vector.broadcast %cst_61 : f32 to vector<22x16xf32>
    %211 = arith.addf %210, %209 : vector<22x16xf32>
    %212 = arith.divf %210, %211 : vector<22x16xf32>
    %213 = vector.extract_strided_slice %192 {offsets = [0, 32], sizes = [22, 16], strides = [1, 1]} : vector<22x48xf32> to vector<22x16xf32>
    %214 = vector.extract_strided_slice %196 {offsets = [0, 32], sizes = [22, 16], strides = [1, 1]} : vector<22x48xf32> to vector<22x16xf32>
    %215 = arith.mulf %204, %214 : vector<22x16xf32>
    %216 = arith.addf %213, %215 : vector<22x16xf32>
    %217 = math.tanh %216 : vector<22x16xf32>
    %cst_62 = arith.constant 1.000000e+00 : f32
    %218 = vector.broadcast %cst_62 : f32 to vector<22x16xf32>
    %219 = arith.subf %218, %212 : vector<22x16xf32>
    %220 = arith.mulf %219, %217 : vector<22x16xf32>
    %221 = arith.mulf %212, %153 : vector<22x16xf32>
    %222 = arith.addf %220, %221 : vector<22x16xf32>
    %c2_63 = arith.constant 2 : index
    %c0_64 = arith.constant 0 : index
    %c0_65 = arith.constant 0 : index
    %223 = vector.load %arg7[%c2_63, %c0_64, %c0_65] : memref<4x22x16xf32, #tpu.memory_space<vmem>>, vector<1x22x16xf32>
    %224 = vector.shape_cast %223 : vector<1x22x16xf32> to vector<22x16xf32>
    %225 = vector.shape_cast %222 : vector<22x16xf32> to vector<1x22x16xf32>
    tpu.vector_store %arg7[%c2_63, %c0_64, %c0_65], %225 {strides = array<i32>} : memref<4x22x16xf32, #tpu.memory_space<vmem>>, vector<1x22x16xf32>,
    %c3 = arith.constant 3 : index
    %c0_66 = arith.constant 0 : index
    %c0_67 = arith.constant 0 : index
    %226 = vector.load %arg1[%c3, %c0_66, %c0_67] : memref<4x22x48xf32, #tpu.memory_space<vmem>>, vector<1x22x48xf32>
    %227 = vector.shape_cast %226 : vector<1x22x48xf32> to vector<22x48xf32>
    %228 = arith.truncf %188 : vector<22x16xf32> to vector<22x16xbf16>
    %cst_68 = arith.constant dense<0.000000e+00> : vector<22x48xf32>
    %229 = tpu.matmul %228, %4, %cst_68 {dimension_numbers = #tpu.dot_dimension_numbers<[1], [0], [0], [1], [0, 0, 1, 1], [], []>} : vector<22x16xbf16>, vector<16x48xbf16>, vector<22x48xf32> -> vector<22x48xf32>
    %230 = vector.broadcast %8 : vector<1x48xf32> to vector<22x48xf32>
    %231 = arith.addf %229, %230 : vector<22x48xf32>
    %232 = vector.extract_strided_slice %227 {offsets = [0, 0], sizes = [22, 16], strides = [1, 1]} : vector<22x48xf32> to vector<22x16xf32>
    %233 = vector.extract_strided_slice %231 {offsets = [0, 0], sizes = [22, 16], strides = [1, 1]} : vector<22x48xf32> to vector<22x16xf32>
    %234 = arith.addf %232, %233 : vector<22x16xf32>
    %235 = arith.negf %234 : vector<22x16xf32>
    %236 = math.exp %235 : vector<22x16xf32>
    %cst_69 = arith.constant 1.000000e+00 : f32
    %237 = vector.broadcast %cst_69 : f32 to vector<22x16xf32>
    %238 = arith.addf %237, %236 : vector<22x16xf32>
    %239 = arith.divf %237, %238 : vector<22x16xf32>
    %240 = vector.extract_strided_slice %227 {offsets = [0, 16], sizes = [22, 16], strides = [1, 1]} : vector<22x48xf32> to vector<22x16xf32>
    %241 = vector.extract_strided_slice %231 {offsets = [0, 16], sizes = [22, 16], strides = [1, 1]} : vector<22x48xf32> to vector<22x16xf32>
    %242 = arith.addf %240, %241 : vector<22x16xf32>
    %243 = arith.negf %242 : vector<22x16xf32>
    %244 = math.exp %243 : vector<22x16xf32>
    %cst_70 = arith.constant 1.000000e+00 : f32
    %245 = vector.broadcast %cst_70 : f32 to vector<22x16xf32>
    %246 = arith.addf %245, %244 : vector<22x16xf32>
    %247 = arith.divf %245, %246 : vector<22x16xf32>
    %248 = vector.extract_strided_slice %227 {offsets = [0, 32], sizes = [22, 16], strides = [1, 1]} : vector<22x48xf32> to vector<22x16xf32>
    %249 = vector.extract_strided_slice %231 {offsets = [0, 32], sizes = [22, 16], strides = [1, 1]} : vector<22x48xf32> to vector<22x16xf32>
    %250 = arith.mulf %239, %249 : vector<22x16xf32>
    %251 = arith.addf %248, %250 : vector<22x16xf32>
    %252 = math.tanh %251 : vector<22x16xf32>
    %cst_71 = arith.constant 1.000000e+00 : f32
    %253 = vector.broadcast %cst_71 : f32 to vector<22x16xf32>
    %254 = arith.subf %253, %247 : vector<22x16xf32>
    %255 = arith.mulf %254, %252 : vector<22x16xf32>
    %256 = arith.mulf %247, %188 : vector<22x16xf32>
    %257 = arith.addf %255, %256 : vector<22x16xf32>
    %258 = arith.truncf %257 : vector<22x16xf32> to vector<22x16xbf16>
    %cst_72 = arith.constant dense<0.000000e+00> : vector<22x48xf32>
    %259 = tpu.matmul %258, %12, %cst_72 {dimension_numbers = #tpu.dot_dimension_numbers<[1], [0], [0], [1], [0, 0, 1, 1], [], []>} : vector<22x16xbf16>, vector<16x48xbf16>, vector<22x48xf32> -> vector<22x48xf32>
    %260 = vector.broadcast %14 : vector<1x48xf32> to vector<22x48xf32>
    %261 = arith.addf %259, %260 : vector<22x48xf32>
    %262 = arith.truncf %222 : vector<22x16xf32> to vector<22x16xbf16>
    %cst_73 = arith.constant dense<0.000000e+00> : vector<22x48xf32>
    %263 = tpu.matmul %262, %6, %cst_73 {dimension_numbers = #tpu.dot_dimension_numbers<[1], [0], [0], [1], [0, 0, 1, 1], [], []>} : vector<22x16xbf16>, vector<16x48xbf16>, vector<22x48xf32> -> vector<22x48xf32>
    %264 = vector.broadcast %10 : vector<1x48xf32> to vector<22x48xf32>
    %265 = arith.addf %263, %264 : vector<22x48xf32>
    %266 = vector.extract_strided_slice %261 {offsets = [0, 0], sizes = [22, 16], strides = [1, 1]} : vector<22x48xf32> to vector<22x16xf32>
    %267 = vector.extract_strided_slice %265 {offsets = [0, 0], sizes = [22, 16], strides = [1, 1]} : vector<22x48xf32> to vector<22x16xf32>
    %268 = arith.addf %266, %267 : vector<22x16xf32>
    %269 = arith.negf %268 : vector<22x16xf32>
    %270 = math.exp %269 : vector<22x16xf32>
    %cst_74 = arith.constant 1.000000e+00 : f32
    %271 = vector.broadcast %cst_74 : f32 to vector<22x16xf32>
    %272 = arith.addf %271, %270 : vector<22x16xf32>
    %273 = arith.divf %271, %272 : vector<22x16xf32>
    %274 = vector.extract_strided_slice %261 {offsets = [0, 16], sizes = [22, 16], strides = [1, 1]} : vector<22x48xf32> to vector<22x16xf32>
    %275 = vector.extract_strided_slice %265 {offsets = [0, 16], sizes = [22, 16], strides = [1, 1]} : vector<22x48xf32> to vector<22x16xf32>
    %276 = arith.addf %274, %275 : vector<22x16xf32>
    %277 = arith.negf %276 : vector<22x16xf32>
    %278 = math.exp %277 : vector<22x16xf32>
    %cst_75 = arith.constant 1.000000e+00 : f32
    %279 = vector.broadcast %cst_75 : f32 to vector<22x16xf32>
    %280 = arith.addf %279, %278 : vector<22x16xf32>
    %281 = arith.divf %279, %280 : vector<22x16xf32>
    %282 = vector.extract_strided_slice %261 {offsets = [0, 32], sizes = [22, 16], strides = [1, 1]} : vector<22x48xf32> to vector<22x16xf32>
    %283 = vector.extract_strided_slice %265 {offsets = [0, 32], sizes = [22, 16], strides = [1, 1]} : vector<22x48xf32> to vector<22x16xf32>
    %284 = arith.mulf %273, %283 : vector<22x16xf32>
    %285 = arith.addf %282, %284 : vector<22x16xf32>
    %286 = math.tanh %285 : vector<22x16xf32>
    %cst_76 = arith.constant 1.000000e+00 : f32
    %287 = vector.broadcast %cst_76 : f32 to vector<22x16xf32>
    %288 = arith.subf %287, %281 : vector<22x16xf32>
    %289 = arith.mulf %288, %286 : vector<22x16xf32>
    %290 = arith.mulf %281, %222 : vector<22x16xf32>
    %291 = arith.addf %289, %290 : vector<22x16xf32>
    %c3_77 = arith.constant 3 : index
    %c0_78 = arith.constant 0 : index
    %c0_79 = arith.constant 0 : index
    %292 = vector.load %arg7[%c3_77, %c0_78, %c0_79] : memref<4x22x16xf32, #tpu.memory_space<vmem>>, vector<1x22x16xf32>
    %293 = vector.shape_cast %292 : vector<1x22x16xf32> to vector<22x16xf32>
    %294 = vector.shape_cast %291 : vector<22x16xf32> to vector<1x22x16xf32>
    tpu.vector_store %arg7[%c3_77, %c0_78, %c0_79], %294 {strides = array<i32>} : memref<4x22x16xf32, #tpu.memory_space<vmem>>, vector<1x22x16xf32>,
    %c0_80 = arith.constant 0 : index
    %c0_81 = arith.constant 0 : index
    %c0_82 = arith.constant 0 : index
    %295 = vector.load %arg8[%c0_80, %c0_81, %c0_82] : memref<2x22x16xf32, #tpu.memory_space<vmem>>, vector<1x22x16xf32>
    %296 = vector.shape_cast %295 : vector<1x22x16xf32> to vector<22x16xf32>
    %297 = vector.shape_cast %257 : vector<22x16xf32> to vector<1x22x16xf32>
    tpu.vector_store %arg8[%c0_80, %c0_81, %c0_82], %297 {strides = array<i32>} : memref<2x22x16xf32, #tpu.memory_space<vmem>>, vector<1x22x16xf32>,
    %c1_83 = arith.constant 1 : index
    %c0_84 = arith.constant 0 : index
    %c0_85 = arith.constant 0 : index
    %298 = vector.load %arg8[%c1_83, %c0_84, %c0_85] : memref<2x22x16xf32, #tpu.memory_space<vmem>>, vector<1x22x16xf32>
    %299 = vector.shape_cast %298 : vector<1x22x16xf32> to vector<22x16xf32>
    %300 = vector.shape_cast %291 : vector<22x16xf32> to vector<1x22x16xf32>
    tpu.vector_store %arg8[%c1_83, %c0_84, %c0_85], %300 {strides = array<i32>} : memref<2x22x16xf32, #tpu.memory_space<vmem>>, vector<1x22x16xf32>,
    return
  }
  func.func @transform_0(%arg0: i32) -> (i32, i32, i32) {
    %c0_i32 = arith.constant 0 : i32
    %c0_i32_0 = arith.constant 0 : i32
    %c0_i32_1 = arith.constant 0 : i32
    return %arg0, %c0_i32, %c0_i32_0 : i32, i32, i32
  }
  func.func @transform_1(%arg0: i32) -> (i32, i32, i32) {
    %c0_i32 = arith.constant 0 : i32
    %c0_i32_0 = arith.constant 0 : i32
    %c0_i32_1 = arith.constant 0 : i32
    %c0_i32_2 = arith.constant 0 : i32
    return %c0_i32, %c0_i32_0, %c0_i32_1 : i32, i32, i32
  }
  func.func @transform_2(%arg0: i32) -> (i32, i32, i32) {
    %c0_i32 = arith.constant 0 : i32
    %c0_i32_0 = arith.constant 0 : i32
    %c0_i32_1 = arith.constant 0 : i32
    %c0_i32_2 = arith.constant 0 : i32
    return %c0_i32, %c0_i32_0, %c0_i32_1 : i32, i32, i32
  }
  func.func @transform_3(%arg0: i32) -> (i32, i32, i32) {
    %c0_i32 = arith.constant 0 : i32
    %c0_i32_0 = arith.constant 0 : i32
    %c0_i32_1 = arith.constant 0 : i32
    %c0_i32_2 = arith.constant 0 : i32
    return %c0_i32, %c0_i32_0, %c0_i32_1 : i32, i32, i32
  }
  func.func @transform_4(%arg0: i32) -> (i32, i32, i32) {
    %c0_i32 = arith.constant 0 : i32
    %c0_i32_0 = arith.constant 0 : i32
    %c0_i32_1 = arith.constant 0 : i32
    %c0_i32_2 = arith.constant 0 : i32
    return %c0_i32, %c0_i32_0, %c0_i32_1 : i32, i32, i32
  }
  func.func @transform_5(%arg0: i32) -> (i32, i32, i32) {
    %c0_i32 = arith.constant 0 : i32
    %c0_i32_0 = arith.constant 0 : i32
    %c0_i32_1 = arith.constant 0 : i32
    %c0_i32_2 = arith.constant 0 : i32
    return %c0_i32, %c0_i32_0, %c0_i32_1 : i32, i32, i32
  }
  func.func @transform_6(%arg0: i32) -> (i32, i32, i32) {
    %c0_i32 = arith.constant 0 : i32
    %c0_i32_0 = arith.constant 0 : i32
    %c0_i32_1 = arith.constant 0 : i32
    return %arg0, %c0_i32, %c0_i32_0 : i32, i32, i32
  }
}

module attributes {stable_mosaic.version = 11 : i64} {
  func.func @_edge_head_kernel(%arg0: i32, %arg1: memref<88x16xf32, #tpu.memory_space<vmem>>, %arg2: memref<88x1xf32, #tpu.memory_space<vmem>>, %arg3: memref<88x1xf32, #tpu.memory_space<vmem>>, %arg4: memref<16x8xbf16, #tpu.memory_space<vmem>>, %arg5: memref<1x8xf32, #tpu.memory_space<vmem>>, %arg6: memref<1x8xf32, #tpu.memory_space<vmem>>, %arg7: memref<1x1xf32, #tpu.memory_space<vmem>>, %arg8: memref<1x1xf32, #tpu.memory_space<vmem>>) attributes {dimension_semantics = [#tpu.dimension_semantics<arbitrary>], iteration_bounds = array<i64: 1>, scalar_prefetch = 0 : i64, scratch_operands = 0 : i64, tpu.core_type = #tpu.core_type<tc>, window_params = [{pipeline_mode = #tpu.pipeline_mode<synchronous>, transform_indices = @transform_0, window_bounds = array<i64: 88, 16>}, {pipeline_mode = #tpu.pipeline_mode<synchronous>, transform_indices = @transform_1, window_bounds = array<i64: 88, 1>}, {pipeline_mode = #tpu.pipeline_mode<synchronous>, transform_indices = @transform_2, window_bounds = array<i64: 88, 1>}, {pipeline_mode = #tpu.pipeline_mode<synchronous>, transform_indices = @transform_3, window_bounds = array<i64: 16, 8>}, {pipeline_mode = #tpu.pipeline_mode<synchronous>, transform_indices = @transform_4, window_bounds = array<i64: 1, 8>}, {pipeline_mode = #tpu.pipeline_mode<synchronous>, transform_indices = @transform_5, window_bounds = array<i64: 1, 8>}, {pipeline_mode = #tpu.pipeline_mode<synchronous>, transform_indices = @transform_6, window_bounds = array<i64: 1, 1>}, {pipeline_mode = #tpu.pipeline_mode<synchronous>, transform_indices = @transform_7, window_bounds = array<i64: 1, 1>}]} {
    %c0 = arith.constant 0 : index
    %c0_0 = arith.constant 0 : index
    %0 = vector.load %arg2[%c0, %c0_0] : memref<88x1xf32, #tpu.memory_space<vmem>>, vector<88x1xf32>
    %c0_1 = arith.constant 0 : index
    %c0_2 = arith.constant 0 : index
    %1 = vector.load %arg1[%c0_1, %c0_2] : memref<88x16xf32, #tpu.memory_space<vmem>>, vector<88x16xf32>
    %2 = vector.broadcast %0 : vector<88x1xf32> to vector<88x16xf32>
    %3 = arith.mulf %1, %2 : vector<88x16xf32>
    %4 = arith.truncf %3 : vector<88x16xf32> to vector<88x16xbf16>
    %c0_3 = arith.constant 0 : index
    %c0_4 = arith.constant 0 : index
    %5 = vector.load %arg4[%c0_3, %c0_4] : memref<16x8xbf16, #tpu.memory_space<vmem>>, vector<16x8xbf16>
    %cst = arith.constant dense<0.000000e+00> : vector<88x8xf32>
    %6 = tpu.matmul %4, %5, %cst {dimension_numbers = #tpu.dot_dimension_numbers<[1], [0], [0], [1], [0, 0, 1, 1], [], []>} : vector<88x16xbf16>, vector<16x8xbf16>, vector<88x8xf32> -> vector<88x8xf32>
    %c0_5 = arith.constant 0 : index
    %c0_6 = arith.constant 0 : index
    %7 = vector.load %arg5[%c0_5, %c0_6] : memref<1x8xf32, #tpu.memory_space<vmem>>, vector<1x8xf32>
    %8 = vector.broadcast %7 : vector<1x8xf32> to vector<88x8xf32>
    %9 = arith.addf %6, %8 : vector<88x8xf32>
    %cst_7 = arith.constant 0.000000e+00 : f32
    %10 = vector.broadcast %cst_7 : f32 to vector<88x8xf32>
    %11 = arith.maximumf %9, %10 : vector<88x8xf32>
    %c0_8 = arith.constant 0 : index
    %c0_9 = arith.constant 0 : index
    %12 = vector.load %arg6[%c0_8, %c0_9] : memref<1x8xf32, #tpu.memory_space<vmem>>, vector<1x8xf32>
    %13 = vector.broadcast %12 : vector<1x8xf32> to vector<88x8xf32>
    %14 = arith.mulf %11, %13 : vector<88x8xf32>
    %cst_10 = arith.constant dense<0.000000e+00> : vector<88xf32>
    %15 = vector.multi_reduction <add>, %14, %cst_10 [1] : vector<88x8xf32> to vector<88xf32>
    %16 = vector.shape_cast %15 : vector<88xf32> to vector<88x1xf32>
    %c0_11 = arith.constant 0 : index
    %c0_12 = arith.constant 0 : index
    %17 = vector.load %arg7[%c0_11, %c0_12] : memref<1x1xf32, #tpu.memory_space<vmem>>, vector<1x1xf32>
    %18 = vector.broadcast %17 : vector<1x1xf32> to vector<88x1xf32>
    %19 = arith.addf %16, %18 : vector<88x1xf32>
    %20 = arith.negf %19 : vector<88x1xf32>
    %21 = math.exp %20 : vector<88x1xf32>
    %cst_13 = arith.constant 1.000000e+00 : f32
    %22 = vector.broadcast %cst_13 : f32 to vector<88x1xf32>
    %23 = arith.addf %22, %21 : vector<88x1xf32>
    %24 = arith.divf %22, %23 : vector<88x1xf32>
    %25 = arith.mulf %24, %0 : vector<88x1xf32>
    %c0_14 = arith.constant 0 : index
    %c0_15 = arith.constant 0 : index
    %26 = vector.load %arg3[%c0_14, %c0_15] : memref<88x1xf32, #tpu.memory_space<vmem>>, vector<88x1xf32>
    %27 = arith.mulf %26, %0 : vector<88x1xf32>
    %28 = math.log %25 : vector<88x1xf32>
    %cst_16 = arith.constant -1.000000e+02 : f32
    %29 = vector.broadcast %cst_16 : f32 to vector<88x1xf32>
    %30 = arith.maximumf %28, %29 : vector<88x1xf32>
    %cst_17 = arith.constant 1.000000e+00 : f32
    %31 = vector.broadcast %cst_17 : f32 to vector<88x1xf32>
    %32 = arith.subf %31, %25 : vector<88x1xf32>
    %33 = math.log %32 : vector<88x1xf32>
    %cst_18 = arith.constant -1.000000e+02 : f32
    %34 = vector.broadcast %cst_18 : f32 to vector<88x1xf32>
    %35 = arith.maximumf %33, %34 : vector<88x1xf32>
    %36 = arith.mulf %27, %30 : vector<88x1xf32>
    %cst_19 = arith.constant 1.000000e+00 : f32
    %37 = vector.broadcast %cst_19 : f32 to vector<88x1xf32>
    %38 = arith.subf %37, %27 : vector<88x1xf32>
    %39 = arith.mulf %38, %35 : vector<88x1xf32>
    %40 = arith.addf %36, %39 : vector<88x1xf32>
    %cst_20 = arith.constant 0.000000e+00 : f32
    %41 = vector.broadcast %cst_20 : f32 to vector<88x1xf32>
    %42 = arith.subf %41, %40 : vector<88x1xf32>
    %43 = vector.shape_cast %42 : vector<88x1xf32> to vector<1x88x1xf32>
    %cst_21 = arith.constant dense<0.000000e+00> : vector<1xf32>
    %44 = vector.multi_reduction <add>, %43, %cst_21 [1, 2] : vector<1x88x1xf32> to vector<1xf32>
    %45 = vector.shape_cast %44 : vector<1xf32> to vector<1x1x1xf32>
    %46 = vector.extract %45[0, 0, 0] : f32 from vector<1x1x1xf32>
    %cst_22 = arith.constant 0.0113636367 : f32
    %47 = arith.mulf %46, %cst_22 : f32
    %cst_23 = arith.constant 1.000000e+00 : f32
    %48 = vector.broadcast %cst_23 : f32 to vector<1x1xf32>
    %49 = vector.broadcast %47 : f32 to vector<1x1xf32>
    %50 = arith.mulf %49, %48 : vector<1x1xf32>
    %c0_24 = arith.constant 0 : index
    %c0_25 = arith.constant 0 : index
    %51 = vector.load %arg8[%c0_24, %c0_25] : memref<1x1xf32, #tpu.memory_space<vmem>>, vector<1x1xf32>
    tpu.vector_store %arg8[%c0_24, %c0_25], %50 {strides = array<i32>} : memref<1x1xf32, #tpu.memory_space<vmem>>, vector<1x1xf32>,
    return
  }
  func.func @transform_0(%arg0: i32) -> (i32, i32) {
    %c0_i32 = arith.constant 0 : i32
    %c0_i32_0 = arith.constant 0 : i32
    %c0_i32_1 = arith.constant 0 : i32
    return %c0_i32, %c0_i32_0 : i32, i32
  }
  func.func @transform_1(%arg0: i32) -> (i32, i32) {
    %c0_i32 = arith.constant 0 : i32
    %c0_i32_0 = arith.constant 0 : i32
    %c0_i32_1 = arith.constant 0 : i32
    return %c0_i32, %c0_i32_0 : i32, i32
  }
  func.func @transform_2(%arg0: i32) -> (i32, i32) {
    %c0_i32 = arith.constant 0 : i32
    %c0_i32_0 = arith.constant 0 : i32
    %c0_i32_1 = arith.constant 0 : i32
    return %c0_i32, %c0_i32_0 : i32, i32
  }
  func.func @transform_3(%arg0: i32) -> (i32, i32) {
    %c0_i32 = arith.constant 0 : i32
    %c0_i32_0 = arith.constant 0 : i32
    %c0_i32_1 = arith.constant 0 : i32
    return %c0_i32, %c0_i32_0 : i32, i32
  }
  func.func @transform_4(%arg0: i32) -> (i32, i32) {
    %c0_i32 = arith.constant 0 : i32
    %c0_i32_0 = arith.constant 0 : i32
    %c0_i32_1 = arith.constant 0 : i32
    return %c0_i32, %c0_i32_0 : i32, i32
  }
  func.func @transform_5(%arg0: i32) -> (i32, i32) {
    %c0_i32 = arith.constant 0 : i32
    %c0_i32_0 = arith.constant 0 : i32
    %c0_i32_1 = arith.constant 0 : i32
    return %c0_i32, %c0_i32_0 : i32, i32
  }
  func.func @transform_6(%arg0: i32) -> (i32, i32) {
    %c0_i32 = arith.constant 0 : i32
    %c0_i32_0 = arith.constant 0 : i32
    %c0_i32_1 = arith.constant 0 : i32
    return %c0_i32, %c0_i32_0 : i32, i32
  }
  func.func @transform_7(%arg0: i32) -> (i32, i32) {
    %c0_i32 = arith.constant 0 : i32
    %c0_i32_0 = arith.constant 0 : i32
    %c0_i32_1 = arith.constant 0 : i32
    return %c0_i32, %c0_i32_0 : i32, i32
  }
}

</mosaic_0001>

<llo_original>
// kernel: _forward_core.8
$region0: #{_forward_core.8}
  #allocation0 [shape = 'u32[]', space=smem, size = 0x4, offset = 0x4, fixed_abs, tag = 'smem constant byte address 0x4 - core index']
  #allocation1 [shape = 'u32[72,128]{1,0:T(1,128)}', space=vmem, size = 0x9000, scoped, tag = 'internal scratch']
  %s0 = inlined_call_operand.vmem [shape: f32[32,32], index: 0, kind: input, shape index: {}]
  %s1 = inlined_call_operand.vmem [shape: f32[32,1], index: 1, kind: input, shape index: {}]
  %s2 = inlined_call_operand.vmem [shape: f32[32,3], index: 2, kind: input, shape index: {}]
  %s3 = inlined_call_operand.vmem [shape: bf16[32,16], index: 3, kind: input, shape index: {}]
  %s4 = inlined_call_operand.vmem [shape: f32[1,16], index: 4, kind: input, shape index: {}]
  %s5 = inlined_call_operand.vmem [shape: bf16[16,19], index: 5, kind: input, shape index: {}]
  %s6 = inlined_call_operand.vmem [shape: f32[1,19], index: 6, kind: input, shape index: {}]
  %s7 = inlined_call_operand.vmem [shape: f32[32,16], index: 7, kind: output, shape index: {0}]
  %s8 = inlined_call_operand.hbm [shape: f32[1,1], index: 8, kind: output, shape index: {1}]
  %9 = xla_tuple %s7, %s8
  %s10 = sld [smem:[#allocation0]]
  $region46: #{_forward_core.8} parent=0
    _
  %s12 = ssub.s32 1, %s10
  %s13 = scalar_select 0, %s12, %s10
  $region1: #{_forward_core.8} parent=0
    #allocation2 [shape = 'u8[512]{0}', space=vmem, size = 0x400, scoped, tag = 'output window, operand 1, single buffered']
    #allocation3 [shape = 's32[1]{0}', space=sflag, size = 0x4, scoped, tag = 'scoped memory for _forward_core.8']
    %14 = vsyncpa [#allocation3], 0
    // Predicated region
    $region2: #{_forward_core.8} parent=1 // pred_check
      _
    $region3: #{_forward_core.8} parent=1 // pred_check_branch
      %16 = sbr.rel (0) target = $region5
    $region4: #{_forward_core.8} parent=1 // pred_region
      _
    $region5: #{_forward_core.8} parent=1 // pred_fallthru
      _
    // Predicated region
    $region6: #{_forward_core.8} parent=1 // pred_check
      _
    $region7: #{_forward_core.8} parent=1 // pred_check_branch
      %18 = sbr.rel (0) target = $region9
    $region8: #{_forward_core.8} parent=1 // pred_region
      _
    $region9: #{_forward_core.8} parent=1 // pred_fallthru
      _
    // Predicated region
    $region10: #{_forward_core.8} parent=1 // pred_check
      _
    $region11: #{_forward_core.8} parent=1 // pred_check_branch
      %20 = sbr.rel (0) target = $region13
    $region12: #{_forward_core.8} parent=1 // pred_region
      _
    $region13: #{_forward_core.8} parent=1 // pred_fallthru
      _
    // Predicated region
    $region14: #{_forward_core.8} parent=1 // pred_check
      _
    $region15: #{_forward_core.8} parent=1 // pred_check_branch
      %22 = sbr.rel (0) target = $region17
    $region16: #{_forward_core.8} parent=1 // pred_region
      _
    $region17: #{_forward_core.8} parent=1 // pred_fallthru
      _
    // Predicated region
    $region18: #{_forward_core.8} parent=1 // pred_check
      _
    $region19: #{_forward_core.8} parent=1 // pred_check_branch
      %24 = sbr.rel (0) target = $region21
    $region20: #{_forward_core.8} parent=1 // pred_region
      _
    $region21: #{_forward_core.8} parent=1 // pred_fallthru
      _
    // Predicated region
    $region22: #{_forward_core.8} parent=1 // pred_check
      _
    $region23: #{_forward_core.8} parent=1 // pred_check_branch
      %26 = sbr.rel (0) target = $region25
    $region24: #{_forward_core.8} parent=1 // pred_region
      _
    $region25: #{_forward_core.8} parent=1 // pred_fallthru
      _
    // Predicated region
    $region26: #{_forward_core.8} parent=1 // pred_check
      _
    $region27: #{_forward_core.8} parent=1 // pred_check_branch
      %28 = sbr.rel (0) target = $region29
    $region28: #{_forward_core.8} parent=1 // pred_region
      _
    $region29: #{_forward_core.8} parent=1 // pred_fallthru
      _
    %v30 = vld [vmem:[%s0] sm:$0xff]
    %v31 = vld [vmem:[%s0 + $0x8] sm:$0xff]
    %v32 = vld [vmem:[%s0 + $0x10] sm:$0xff]
    %v33 = vld [vmem:[%s0 + $0x18] sm:$0xff]
    %v34 = vld [vmem:[%s1] sm:$0xff]
    %v35 = vld [vmem:[%s1 + $0x8] sm:$0xff]
    %v36 = vld [vmem:[%s1 + $0x10] sm:$0xff]
    %v37 = vld [vmem:[%s1 + $0x18] sm:$0xff]
    %39 = vset.pattern.permute.xlu0 0
    %40 = vperm.xlu0 %39, %v34
    %v41 = vpop.permute.xlu0 %40
    %44 = vset.pattern.permute.xlu0 0
    %45 = vperm.xlu0 %44, %v35
    %v46 = vpop.permute.xlu0 %45
    %49 = vset.pattern.permute.xlu0 0
    %50 = vperm.xlu0 %49, %v36
    %v51 = vpop.permute.xlu0 %50
    %54 = vset.pattern.permute.xlu0 0
    %55 = vperm.xlu0 %54, %v37
    %v56 = vpop.permute.xlu0 %55
    %v58 = vmul.f32 %v30, %v41
    %v59 = vmul.f32 %v31, %v46
    %v60 = vmul.f32 %v32, %v51
    %v61 = vmul.f32 %v33, %v56
    %v62 = vpack.c.bf16 %v59, %v58
    %v63 = vpack.c.bf16 %v61, %v60
    %v64 = vld [vmem:[%s3] sm:$0xf]
    %v65 = vld [vmem:[%s3 + $0x4] sm:$0xf]
    %v66 = vld [vmem:[%s3 + $0x8] sm:$0xf]
    %v67 = vld [vmem:[%s3 + $0xc] sm:$0xf]
    %v68 = vld [vmem:[%s4] sm:$0x1]
    %v70 = vperm.slane %v68, 0
    %v76 = vunpack.c.l.b16 %v64
    %v77 = vunpack.c.l.b16 %v65
    %v78 = vunpack.c.l.b16 %v66
    %v79 = vunpack.c.l.b16 %v67
    %v80 = vpack.c.b16 %v77, %v76
    %v81 = vpack.c.b16 %v79, %v78
    %vm84 = vcmask 261120
    %v86 = vsel %vm84, %v62, 0
    %v89 = vsel %vm84, %v63, 0
    %91 = vmatpush.bf16.msra.mxu0 0
    %92 = vmatpush.bf16.msra.mxu0 0
    %93 = vmatpush.bf16.msra.mxu0 0
    %94 = vmatpush.bf16.msra.mxu0 0
    %95 = vmatpush.bf16.msra.mxu0 0
    %96 = vmatpush.bf16.msra.mxu0 0
    %97 = vmatpush.bf16.msra.mxu0 %v81
    %98 = vmatpush.bf16.msra.mxu0 %v80
    %99 = vmatmul.bf16.gmra.mxu0 %v86
    %v100 = vpop.f32.mrf.mxu0
    %v101 = vadd.f32 %v70, %v100
    %v102 = vpop.f32.mrf.mxu0
    %v103 = vadd.f32 %v70, %v102
    %104 = vmatmul.bf16.gmra.mxu0 %v89
    %v105 = vpop.f32.mrf.mxu0
    %v106 = vadd.f32 %v70, %v105
    %v107 = vpop.f32.mrf.mxu0
    %v108 = vadd.f32 %v70, %v107
    %109 = vdwg.mxu0
    %v110 = vmax.f32 %v101, 0.0
    %v111 = vmax.f32 %v103, 0.0
    %v112 = vmax.f32 %v106, 0.0
    %v113 = vmax.f32 %v108, 0.0
    %v114 = vpack.c.bf16 %v111, %v110
    %v115 = vpack.c.bf16 %v113, %v112
    %v116 = vld [vmem:[%s5] sm:$0xf]
    %v117 = vld [vmem:[%s5 + $0x4] sm:$0xf]
    %v118 = vld [vmem:[%s6] sm:$0x1]
    %v120 = vperm.slane %v118, 0
    %v124 = vunpack.c.l.b16 %v116
    %v125 = vunpack.c.l.b16 %v117
    %v126 = vpack.c.b16 %v125, %v124
    %vm128 = vcmask 130048
    %v130 = vsel %vm128, %v114, 0
    %v133 = vsel %vm128, %v115, 0
    %135 = vmatpush.bf16.msra.mxu0 0
    %136 = vmatpush.bf16.msra.mxu0 0
    %137 = vmatpush.bf16.msra.mxu0 0
    %138 = vmatpush.bf16.msra.mxu0 0
    %139 = vmatpush.bf16.msra.mxu0 0
    %140 = vmatpush.bf16.msra.mxu0 0
    %141 = vmatpush.bf16.msra.mxu0 0
    %142 = vmatpush.bf16.msra.mxu0 %v126
    %143 = vmatmul.bf16.gmra.mxu0 %v130
    %v144 = vpop.f32.mrf.mxu0
    %v145 = vadd.f32 %v120, %v144
    %v146 = vpop.f32.mrf.mxu0
    %v147 = vadd.f32 %v120, %v146
    %148 = vmatmul.bf16.gmra.mxu0 %v133
    %v149 = vpop.f32.mrf.mxu0
    %v150 = vadd.f32 %v120, %v149
    %v151 = vpop.f32.mrf.mxu0
    %v152 = vadd.f32 %v120, %v151
    %153 = vdwg.mxu0
    %158 = vrot.lane.b32.xlu0 %v145, 125
    %v159 = vpop.permute.xlu0 %158
    %160 = vrot.lane.b32.xlu0 %v147, 125
    %v161 = vpop.permute.xlu0 %160
    %162 = vrot.lane.b32.xlu0 %v150, 125
    %v163 = vpop.permute.xlu0 %162
    %164 = vrot.lane.b32.xlu0 %v152, 125
    %v165 = vpop.permute.xlu0 %164
    %170 = vst.msk [vmem:[%s7] sm:$0xff] %vm128, %v159
    %171 = vst.msk [vmem:[%s7 + $0x8] sm:$0xff] %vm128, %v161
    %172 = vst.msk [vmem:[%s7 + $0x10] sm:$0xff] %vm128, %v163
    %173 = vst.msk [vmem:[%s7 + $0x18] sm:$0xff] %vm128, %v165
    %v174 = vld [vmem:[%s2] sm:$0xff]
    %v175 = vld [vmem:[%s2 + $0x8] sm:$0xff]
    %v176 = vld [vmem:[%s2 + $0x10] sm:$0xff]
    %v177 = vld [vmem:[%s2 + $0x18] sm:$0xff]
    %v178 = vsub.f32 %v174, %v145
    %v179 = vsub.f32 %v175, %v147
    %v180 = vsub.f32 %v176, %v150
    %v181 = vsub.f32 %v177, %v152
    %v182 = vmul.f32 %v178, %v178
    %v183 = vmul.f32 %v179, %v179
    %v184 = vmul.f32 %v180, %v180
    %v185 = vmul.f32 %v181, %v181
    %vm186 = vcmask 23552
    %v187 = vsel %vm186, %v182, 0.0
    %v188 = vsel %vm186, %v183, 0.0
    %v189 = vadd.f32 %v187, %v188
    %v190 = vsel %vm186, %v184, 0.0
    %v191 = vadd.f32 %v189, %v190
    %v192 = vsel %vm186, %v185, 0.0
    %v193 = vadd.f32 %v191, %v192
    %194 = vadd.xlane.f32.xlu0 %v193
    %v195 = vpop.xlane.xlu0 %194
    %v196 = vrot.slane %v195, 4
    %v197 = vadd.f32 %v195, %v196
    %v198 = vrot.slane %v197, 2
    %v199 = vadd.f32 %v197, %v198
    %v200 = vrot.slane %v199, 1
    %v201 = vadd.f32 %v199, %v200
    %s202 = vtos %v201
    %s203 = smul.f32 %s202, 0.25
    %v204 = vstv %s203
    %vm205 = vcmask 0
    %206 = vst.msk [vmem:[#allocation2] sm:$0x1] %vm205, %v204
    // Predicated region
    $region30: #{_forward_core.8} parent=1 // pred_check
      _
    $region31: #{_forward_core.8} parent=1 // pred_check_branch
      %208 = sbr.rel (0) target = $region33
    $region32: #{_forward_core.8} parent=1 // pred_region
      _
    $region33: #{_forward_core.8} parent=1 // pred_fallthru
      _
    // Predicated region
    $region34: #{_forward_core.8} parent=1 // pred_check
      _
    $region35: #{_forward_core.8} parent=1 // pred_check_branch
      %210 = sbr.rel (0) target = $region37
    $region36: #{_forward_core.8} parent=1 // pred_region
      %212 = vsyncadd [#allocation3], 0
      %s214 = sshll.u32 [#allocation2], 4
      %s215 = int_to_ptr.vmem [resolvable:$true] %s214
      %s216 = sshll.u32 %s8, 4
      %s217 = int_to_ptr.hbm [resolvable:$true] %s216
      %219 = dma.vmem_to_hbm [thread:$0]  %s215, 16, %s217, [#allocation3]
    $region37: #{_forward_core.8} parent=1 // pred_fallthru
      _
    // Predicated region
    $region38: #{_forward_core.8} parent=1 // pred_check
      _
    $region39: #{_forward_core.8} parent=1 // pred_check_branch
      %221 = sbr.rel (0) target = $region41
    $region40: #{_forward_core.8} parent=1 // pred_region
      _
    $region41: #{_forward_core.8} parent=1 // pred_fallthru
      _
    // Predicated region
    $region42: #{_forward_core.8} parent=1 // pred_check
      _
    $region43: #{_forward_core.8} parent=1 // pred_check_branch
      %223 = sbr.rel (0) target = $region45
    $region44: #{_forward_core.8} parent=1 // pred_region
      %225 = dma.done [#allocation3], 16
    $region45: #{_forward_core.8} parent=1 // pred_fallthru
      _
    %226 = vsyncpa [#allocation3], 1

// kernel: _forward_core.6
$region0: #{_forward_core.6}
  #allocation0 [shape = 'u32[]', space=smem, size = 0x4, offset = 0x4, fixed_abs, tag = 'smem constant byte address 0x4 - core index']
  #allocation1 [shape = 'u32[72,128]{1,0:T(1,128)}', space=vmem, size = 0x9000, scoped, tag = 'internal scratch']
  %s0 = inlined_call_operand.vmem [shape: f32[32,7], index: 0, kind: input, shape index: {}]
  %s1 = inlined_call_operand.vmem [shape: bf16[7,16], index: 1, kind: input, shape index: {}]
  %s2 = inlined_call_operand.vmem [shape: f32[1,16], index: 2, kind: input, shape index: {}]
  %s3 = inlined_call_operand.vmem [shape: bf16[16,96], index: 3, kind: input, shape index: {}]
  %s4 = inlined_call_operand.vmem [shape: f32[1,96], index: 4, kind: input, shape index: {}]
  %s5 = inlined_call_operand.vmem [shape: f32[32,96], index: 5, kind: output, shape index: {}]
  %s6 = sld [smem:[#allocation0]]
  $region30: #{_forward_core.6} parent=0
    _
  %s8 = ssub.s32 1, %s6
  %s9 = scalar_select 0, %s8, %s6
  // Predicated region
  $region2: #{_forward_core.6} parent=0 // pred_check
    _
  $region3: #{_forward_core.6} parent=0 // pred_check_branch
    %11 = sbr.rel (0) target = $region5
  $region4: #{_forward_core.6} parent=0 // pred_region
    _
  $region5: #{_forward_core.6} parent=0 // pred_fallthru
    _
  // Predicated region
  $region6: #{_forward_core.6} parent=0 // pred_check
    _
  $region7: #{_forward_core.6} parent=0 // pred_check_branch
    %13 = sbr.rel (0) target = $region9
  $region8: #{_forward_core.6} parent=0 // pred_region
    _
  $region9: #{_forward_core.6} parent=0 // pred_fallthru
    _
  // Predicated region
  $region10: #{_forward_core.6} parent=0 // pred_check
    _
  $region11: #{_forward_core.6} parent=0 // pred_check_branch
    %15 = sbr.rel (0) target = $region13
  $region12: #{_forward_core.6} parent=0 // pred_region
    _
  $region13: #{_forward_core.6} parent=0 // pred_fallthru
    _
  // Predicated region
  $region14: #{_forward_core.6} parent=0 // pred_check
    _
  $region15: #{_forward_core.6} parent=0 // pred_check_branch
    %17 = sbr.rel (0) target = $region17
  $region16: #{_forward_core.6} parent=0 // pred_region
    _
  $region17: #{_forward_core.6} parent=0 // pred_fallthru
    _
  // Predicated region
  $region18: #{_forward_core.6} parent=0 // pred_check
    _
  $region19: #{_forward_core.6} parent=0 // pred_check_branch
    %19 = sbr.rel (0) target = $region21
  $region20: #{_forward_core.6} parent=0 // pred_region
    _
  $region21: #{_forward_core.6} parent=0 // pred_fallthru
    _
  %v21 = vld [vmem:[%s0] sm:$0xff]
  %v22 = vld [vmem:[%s0 + $0x8] sm:$0xff]
  %v23 = vld [vmem:[%s0 + $0x10] sm:$0xff]
  %v24 = vld [vmem:[%s0 + $0x18] sm:$0xff]
  %v25 = vpack.c.bf16 %v22, %v21
  %v26 = vpack.c.bf16 %v24, %v23
  %v27 = vld [vmem:[%s1] sm:$0xf]
  %v28 = vld [vmem:[%s2] sm:$0x1]
  %v30 = vperm.slane %v28, 0
  %vm32 = vcmask 56320
  %v34 = vsel %vm32, %v25, 0
  %v37 = vsel %vm32, %v26, 0
  %vm39 = vcmask 1042432
  %vm40 = vcmask 1043456
  %v41 = vsel %vm39, 4294967295, 65535
  %v42 = vsel %vm40, %v41, 0
  %v44 = vand.u32 %v27, %v42
  %46 = vmatpush.bf16.msra.mxu0 0
  %47 = vmatpush.bf16.msra.mxu0 0
  %48 = vmatpush.bf16.msra.mxu0 0
  %49 = vmatpush.bf16.msra.mxu0 0
  %50 = vmatpush.bf16.msra.mxu0 0
  %51 = vmatpush.bf16.msra.mxu0 0
  %52 = vmatpush.bf16.msra.mxu0 0
  %53 = vmatpush.bf16.msra.mxu0 %v44
  %54 = vmatmul.bf16.gmra.mxu0 %v34
  %v55 = vpop.f32.mrf.mxu0
  %v56 = vadd.f32 %v30, %v55
  %v57 = vpop.f32.mrf.mxu0
  %v58 = vadd.f32 %v30, %v57
  %59 = vmatmul.bf16.gmra.mxu0 %v37
  %v60 = vpop.f32.mrf.mxu0
  %v61 = vadd.f32 %v30, %v60
  %v62 = vpop.f32.mrf.mxu0
  %v63 = vadd.f32 %v30, %v62
  %64 = vdwg.mxu0
  %v65 = vmax.f32 %v56, 0.0
  %v66 = vmax.f32 %v58, 0.0
  %v67 = vmax.f32 %v61, 0.0
  %v68 = vmax.f32 %v63, 0.0
  %v69 = vpack.c.bf16 %v66, %v65
  %v70 = vpack.c.bf16 %v68, %v67
  %v71 = vld [vmem:[%s3] sm:$0xf]
  %v72 = vld [vmem:[%s3 + $0x4] sm:$0xf]
  %v73 = vld [vmem:[%s4] sm:$0x1]
  %v75 = vperm.slane %v73, 0
  %v79 = vunpack.c.l.b16 %v71
  %v80 = vunpack.c.l.b16 %v72
  %v81 = vpack.c.b16 %v80, %v79
  %vm83 = vcmask 130048
  %v85 = vsel %vm83, %v69, 0
  %v88 = vsel %vm83, %v70, 0
  %90 = vmatpush.bf16.msra.mxu0 0
  %91 = vmatpush.bf16.msra.mxu0 0
  %92 = vmatpush.bf16.msra.mxu0 0
  %93 = vmatpush.bf16.msra.mxu0 0
  %94 = vmatpush.bf16.msra.mxu0 0
  %95 = vmatpush.bf16.msra.mxu0 0
  %96 = vmatpush.bf16.msra.mxu0 0
  %97 = vmatpush.bf16.msra.mxu0 %v81
  %98 = vmatmul.bf16.gmra.mxu0 %v85
  %v99 = vpop.f32.mrf.mxu0
  %v100 = vadd.f32 %v75, %v99
  %v101 = vpop.f32.mrf.mxu0
  %v102 = vadd.f32 %v75, %v101
  %103 = vmatmul.bf16.gmra.mxu0 %v88
  %v104 = vpop.f32.mrf.mxu0
  %v105 = vadd.f32 %v75, %v104
  %v106 = vpop.f32.mrf.mxu0
  %v107 = vadd.f32 %v75, %v106
  %108 = vdwg.mxu0
  %vm109 = vcmask 785408
  %110 = vst.msk [vmem:[%s5] sm:$0xff] %vm109, %v100
  %111 = vst.msk [vmem:[%s5 + $0x8] sm:$0xff] %vm109, %v102
  %112 = vst.msk [vmem:[%s5 + $0x10] sm:$0xff] %vm109, %v105
  %113 = vst.msk [vmem:[%s5 + $0x18] sm:$0xff] %vm109, %v107
  // Predicated region
  $region22: #{_forward_core.6} parent=0 // pred_check
    _
  $region23: #{_forward_core.6} parent=0 // pred_check_branch
    %115 = sbr.rel (0) target = $region25
  $region24: #{_forward_core.6} parent=0 // pred_region
    _
  $region25: #{_forward_core.6} parent=0 // pred_fallthru
    _
  // Predicated region
  $region26: #{_forward_core.6} parent=0 // pred_check
    _
  $region27: #{_forward_core.6} parent=0 // pred_check_branch
    %117 = sbr.rel (0) target = $region29
  $region28: #{_forward_core.6} parent=0 // pred_region
    _
  $region29: #{_forward_core.6} parent=0 // pred_fallthru
    _

// kernel: _forward_core.9
$region0: #{_forward_core.9}
  #allocation0 [shape = 'u32[]', space=smem, size = 0x4, offset = 0x4, fixed_abs, tag = 'smem constant byte address 0x4 - core index']
  #allocation1 [shape = 'u32[72,128]{1,0:T(1,128)}', space=vmem, size = 0x9000, scoped, tag = 'internal scratch']
  %s0 = inlined_call_operand.vmem [shape: f32[88,1], index: 0, kind: input, shape index: {}]
  %s1 = inlined_call_operand.vmem [shape: f32[1,8], index: 1, kind: input, shape index: {}]
  %s2 = inlined_call_operand.vmem [shape: f32[1,8], index: 2, kind: input, shape index: {}]
  %s3 = inlined_call_operand.vmem [shape: bf16[8,48], index: 3, kind: input, shape index: {}]
  %s4 = inlined_call_operand.vmem [shape: f32[1,48], index: 4, kind: input, shape index: {}]
  %s5 = inlined_call_operand.vmem [shape: f32[88,48], index: 5, kind: output, shape index: {}]
  %s6 = sld [smem:[#allocation0]]
  $region30: #{_forward_core.9} parent=0
    _
  %s8 = ssub.s32 1, %s6
  %s9 = scalar_select 0, %s8, %s6
  // Predicated region
  $region2: #{_forward_core.9} parent=0 // pred_check
    _
  $region3: #{_forward_core.9} parent=0 // pred_check_branch
    %11 = sbr.rel (0) target = $region5
  $region4: #{_forward_core.9} parent=0 // pred_region
    _
  $region5: #{_forward_core.9} parent=0 // pred_fallthru
    _
  // Predicated region
  $region6: #{_forward_core.9} parent=0 // pred_check
    _
  $region7: #{_forward_core.9} parent=0 // pred_check_branch
    %13 = sbr.rel (0) target = $region9
  $region8: #{_forward_core.9} parent=0 // pred_region
    _
  $region9: #{_forward_core.9} parent=0 // pred_fallthru
    _
  // Predicated region
  $region10: #{_forward_core.9} parent=0 // pred_check
    _
  $region11: #{_forward_core.9} parent=0 // pred_check_branch
    %15 = sbr.rel (0) target = $region13
  $region12: #{_forward_core.9} parent=0 // pred_region
    _
  $region13: #{_forward_core.9} parent=0 // pred_fallthru
    _
  // Predicated region
  $region14: #{_forward_core.9} parent=0 // pred_check
    _
  $region15: #{_forward_core.9} parent=0 // pred_check_branch
    %17 = sbr.rel (0) target = $region17
  $region16: #{_forward_core.9} parent=0 // pred_region
    _
  $region17: #{_forward_core.9} parent=0 // pred_fallthru
    _
  // Predicated region
  $region18: #{_forward_core.9} parent=0 // pred_check
    _
  $region19: #{_forward_core.9} parent=0 // pred_check_branch
    %19 = sbr.rel (0) target = $region21
  $region20: #{_forward_core.9} parent=0 // pred_region
    _
  $region21: #{_forward_core.9} parent=0 // pred_fallthru
    _
  %v21 = vld [vmem:[%s0] sm:$0xff]
  %v22 = vld [vmem:[%s0 + $0x8] sm:$0xff]
  %v23 = vld [vmem:[%s0 + $0x10] sm:$0xff]
  %v24 = vld [vmem:[%s0 + $0x18] sm:$0xff]
  %v25 = vld [vmem:[%s0 + $0x20] sm:$0xff]
  %v26 = vld [vmem:[%s0 + $0x28] sm:$0xff]
  %v27 = vld [vmem:[%s0 + $0x30] sm:$0xff]
  %v28 = vld [vmem:[%s0 + $0x38] sm:$0xff]
  %v29 = vld [vmem:[%s0 + $0x40] sm:$0xff]
  %v30 = vld [vmem:[%s0 + $0x48] sm:$0xff]
  %v31 = vld [vmem:[%s0 + $0x50] sm:$0xff]
  %v32 = vld [vmem:[%s1] sm:$0x1]
  %34 = vset.pattern.permute.xlu0 0
  %35 = vperm.xlu0 %34, %v21
  %v36 = vpop.permute.xlu0 %35
  %39 = vset.pattern.permute.xlu0 0
  %40 = vperm.xlu0 %39, %v22
  %v41 = vpop.permute.xlu0 %40
  %44 = vset.pattern.permute.xlu0 0
  %45 = vperm.xlu0 %44, %v23
  %v46 = vpop.permute.xlu0 %45
  %49 = vset.pattern.permute.xlu0 0
  %50 = vperm.xlu0 %49, %v24
  %v51 = vpop.permute.xlu0 %50
  %54 = vset.pattern.permute.xlu0 0
  %55 = vperm.xlu0 %54, %v25
  %v56 = vpop.permute.xlu0 %55
  %59 = vset.pattern.permute.xlu0 0
  %60 = vperm.xlu0 %59, %v26
  %v61 = vpop.permute.xlu0 %60
  %64 = vset.pattern.permute.xlu0 0
  %65 = vperm.xlu0 %64, %v27
  %v66 = vpop.permute.xlu0 %65
  %69 = vset.pattern.permute.xlu0 0
  %70 = vperm.xlu0 %69, %v28
  %v71 = vpop.permute.xlu0 %70
  %74 = vset.pattern.permute.xlu0 0
  %75 = vperm.xlu0 %74, %v29
  %v76 = vpop.permute.xlu0 %75
  %79 = vset.pattern.permute.xlu0 0
  %80 = vperm.xlu0 %79, %v30
  %v81 = vpop.permute.xlu0 %80
  %84 = vset.pattern.permute.xlu0 0
  %85 = vperm.xlu0 %84, %v31
  %v86 = vpop.permute.xlu0 %85
  %v89 = vperm.slane %v32, 0
  %v91 = vmul.f32 %v36, %v89
  %v92 = vmul.f32 %v41, %v89
  %v93 = vmul.f32 %v46, %v89
  %v94 = vmul.f32 %v51, %v89
  %v95 = vmul.f32 %v56, %v89
  %v96 = vmul.f32 %v61, %v89
  %v97 = vmul.f32 %v66, %v89
  %v98 = vmul.f32 %v71, %v89
  %v99 = vmul.f32 %v76, %v89
  %v100 = vmul.f32 %v81, %v89
  %v101 = vmul.f32 %v86, %v89
  %v102 = vld [vmem:[%s2] sm:$0x1]
  %v104 = vperm.slane %v102, 0
  %v106 = vadd.f32 %v91, %v104
  %v107 = vadd.f32 %v92, %v104
  %v108 = vadd.f32 %v93, %v104
  %v109 = vadd.f32 %v94, %v104
  %v110 = vadd.f32 %v95, %v104
  %v111 = vadd.f32 %v96, %v104
  %v112 = vadd.f32 %v97, %v104
  %v113 = vadd.f32 %v98, %v104
  %v114 = vadd.f32 %v99, %v104
  %v115 = vadd.f32 %v100, %v104
  %v116 = vadd.f32 %v101, %v104
  %v117 = vmax.f32 %v106, 0.0
  %v118 = vmax.f32 %v107, 0.0
  %v119 = vmax.f32 %v108, 0.0
  %v120 = vmax.f32 %v109, 0.0
  %v121 = vmax.f32 %v110, 0.0
  %v122 = vmax.f32 %v111, 0.0
  %v123 = vmax.f32 %v112, 0.0
  %v124 = vmax.f32 %v113, 0.0
  %v125 = vmax.f32 %v114, 0.0
  %v126 = vmax.f32 %v115, 0.0
  %v127 = vmax.f32 %v116, 0.0
  %v128 = vpack.c.bf16 %v118, %v117
  %v129 = vpack.c.bf16 %v120, %v119
  %v130 = vpack.c.bf16 %v122, %v121
  %v131 = vpack.c.bf16 %v124, %v123
  %v132 = vpack.c.bf16 %v126, %v125
  %v133 = vpack.c.bf16 %v127, %v127
  %v134 = vld [vmem:[%s3] sm:$0xf]
  %v135 = vld [vmem:[%s4] sm:$0x1]
  %v137 = vperm.slane %v135, 0
  %vm139 = vcmask 64512
  %v141 = vsel %vm139, %v128, 0
  %v144 = vsel %vm139, %v129, 0
  %v147 = vsel %vm139, %v130, 0
  %v150 = vsel %vm139, %v131, 0
  %v153 = vsel %vm139, %v132, 0
  %v156 = vsel %vm139, %v133, 0
  %vm158 = vcmask 1043456
  %v160 = vsel %vm158, %v134, 0
  %162 = vmatpush.bf16.msra.mxu0 0
  %163 = vmatpush.bf16.msra.mxu0 0
  %164 = vmatpush.bf16.msra.mxu0 0
  %165 = vmatpush.bf16.msra.mxu0 0
  %166 = vmatpush.bf16.msra.mxu0 0
  %167 = vmatpush.bf16.msra.mxu0 0
  %168 = vmatpush.bf16.msra.mxu0 0
  %169 = vmatpush.bf16.msra.mxu0 %v160
  %170 = vmatmul.bf16.gmra.mxu0 %v141
  %v171 = vpop.f32.mrf.mxu0
  %v172 = vadd.f32 %v137, %v171
  %v173 = vpop.f32.mrf.mxu0
  %v174 = vadd.f32 %v137, %v173
  %175 = vmatmul.bf16.gmra.mxu0 %v144
  %v176 = vpop.f32.mrf.mxu0
  %v177 = vadd.f32 %v137, %v176
  %v178 = vpop.f32.mrf.mxu0
  %v179 = vadd.f32 %v137, %v178
  %180 = vmatmul.bf16.gmra.mxu0 %v147
  %v181 = vpop.f32.mrf.mxu0
  %v182 = vadd.f32 %v137, %v181
  %v183 = vpop.f32.mrf.mxu0
  %v184 = vadd.f32 %v137, %v183
  %185 = vmatmul.bf16.gmra.mxu0 %v150
  %v186 = vpop.f32.mrf.mxu0
  %v187 = vadd.f32 %v137, %v186
  %v188 = vpop.f32.mrf.mxu0
  %v189 = vadd.f32 %v137, %v188
  %190 = vmatmul.bf16.gmra.mxu0 %v153
  %v191 = vpop.f32.mrf.mxu0
  %v192 = vadd.f32 %v137, %v191
  %v193 = vpop.f32.mrf.mxu0
  %v194 = vadd.f32 %v137, %v193
  %195 = vmatmul.bf16.gmra.mxu0 %v156
  %v196 = vpop.f32.mrf.mxu0
  %v197 = vadd.f32 %v137, %v196
  %v198 = vpop.f32.mrf.mxu0
  %199 = vdwg.mxu0
  %vm200 = vcmask 392192
  %201 = vst.msk [vmem:[%s5] sm:$0xff] %vm200, %v172
  %202 = vst.msk [vmem:[%s5 + $0x8] sm:$0xff] %vm200, %v174
  %203 = vst.msk [vmem:[%s5 + $0x10] sm:$0xff] %vm200, %v177
  %204 = vst.msk [vmem:[%s5 + $0x18] sm:$0xff] %vm200, %v179
  %205 = vst.msk [vmem:[%s5 + $0x20] sm:$0xff] %vm200, %v182
  %206 = vst.msk [vmem:[%s5 + $0x28] sm:$0xff] %vm200, %v184
  %207 = vst.msk [vmem:[%s5 + $0x30] sm:$0xff] %vm200, %v187
  %208 = vst.msk [vmem:[%s5 + $0x38] sm:$0xff] %vm200, %v189
  %209 = vst.msk [vmem:[%s5 + $0x40] sm:$0xff] %vm200, %v192
  %210 = vst.msk [vmem:[%s5 + $0x48] sm:$0xff] %vm200, %v194
  %211 = vst.msk [vmem:[%s5 + $0x50] sm:$0xff] %vm200, %v197
  // Predicated region
  $region22: #{_forward_core.9} parent=0 // pred_check
    _
  $region23: #{_forward_core.9} parent=0 // pred_check_branch
    %213 = sbr.rel (0) target = $region25
  $region24: #{_forward_core.9} parent=0 // pred_region
    _
  $region25: #{_forward_core.9} parent=0 // pred_fallthru
    _
  // Predicated region
  $region26: #{_forward_core.9} parent=0 // pred_check
    _
  $region27: #{_forward_core.9} parent=0 // pred_check_branch
    %215 = sbr.rel (0) target = $region29
  $region28: #{_forward_core.9} parent=0 // pred_region
    _
  $region29: #{_forward_core.9} parent=0 // pred_fallthru
    _

// kernel: _forward_core.7
$region0: #{_forward_core.7}
  #allocation0 [shape = 'u32[]', space=smem, size = 0x4, offset = 0x4, fixed_abs, tag = 'smem constant byte address 0x4 - core index']
  #allocation1 [shape = 'u32[72,128]{1,0:T(1,128)}', space=vmem, size = 0x9000, scoped, tag = 'internal scratch']
  #allocation2 [shape = 'f32[2,4,32]{2,1,0:T(4,128)}', space=vmem, size = 0x1000, scoped, tag = 'scratch operand']
  %s0 = inlined_call_operand.vmem [shape: f32[8,4,96], index: 0, kind: input, shape index: {}]
  %s1 = inlined_call_operand.vmem [shape: f32[2,4,32], index: 1, kind: input, shape index: {}]
  %s2 = inlined_call_operand.vmem [shape: bf16[2,32,96], index: 2, kind: input, shape index: {}]
  %s3 = inlined_call_operand.vmem [shape: f32[2,1,96], index: 3, kind: input, shape index: {}]
  %s4 = inlined_call_operand.vmem [shape: bf16[1,32,96], index: 4, kind: input, shape index: {}]
  %s5 = inlined_call_operand.vmem [shape: f32[1,1,96], index: 5, kind: input, shape index: {}]
  %s6 = inlined_call_operand.vmem [shape: f32[8,4,32], index: 6, kind: output, shape index: {}]
  %s7 = sld [smem:[#allocation0]]
  $region38: #{_forward_core.7} parent=0
    _
  %s9 = ssub.s32 1, %s7
  %s10 = scalar_select 0, %s9, %s7
  // Predicated region
  $region2: #{_forward_core.7} parent=0 // pred_check
    _
  $region3: #{_forward_core.7} parent=0 // pred_check_branch
    %12 = sbr.rel (0) target = $region5
  $region4: #{_forward_core.7} parent=0 // pred_region
    _
  $region5: #{_forward_core.7} parent=0 // pred_fallthru
    _
  // Predicated region
  $region6: #{_forward_core.7} parent=0 // pred_check
    _
  $region7: #{_forward_core.7} parent=0 // pred_check_branch
    %14 = sbr.rel (0) target = $region9
  $region8: #{_forward_core.7} parent=0 // pred_region
    _
  $region9: #{_forward_core.7} parent=0 // pred_fallthru
    _
  // Predicated region
  $region10: #{_forward_core.7} parent=0 // pred_check
    _
  $region11: #{_forward_core.7} parent=0 // pred_check_branch
    %16 = sbr.rel (0) target = $region13
  $region12: #{_forward_core.7} parent=0 // pred_region
    _
  $region13: #{_forward_core.7} parent=0 // pred_fallthru
    _
  // Predicated region
  $region14: #{_forward_core.7} parent=0 // pred_check
    _
  $region15: #{_forward_core.7} parent=0 // pred_check_branch
    %18 = sbr.rel (0) target = $region17
  $region16: #{_forward_core.7} parent=0 // pred_region
    _
  $region17: #{_forward_core.7} parent=0 // pred_fallthru
    _
  // Predicated region
  $region18: #{_forward_core.7} parent=0 // pred_check
    _
  $region19: #{_forward_core.7} parent=0 // pred_check_branch
    %20 = sbr.rel (0) target = $region21
  $region20: #{_forward_core.7} parent=0 // pred_region
    _
  $region21: #{_forward_core.7} parent=0 // pred_fallthru
    _
  // Predicated region
  $region22: #{_forward_core.7} parent=0 // pred_check
    _
  $region23: #{_forward_core.7} parent=0 // pred_check_branch
    %22 = sbr.rel (0) target = $region25
  $region24: #{_forward_core.7} parent=0 // pred_region
    _
  $region25: #{_forward_core.7} parent=0 // pred_fallthru
    _
  %p24 = scmp.eq.s32.totalorder 0, 0
  // Predicated region
  $region26: #{_forward_core.7} parent=0 // pred_check
    %p25 = pneg %p24
  $region27: #{_forward_core.7} parent=0 // pred_check_branch
    %27 = sbr.rel (%p25) target = $region29
  $region28: #{_forward_core.7} parent=0 // pred_region
    %v28 = vld [vmem:[%s1] sm:$0xf]
    %v29 = vld [vmem:[%s1 + $0x4] sm:$0xf]
    %vm30 = vcmask 257024
    %31 = vst.msk [vmem:[#allocation2] sm:$0xf] %vm30, %v28
    %32 = vst.msk [vmem:[#allocation2 + $0x4] sm:$0xf] %vm30, %v29
  $region29: #{_forward_core.7} parent=0 // pred_fallthru
    _
  %v33 = vld [vmem:[%s2] sm:$0xf]
  %v34 = vld [vmem:[%s2 + $0x4] sm:$0xf]
  %v35 = vld [vmem:[%s2 + $0x8] sm:$0xf]
  %v36 = vld [vmem:[%s2 + $0xc] sm:$0xf]
  %s37 = scalar_lea.vmem %s2, 16
  %v38 = vld [vmem:[%s37] sm:$0xf]
  %v39 = vld [vmem:[%s37 + $0x4] sm:$0xf]
  %v40 = vld [vmem:[%s37 + $0x8] sm:$0xf]
  %v41 = vld [vmem:[%s37 + $0xc] sm:$0xf]
  %v42 = vld [vmem:[%s3] sm:$0x1]
  %s43 = scalar_lea.vmem %s3, 1
  %v44 = vld [vmem:[%s43] sm:$0x1]
  %v45 = vld [vmem:[%s4] sm:$0xf]
  %v46 = vld [vmem:[%s4 + $0x4] sm:$0xf]
  %v47 = vld [vmem:[%s4 + $0x8] sm:$0xf]
  %v48 = vld [vmem:[%s4 + $0xc] sm:$0xf]
  %v49 = vld [vmem:[%s5] sm:$0x1]
  %v50 = vld [vmem:[#allocation2] sm:$0xf]
  %s51 = scalar_lea.vmem [#allocation2], 4
  %v52 = vld [vmem:[%s51] sm:$0xf]
  %v53 = vld [vmem:[%s0] sm:$0xf]
  %v54 = vpack.c.bf16 %v50, %v50
  %v56 = vperm.slane %v42, 0
  %v62 = vunpack.c.l.b16 %v33
  %v63 = vunpack.c.l.b16 %v34
  %v64 = vunpack.c.l.b16 %v35
  %v65 = vunpack.c.l.b16 %v36
  %v66 = vpack.c.b16 %v63, %v62
  %v67 = vpack.c.b16 %v65, %v64
  %vm70 = vcmask 261120
  %v72 = vsel %vm70, %v54, 0
  %74 = vmatpush.bf16.msra.mxu0 0
  %75 = vmatpush.bf16.msra.mxu0 0
  %76 = vmatpush.bf16.msra.mxu0 0
  %77 = vmatpush.bf16.msra.mxu0 0
  %78 = vmatpush.bf16.msra.mxu0 0
  %79 = vmatpush.bf16.msra.mxu0 0
  %80 = vmatpush.bf16.msra.mxu0 %v67
  %81 = vmatpush.bf16.msra.mxu0 %v66
  %82 = vmatmul.bf16.gmra.mxu0 %v72
  %v83 = vpop.f32.mrf.mxu0
  %v84 = vadd.f32 %v56, %v83
  %v85 = vpop.f32.mrf.mxu0
  %86 = vdwg.mxu0
  %v87 = vadd.f32 %v53, %v84
  %v88 = vxor.u32 %v87, 2147483648
  %v89 = vmul.f32 %v88, 1.442695
  %v90 = vpow.pop %v89
  %v91 = vadd.f32 %v90, 1.0
  %v92 = vrcp.pop %v91
  %v93 = vmul.f32 %v91, %v92
  %v94 = vsub.f32 1.0, %v93
  %v95 = vmul.f32 %v92, %v94
  %v96 = vadd.f32 %v92, %v95
  %vm97 = vweird.f32 %v91
  %vm98 = vweird.f32 %v92
  %vm99 = vmor %vm97, %vm98
  %v100 = vsel %vm99, %v92, %v96
  %v101 = vand.u32 2147483647, %v91
  %vm102 = vcmp.eq.f32.partialorder %v101, 8.507059e+37
  %v103 = vand.u32 %v91, 2147483648
  %v104 = vor.u32 1.1754944e-38, %v103
  %v105 = vsel %vm102, %v104, %v100
  %v106 = vmul.f32 1.0, %v105
  %108 = vrot.lane.b32.xlu0 %v84, 64
  %v109 = vpop.permute.xlu0 %108
  %v111 = vmul.f32 %v106, %v109
  %113 = vrot.lane.b32.xlu0 %v111, 64
  %v114 = vpop.permute.xlu0 %113
  %v116 = vadd.f32 %v53, %v114
  %v117 = vtanh.pop %v116
  %v118 = vsub.f32 1.0, %v106
  %120 = vrot.lane.b32.xlu0 %v117, 96
  %v121 = vpop.permute.xlu0 %120
  %v123 = vmul.f32 %v118, %v121
  %125 = vrot.lane.b32.xlu0 %v50, 32
  %v126 = vpop.permute.xlu0 %125
  %v128 = vmul.f32 %v106, %v126
  %v129 = vadd.f32 %v123, %v128
  %v130 = vpack.c.bf16 %v129, %v129
  %v132 = vperm.slane %v49, 0
  %135 = vrot.lane.b32.xlu0 %v130, 96
  %v136 = vpop.permute.xlu0 %135
  %v141 = vunpack.c.l.b16 %v45
  %v142 = vunpack.c.l.b16 %v46
  %v143 = vunpack.c.l.b16 %v47
  %v144 = vunpack.c.l.b16 %v48
  %v145 = vpack.c.b16 %v142, %v141
  %v146 = vpack.c.b16 %v144, %v143
  %v150 = vsel %vm70, %v136, 0
  %152 = vmatpush.bf16.msra.mxu0 0
  %153 = vmatpush.bf16.msra.mxu0 0
  %154 = vmatpush.bf16.msra.mxu0 0
  %155 = vmatpush.bf16.msra.mxu0 0
  %156 = vmatpush.bf16.msra.mxu0 0
  %157 = vmatpush.bf16.msra.mxu0 0
  %158 = vmatpush.bf16.msra.mxu0 %v146
  %159 = vmatpush.bf16.msra.mxu0 %v145
  %160 = vmatmul.bf16.gmra.mxu0 %v150
  %v161 = vpop.f32.mrf.mxu0
  %v162 = vadd.f32 %v132, %v161
  %v163 = vpop.f32.mrf.mxu0
  %164 = vdwg.mxu0
  %v165 = vpack.c.bf16 %v52, %v52
  %v167 = vperm.slane %v44, 0
  %v173 = vunpack.c.l.b16 %v38
  %v174 = vunpack.c.l.b16 %v39
  %v175 = vunpack.c.l.b16 %v40
  %v176 = vunpack.c.l.b16 %v41
  %v177 = vpack.c.b16 %v174, %v173
  %v178 = vpack.c.b16 %v176, %v175
  %v182 = vsel %vm70, %v165, 0
  %184 = vmatpush.bf16.msra.mxu0 0
  %185 = vmatpush.bf16.msra.mxu0 0
  %186 = vmatpush.bf16.msra.mxu0 0
  %187 = vmatpush.bf16.msra.mxu0 0
  %188 = vmatpush.bf16.msra.mxu0 0
  %189 = vmatpush.bf16.msra.mxu0 0
  %190 = vmatpush.bf16.msra.mxu0 %v178
  %191 = vmatpush.bf16.msra.mxu0 %v177
  %192 = vmatmul.bf16.gmra.mxu0 %v182
  %v193 = vpop.f32.mrf.mxu0
  %v194 = vadd.f32 %v167, %v193
  %v195 = vpop.f32.mrf.mxu0
  %196 = vdwg.mxu0
  %v197 = vadd.f32 %v162, %v194
  %v198 = vxor.u32 %v197, 2147483648
  %v199 = vmul.f32 %v198, 1.442695
  %v200 = vpow.pop %v199
  %v201 = vadd.f32 %v200, 1.0
  %v202 = vrcp.pop %v201
  %v203 = vmul.f32 %v201, %v202
  %v204 = vsub.f32 1.0, %v203
  %v205 = vmul.f32 %v202, %v204
  %v206 = vadd.f32 %v202, %v205
  %vm207 = vweird.f32 %v201
  %vm208 = vweird.f32 %v202
  %vm209 = vmor %vm207, %vm208
  %v210 = vsel %vm209, %v202, %v206
  %v211 = vand.u32 2147483647, %v201
  %vm212 = vcmp.eq.f32.partialorder %v211, 8.507059e+37
  %v213 = vand.u32 %v201, 2147483648
  %v214 = vor.u32 1.1754944e-38, %v213
  %v215 = vsel %vm212, %v214, %v210
  %v216 = vmul.f32 1.0, %v215
  %218 = vrot.lane.b32.xlu0 %v194, 64
  %v219 = vpop.permute.xlu0 %218
  %v221 = vmul.f32 %v216, %v219
  %223 = vrot.lane.b32.xlu0 %v221, 64
  %v224 = vpop.permute.xlu0 %223
  %v226 = vadd.f32 %v162, %v224
  %v227 = vtanh.pop %v226
  %v228 = vsub.f32 1.0, %v216
  %230 = vrot.lane.b32.xlu0 %v227, 96
  %v231 = vpop.permute.xlu0 %230
  %v233 = vmul.f32 %v228, %v231
  %235 = vrot.lane.b32.xlu0 %v52, 32
  %v236 = vpop.permute.xlu0 %235
  %v238 = vmul.f32 %v216, %v236
  %v239 = vadd.f32 %v233, %v238
  %241 = vrot.lane.b32.xlu0 %v239, 96
  %v242 = vpop.permute.xlu0 %241
  %vm244 = vcmask 257024
  %245 = vst.msk [vmem:[%s6] sm:$0xf] %vm244, %v242
  %s246 = scalar_lea.vmem %s0, 4
  %v247 = vld [vmem:[%s246] sm:$0xf]
  %248 = vmatpush.bf16.msra.mxu0 0
  %249 = vmatpush.bf16.msra.mxu0 0
  %250 = vmatpush.bf16.msra.mxu0 0
  %251 = vmatpush.bf16.msra.mxu0 0
  %252 = vmatpush.bf16.msra.mxu0 0
  %253 = vmatpush.bf16.msra.mxu0 0
  %254 = vmatpush.bf16.msra.mxu0 %v67
  %255 = vmatpush.bf16.msra.mxu0 %v66
  %256 = vmatmul.bf16.gmra.mxu0 %v150
  %v257 = vpop.f32.mrf.mxu0
  %v258 = vadd.f32 %v56, %v257
  %v259 = vpop.f32.mrf.mxu0
  %260 = vdwg.mxu0
  %v261 = vadd.f32 %v247, %v258
  %v262 = vxor.u32 %v261, 2147483648
  %v263 = vmul.f32 %v262, 1.442695
  %v264 = vpow.pop %v263
  %v265 = vadd.f32 %v264, 1.0
  %v266 = vrcp.pop %v265
  %v267 = vmul.f32 %v265, %v266
  %v268 = vsub.f32 1.0, %v267
  %v269 = vmul.f32 %v266, %v268
  %v270 = vadd.f32 %v266, %v269
  %vm271 = vweird.f32 %v265
  %vm272 = vweird.f32 %v266
  %vm273 = vmor %vm271, %vm272
  %v274 = vsel %vm273, %v266, %v270
  %v275 = vand.u32 2147483647, %v265
  %vm276 = vcmp.eq.f32.partialorder %v275, 8.507059e+37
  %v277 = vand.u32 %v265, 2147483648
  %v278 = vor.u32 1.1754944e-38, %v277
  %v279 = vsel %vm276, %v278, %v274
  %v280 = vmul.f32 1.0, %v279
  %282 = vrot.lane.b32.xlu0 %v258, 64
  %v283 = vpop.permute.xlu0 %282
  %v285 = vmul.f32 %v280, %v283
  %287 = vrot.lane.b32.xlu0 %v285, 64
  %v288 = vpop.permute.xlu0 %287
  %v290 = vadd.f32 %v247, %v288
  %v291 = vtanh.pop %v290
  %v292 = vsub.f32 1.0, %v280
  %294 = vrot.lane.b32.xlu0 %v291, 96
  %v295 = vpop.permute.xlu0 %294
  %v297 = vmul.f32 %v292, %v295
  %v298 = vmul.f32 %v280, %v129
  %v299 = vadd.f32 %v297, %v298
  %v300 = vpack.c.bf16 %v299, %v299
  %302 = vrot.lane.b32.xlu0 %v300, 96
  %v303 = vpop.permute.xlu0 %302
  %v305 = vsel %vm70, %v303, 0
  %307 = vmatpush.bf16.msra.mxu0 0
  %308 = vmatpush.bf16.msra.mxu0 0
  %309 = vmatpush.bf16.msra.mxu0 0
  %310 = vmatpush.bf16.msra.mxu0 0
  %311 = vmatpush.bf16.msra.mxu0 0
  %312 = vmatpush.bf16.msra.mxu0 0
  %313 = vmatpush.bf16.msra.mxu0 %v146
  %314 = vmatpush.bf16.msra.mxu0 %v145
  %315 = vmatmul.bf16.gmra.mxu0 %v305
  %v316 = vpop.f32.mrf.mxu0
  %v317 = vadd.f32 %v132, %v316
  %v318 = vpop.f32.mrf.mxu0
  %319 = vdwg.mxu0
  %v320 = vpack.c.bf16 %v239, %v239
  %322 = vrot.lane.b32.xlu0 %v320, 96
  %v323 = vpop.permute.xlu0 %322
  %v325 = vsel %vm70, %v323, 0
  %327 = vmatpush.bf16.msra.mxu0 0
  %328 = vmatpush.bf16.msra.mxu0 0
  %329 = vmatpush.bf16.msra.mxu0 0
  %330 = vmatpush.bf16.msra.mxu0 0
  %331 = vmatpush.bf16.msra.mxu0 0
  %332 = vmatpush.bf16.msra.mxu0 0
  %333 = vmatpush.bf16.msra.mxu0 %v178
  %334 = vmatpush.bf16.msra.mxu0 %v177
  %335 = vmatmul.bf16.gmra.mxu0 %v325
  %v336 = vpop.f32.mrf.mxu0
  %v337 = vadd.f32 %v167, %v336
  %v338 = vpop.f32.mrf.mxu0
  %339 = vdwg.mxu0
  %v340 = vadd.f32 %v317, %v337
  %v341 = vxor.u32 %v340, 2147483648
  %v342 = vmul.f32 %v341, 1.442695
  %v343 = vpow.pop %v342
  %v344 = vadd.f32 %v343, 1.0
  %v345 = vrcp.pop %v344
  %v346 = vmul.f32 %v344, %v345
  %v347 = vsub.f32 1.0, %v346
  %v348 = vmul.f32 %v345, %v347
  %v349 = vadd.f32 %v345, %v348
  %vm350 = vweird.f32 %v344
  %vm351 = vweird.f32 %v345
  %vm352 = vmor %vm350, %vm351
  %v353 = vsel %vm352, %v345, %v349
  %v354 = vand.u32 2147483647, %v344
  %vm355 = vcmp.eq.f32.partialorder %v354, 8.507059e+37
  %v356 = vand.u32 %v344, 2147483648
  %v357 = vor.u32 1.1754944e-38, %v356
  %v358 = vsel %vm355, %v357, %v353
  %v359 = vmul.f32 1.0, %v358
  %361 = vrot.lane.b32.xlu0 %v337, 64
  %v362 = vpop.permute.xlu0 %361
  %v364 = vmul.f32 %v359, %v362
  %366 = vrot.lane.b32.xlu0 %v364, 64
  %v367 = vpop.permute.xlu0 %366
  %v369 = vadd.f32 %v317, %v367
  %v370 = vtanh.pop %v369
  %v371 = vsub.f32 1.0, %v359
  %373 = vrot.lane.b32.xlu0 %v370, 96
  %v374 = vpop.permute.xlu0 %373
  %v376 = vmul.f32 %v371, %v374
  %v377 = vmul.f32 %v359, %v239
  %v378 = vadd.f32 %v376, %v377
  %380 = vrot.lane.b32.xlu0 %v378, 96
  %v381 = vpop.permute.xlu0 %380
  %s383 = scalar_lea.vmem %s6, 4
  %384 = vst.msk [vmem:[%s383] sm:$0xf] %vm244, %v381
  %s385 = scalar_lea.vmem %s0, 8
  %v386 = vld [vmem:[%s385] sm:$0xf]
  %387 = vmatpush.bf16.msra.mxu0 0
  %388 = vmatpush.bf16.msra.mxu0 0
  %389 = vmatpush.bf16.msra.mxu0 0
  %390 = vmatpush.bf16.msra.mxu0 0
  %391 = vmatpush.bf16.msra.mxu0 0
  %392 = vmatpush.bf16.msra.mxu0 0
  %393 = vmatpush.bf16.msra.mxu0 %v67
  %394 = vmatpush.bf16.msra.mxu0 %v66
  %395 = vmatmul.bf16.gmra.mxu0 %v305
  %v396 = vpop.f32.mrf.mxu0
  %v397 = vadd.f32 %v56, %v396
  %v398 = vpop.f32.mrf.mxu0
  %399 = vdwg.mxu0
  %v400 = vadd.f32 %v386, %v397
  %v401 = vxor.u32 %v400, 2147483648
  %v402 = vmul.f32 %v401, 1.442695
  %v403 = vpow.pop %v402
  %v404 = vadd.f32 %v403, 1.0
  %v405 = vrcp.pop %v404
  %v406 = vmul.f32 %v404, %v405
  %v407 = vsub.f32 1.0, %v406
  %v408 = vmul.f32 %v405, %v407
  %v409 = vadd.f32 %v405, %v408
  %vm410 = vweird.f32 %v404
  %vm411 = vweird.f32 %v405
  %vm412 = vmor %vm410, %vm411
  %v413 = vsel %vm412, %v405, %v409
  %v414 = vand.u32 2147483647, %v404
  %vm415 = vcmp.eq.f32.partialorder %v414, 8.507059e+37
  %v416 = vand.u32 %v404, 2147483648
  %v417 = vor.u32 1.1754944e-38, %v416
  %v418 = vsel %vm415, %v417, %v413
  %v419 = vmul.f32 1.0, %v418
  %421 = vrot.lane.b32.xlu0 %v397, 64
  %v422 = vpop.permute.xlu0 %421
  %v424 = vmul.f32 %v419, %v422
  %426 = vrot.lane.b32.xlu0 %v424, 64
  %v427 = vpop.permute.xlu0 %426
  %v429 = vadd.f32 %v386, %v427
  %v430 = vtanh.pop %v429
  %v431 = vsub.f32 1.0, %v419
  %433 = vrot.lane.b32.xlu0 %v430, 96
  %v434 = vpop.permute.xlu0 %433
  %v436 = vmul.f32 %v431, %v434
  %v437 = vmul.f32 %v419, %v299
  %v438 = vadd.f32 %v436, %v437
  %v439 = vpack.c.bf16 %v438, %v438
  %441 = vrot.lane.b32.xlu0 %v439, 96
  %v442 = vpop.permute.xlu0 %441
  %v444 = vsel %vm70, %v442, 0
  %446 = vmatpush.bf16.msra.mxu0 0
  %447 = vmatpush.bf16.msra.mxu0 0
  %448 = vmatpush.bf16.msra.mxu0 0
  %449 = vmatpush.bf16.msra.mxu0 0
  %450 = vmatpush.bf16.msra.mxu0 0
  %451 = vmatpush.bf16.msra.mxu0 0
  %452 = vmatpush.bf16.msra.mxu0 %v146
  %453 = vmatpush.bf16.msra.mxu0 %v145
  %454 = vmatmul.bf16.gmra.mxu0 %v444
  %v455 = vpop.f32.mrf.mxu0
  %v456 = vadd.f32 %v132, %v455
  %v457 = vpop.f32.mrf.mxu0
  %458 = vdwg.mxu0
  %v459 = vpack.c.bf16 %v378, %v378
  %461 = vrot.lane.b32.xlu0 %v459, 96
  %v462 = vpop.permute.xlu0 %461
  %v464 = vsel %vm70, %v462, 0
  %466 = vmatpush.bf16.msra.mxu0 0
  %467 = vmatpush.bf16.msra.mxu0 0
  %468 = vmatpush.bf16.msra.mxu0 0
  %469 = vmatpush.bf16.msra.mxu0 0
  %470 = vmatpush.bf16.msra.mxu0 0
  %471 = vmatpush.bf16.msra.mxu0 0
  %472 = vmatpush.bf16.msra.mxu0 %v178
  %473 = vmatpush.bf16.msra.mxu0 %v177
  %474 = vmatmul.bf16.gmra.mxu0 %v464
  %v475 = vpop.f32.mrf.mxu0
  %v476 = vadd.f32 %v167, %v475
  %v477 = vpop.f32.mrf.mxu0
  %478 = vdwg.mxu0
  %v479 = vadd.f32 %v456, %v476
  %v480 = vxor.u32 %v479, 2147483648
  %v481 = vmul.f32 %v480, 1.442695
  %v482 = vpow.pop %v481
  %v483 = vadd.f32 %v482, 1.0
  %v484 = vrcp.pop %v483
  %v485 = vmul.f32 %v483, %v484
  %v486 = vsub.f32 1.0, %v485
  %v487 = vmul.f32 %v484, %v486
  %v488 = vadd.f32 %v484, %v487
  %vm489 = vweird.f32 %v483
  %vm490 = vweird.f32 %v484
  %vm491 = vmor %vm489, %vm490
  %v492 = vsel %vm491, %v484, %v488
  %v493 = vand.u32 2147483647, %v483
  %vm494 = vcmp.eq.f32.partialorder %v493, 8.507059e+37
  %v495 = vand.u32 %v483, 2147483648
  %v496 = vor.u32 1.1754944e-38, %v495
  %v497 = vsel %vm494, %v496, %v492
  %v498 = vmul.f32 1.0, %v497
  %500 = vrot.lane.b32.xlu0 %v476, 64
  %v501 = vpop.permute.xlu0 %500
  %v503 = vmul.f32 %v498, %v501
  %505 = vrot.lane.b32.xlu0 %v503, 64
  %v506 = vpop.permute.xlu0 %505
  %v508 = vadd.f32 %v456, %v506
  %v509 = vtanh.pop %v508
  %v510 = vsub.f32 1.0, %v498
  %512 = vrot.lane.b32.xlu0 %v509, 96
  %v513 = vpop.permute.xlu0 %512
  %v515 = vmul.f32 %v510, %v513
  %v516 = vmul.f32 %v498, %v378
  %v517 = vadd.f32 %v515, %v516
  %519 = vrot.lane.b32.xlu0 %v517, 96
  %v520 = vpop.permute.xlu0 %519
  %s522 = scalar_lea.vmem %s6, 8
  %523 = vst.msk [vmem:[%s522] sm:$0xf] %vm244, %v520
  %s524 = scalar_lea.vmem %s0, 12
  %v525 = vld [vmem:[%s524] sm:$0xf]
  %526 = vmatpush.bf16.msra.mxu0 0
  %527 = vmatpush.bf16.msra.mxu0 0
  %528 = vmatpush.bf16.msra.mxu0 0
  %529 = vmatpush.bf16.msra.mxu0 0
  %530 = vmatpush.bf16.msra.mxu0 0
  %531 = vmatpush.bf16.msra.mxu0 0
  %532 = vmatpush.bf16.msra.mxu0 %v67
  %533 = vmatpush.bf16.msra.mxu0 %v66
  %534 = vmatmul.bf16.gmra.mxu0 %v444
  %v535 = vpop.f32.mrf.mxu0
  %v536 = vadd.f32 %v56, %v535
  %v537 = vpop.f32.mrf.mxu0
  %538 = vdwg.mxu0
  %v539 = vadd.f32 %v525, %v536
  %v540 = vxor.u32 %v539, 2147483648
  %v541 = vmul.f32 %v540, 1.442695
  %v542 = vpow.pop %v541
  %v543 = vadd.f32 %v542, 1.0
  %v544 = vrcp.pop %v543
  %v545 = vmul.f32 %v543, %v544
  %v546 = vsub.f32 1.0, %v545
  %v547 = vmul.f32 %v544, %v546
  %v548 = vadd.f32 %v544, %v547
  %vm549 = vweird.f32 %v543
  %vm550 = vweird.f32 %v544
  %vm551 = vmor %vm549, %vm550
  %v552 = vsel %vm551, %v544, %v548
  %v553 = vand.u32 2147483647, %v543
  %vm554 = vcmp.eq.f32.partialorder %v553, 8.507059e+37
  %v555 = vand.u32 %v543, 2147483648
  %v556 = vor.u32 1.1754944e-38, %v555
  %v557 = vsel %vm554, %v556, %v552
  %v558 = vmul.f32 1.0, %v557
  %560 = vrot.lane.b32.xlu0 %v536, 64
  %v561 = vpop.permute.xlu0 %560
  %v563 = vmul.f32 %v558, %v561
  %565 = vrot.lane.b32.xlu0 %v563, 64
  %v566 = vpop.permute.xlu0 %565
  %v568 = vadd.f32 %v525, %v566
  %v569 = vtanh.pop %v568
  %v570 = vsub.f32 1.0, %v558
  %572 = vrot.lane.b32.xlu0 %v569, 96
  %v573 = vpop.permute.xlu0 %572
  %v575 = vmul.f32 %v570, %v573
  %v576 = vmul.f32 %v558, %v438
  %v577 = vadd.f32 %v575, %v576
  %v578 = vpack.c.bf16 %v577, %v577
  %580 = vrot.lane.b32.xlu0 %v578, 96
  %v581 = vpop.permute.xlu0 %580
  %v583 = vsel %vm70, %v581, 0
  %585 = vmatpush.bf16.msra.mxu0 0
  %586 = vmatpush.bf16.msra.mxu0 0
  %587 = vmatpush.bf16.msra.mxu0 0
  %588 = vmatpush.bf16.msra.mxu0 0
  %589 = vmatpush.bf16.msra.mxu0 0
  %590 = vmatpush.bf16.msra.mxu0 0
  %591 = vmatpush.bf16.msra.mxu0 %v146
  %592 = vmatpush.bf16.msra.mxu0 %v145
  %593 = vmatmul.bf16.gmra.mxu0 %v583
  %v594 = vpop.f32.mrf.mxu0
  %v595 = vadd.f32 %v132, %v594
  %v596 = vpop.f32.mrf.mxu0
  %597 = vdwg.mxu0
  %v598 = vpack.c.bf16 %v517, %v517
  %600 = vrot.lane.b32.xlu0 %v598, 96
  %v601 = vpop.permute.xlu0 %600
  %v603 = vsel %vm70, %v601, 0
  %605 = vmatpush.bf16.msra.mxu0 0
  %606 = vmatpush.bf16.msra.mxu0 0
  %607 = vmatpush.bf16.msra.mxu0 0
  %608 = vmatpush.bf16.msra.mxu0 0
  %609 = vmatpush.bf16.msra.mxu0 0
  %610 = vmatpush.bf16.msra.mxu0 0
  %611 = vmatpush.bf16.msra.mxu0 %v178
  %612 = vmatpush.bf16.msra.mxu0 %v177
  %613 = vmatmul.bf16.gmra.mxu0 %v603
  %v614 = vpop.f32.mrf.mxu0
  %v615 = vadd.f32 %v167, %v614
  %v616 = vpop.f32.mrf.mxu0
  %617 = vdwg.mxu0
  %v618 = vadd.f32 %v595, %v615
  %v619 = vxor.u32 %v618, 2147483648
  %v620 = vmul.f32 %v619, 1.442695
  %v621 = vpow.pop %v620
  %v622 = vadd.f32 %v621, 1.0
  %v623 = vrcp.pop %v622
  %v624 = vmul.f32 %v622, %v623
  %v625 = vsub.f32 1.0, %v624
  %v626 = vmul.f32 %v623, %v625
  %v627 = vadd.f32 %v623, %v626
  %vm628 = vweird.f32 %v622
  %vm629 = vweird.f32 %v623
  %vm630 = vmor %vm628, %vm629
  %v631 = vsel %vm630, %v623, %v627
  %v632 = vand.u32 2147483647, %v622
  %vm633 = vcmp.eq.f32.partialorder %v632, 8.507059e+37
  %v634 = vand.u32 %v622, 2147483648
  %v635 = vor.u32 1.1754944e-38, %v634
  %v636 = vsel %vm633, %v635, %v631
  %v637 = vmul.f32 1.0, %v636
  %639 = vrot.lane.b32.xlu0 %v615, 64
  %v640 = vpop.permute.xlu0 %639
  %v642 = vmul.f32 %v637, %v640
  %644 = vrot.lane.b32.xlu0 %v642, 64
  %v645 = vpop.permute.xlu0 %644
  %v647 = vadd.f32 %v595, %v645
  %v648 = vtanh.pop %v647
  %v649 = vsub.f32 1.0, %v637
  %651 = vrot.lane.b32.xlu0 %v648, 96
  %v652 = vpop.permute.xlu0 %651
  %v654 = vmul.f32 %v649, %v652
  %v655 = vmul.f32 %v637, %v517
  %v656 = vadd.f32 %v654, %v655
  %658 = vrot.lane.b32.xlu0 %v656, 96
  %v659 = vpop.permute.xlu0 %658
  %s661 = scalar_lea.vmem %s6, 12
  %662 = vst.msk [vmem:[%s661] sm:$0xf] %vm244, %v659
  %s663 = scalar_lea.vmem %s0, 16
  %v664 = vld [vmem:[%s663] sm:$0xf]
  %665 = vmatpush.bf16.msra.mxu0 0
  %666 = vmatpush.bf16.msra.mxu0 0
  %667 = vmatpush.bf16.msra.mxu0 0
  %668 = vmatpush.bf16.msra.mxu0 0
  %669 = vmatpush.bf16.msra.mxu0 0
  %670 = vmatpush.bf16.msra.mxu0 0
  %671 = vmatpush.bf16.msra.mxu0 %v67
  %672 = vmatpush.bf16.msra.mxu0 %v66
  %673 = vmatmul.bf16.gmra.mxu0 %v583
  %v674 = vpop.f32.mrf.mxu0
  %v675 = vadd.f32 %v56, %v674
  %v676 = vpop.f32.mrf.mxu0
  %677 = vdwg.mxu0
  %v678 = vadd.f32 %v664, %v675
  %v679 = vxor.u32 %v678, 2147483648
  %v680 = vmul.f32 %v679, 1.442695
  %v681 = vpow.pop %v680
  %v682 = vadd.f32 %v681, 1.0
  %v683 = vrcp.pop %v682
  %v684 = vmul.f32 %v682, %v683
  %v685 = vsub.f32 1.0, %v684
  %v686 = vmul.f32 %v683, %v685
  %v687 = vadd.f32 %v683, %v686
  %vm688 = vweird.f32 %v682
  %vm689 = vweird.f32 %v683
  %vm690 = vmor %vm688, %vm689
  %v691 = vsel %vm690, %v683, %v687
  %v692 = vand.u32 2147483647, %v682
  %vm693 = vcmp.eq.f32.partialorder %v692, 8.507059e+37
  %v694 = vand.u32 %v682, 2147483648
  %v695 = vor.u32 1.1754944e-38, %v694
  %v696 = vsel %vm693, %v695, %v691
  %v697 = vmul.f32 1.0, %v696
  %699 = vrot.lane.b32.xlu0 %v675, 64
  %v700 = vpop.permute.xlu0 %699
  %v702 = vmul.f32 %v697, %v700
  %704 = vrot.lane.b32.xlu0 %v702, 64
  %v705 = vpop.permute.xlu0 %704
  %v707 = vadd.f32 %v664, %v705
  %v708 = vtanh.pop %v707
  %v709 = vsub.f32 1.0, %v697
  %711 = vrot.lane.b32.xlu0 %v708, 96
  %v712 = vpop.permute.xlu0 %711
  %v714 = vmul.f32 %v709, %v712
  %v715 = vmul.f32 %v697, %v577
  %v716 = vadd.f32 %v714, %v715
  %v717 = vpack.c.bf16 %v716, %v716
  %719 = vrot.lane.b32.xlu0 %v717, 96
  %v720 = vpop.permute.xlu0 %719
  %v722 = vsel %vm70, %v720, 0
  %724 = vmatpush.bf16.msra.mxu0 0
  %725 = vmatpush.bf16.msra.mxu0 0
  %726 = vmatpush.bf16.msra.mxu0 0
  %727 = vmatpush.bf16.msra.mxu0 0
  %728 = vmatpush.bf16.msra.mxu0 0
  %729 = vmatpush.bf16.msra.mxu0 0
  %730 = vmatpush.bf16.msra.mxu0 %v146
  %731 = vmatpush.bf16.msra.mxu0 %v145
  %732 = vmatmul.bf16.gmra.mxu0 %v722
  %v733 = vpop.f32.mrf.mxu0
  %v734 = vadd.f32 %v132, %v733
  %v735 = vpop.f32.mrf.mxu0
  %736 = vdwg.mxu0
  %v737 = vpack.c.bf16 %v656, %v656
  %739 = vrot.lane.b32.xlu0 %v737, 96
  %v740 = vpop.permute.xlu0 %739
  %v742 = vsel %vm70, %v740, 0
  %744 = vmatpush.bf16.msra.mxu0 0
  %745 = vmatpush.bf16.msra.mxu0 0
  %746 = vmatpush.bf16.msra.mxu0 0
  %747 = vmatpush.bf16.msra.mxu0 0
  %748 = vmatpush.bf16.msra.mxu0 0
  %749 = vmatpush.bf16.msra.mxu0 0
  %750 = vmatpush.bf16.msra.mxu0 %v178
  %751 = vmatpush.bf16.msra.mxu0 %v177
  %752 = vmatmul.bf16.gmra.mxu0 %v742
  %v753 = vpop.f32.mrf.mxu0
  %v754 = vadd.f32 %v167, %v753
  %v755 = vpop.f32.mrf.mxu0
  %756 = vdwg.mxu0
  %v757 = vadd.f32 %v734, %v754
  %v758 = vxor.u32 %v757, 2147483648
  %v759 = vmul.f32 %v758, 1.442695
  %v760 = vpow.pop %v759
  %v761 = vadd.f32 %v760, 1.0
  %v762 = vrcp.pop %v761
  %v763 = vmul.f32 %v761, %v762
  %v764 = vsub.f32 1.0, %v763
  %v765 = vmul.f32 %v762, %v764
  %v766 = vadd.f32 %v762, %v765
  %vm767 = vweird.f32 %v761
  %vm768 = vweird.f32 %v762
  %vm769 = vmor %vm767, %vm768
  %v770 = vsel %vm769, %v762, %v766
  %v771 = vand.u32 2147483647, %v761
  %vm772 = vcmp.eq.f32.partialorder %v771, 8.507059e+37
  %v773 = vand.u32 %v761, 2147483648
  %v774 = vor.u32 1.1754944e-38, %v773
  %v775 = vsel %vm772, %v774, %v770
  %v776 = vmul.f32 1.0, %v775
  %778 = vrot.lane.b32.xlu0 %v754, 64
  %v779 = vpop.permute.xlu0 %778
  %v781 = vmul.f32 %v776, %v779
  %783 = vrot.lane.b32.xlu0 %v781, 64
  %v784 = vpop.permute.xlu0 %783
  %v786 = vadd.f32 %v734, %v784
  %v787 = vtanh.pop %v786
  %v788 = vsub.f32 1.0, %v776
  %790 = vrot.lane.b32.xlu0 %v787, 96
  %v791 = vpop.permute.xlu0 %790
  %v793 = vmul.f32 %v788, %v791
  %v794 = vmul.f32 %v776, %v656
  %v795 = vadd.f32 %v793, %v794
  %797 = vrot.lane.b32.xlu0 %v795, 96
  %v798 = vpop.permute.xlu0 %797
  %s800 = scalar_lea.vmem %s6, 16
  %801 = vst.msk [vmem:[%s800] sm:$0xf] %vm244, %v798
  %s802 = scalar_lea.vmem %s0, 20
  %v803 = vld [vmem:[%s802] sm:$0xf]
  %804 = vmatpush.bf16.msra.mxu0 0
  %805 = vmatpush.bf16.msra.mxu0 0
  %806 = vmatpush.bf16.msra.mxu0 0
  %807 = vmatpush.bf16.msra.mxu0 0
  %808 = vmatpush.bf16.msra.mxu0 0
  %809 = vmatpush.bf16.msra.mxu0 0
  %810 = vmatpush.bf16.msra.mxu0 %v67
  %811 = vmatpush.bf16.msra.mxu0 %v66
  %812 = vmatmul.bf16.gmra.mxu0 %v722
  %v813 = vpop.f32.mrf.mxu0
  %v814 = vadd.f32 %v56, %v813
  %v815 = vpop.f32.mrf.mxu0
  %816 = vdwg.mxu0
  %v817 = vadd.f32 %v803, %v814
  %v818 = vxor.u32 %v817, 2147483648
  %v819 = vmul.f32 %v818, 1.442695
  %v820 = vpow.pop %v819
  %v821 = vadd.f32 %v820, 1.0
  %v822 = vrcp.pop %v821
  %v823 = vmul.f32 %v821, %v822
  %v824 = vsub.f32 1.0, %v823
  %v825 = vmul.f32 %v822, %v824
  %v826 = vadd.f32 %v822, %v825
  %vm827 = vweird.f32 %v821
  %vm828 = vweird.f32 %v822
  %vm829 = vmor %vm827, %vm828
  %v830 = vsel %vm829, %v822, %v826
  %v831 = vand.u32 2147483647, %v821
  %vm832 = vcmp.eq.f32.partialorder %v831, 8.507059e+37
  %v833 = vand.u32 %v821, 2147483648
  %v834 = vor.u32 1.1754944e-38, %v833
  %v835 = vsel %vm832, %v834, %v830
  %v836 = vmul.f32 1.0, %v835
  %838 = vrot.lane.b32.xlu0 %v814, 64
  %v839 = vpop.permute.xlu0 %838
  %v841 = vmul.f32 %v836, %v839
  %843 = vrot.lane.b32.xlu0 %v841, 64
  %v844 = vpop.permute.xlu0 %843
  %v846 = vadd.f32 %v803, %v844
  %v847 = vtanh.pop %v846
  %v848 = vsub.f32 1.0, %v836
  %850 = vrot.lane.b32.xlu0 %v847, 96
  %v851 = vpop.permute.xlu0 %850
  %v853 = vmul.f32 %v848, %v851
  %v854 = vmul.f32 %v836, %v716
  %v855 = vadd.f32 %v853, %v854
  %v856 = vpack.c.bf16 %v855, %v855
  %858 = vrot.lane.b32.xlu0 %v856, 96
  %v859 = vpop.permute.xlu0 %858
  %v861 = vsel %vm70, %v859, 0
  %863 = vmatpush.bf16.msra.mxu0 0
  %864 = vmatpush.bf16.msra.mxu0 0
  %865 = vmatpush.bf16.msra.mxu0 0
  %866 = vmatpush.bf16.msra.mxu0 0
  %867 = vmatpush.bf16.msra.mxu0 0
  %868 = vmatpush.bf16.msra.mxu0 0
  %869 = vmatpush.bf16.msra.mxu0 %v146
  %870 = vmatpush.bf16.msra.mxu0 %v145
  %871 = vmatmul.bf16.gmra.mxu0 %v861
  %v872 = vpop.f32.mrf.mxu0
  %v873 = vadd.f32 %v132, %v872
  %v874 = vpop.f32.mrf.mxu0
  %875 = vdwg.mxu0
  %v876 = vpack.c.bf16 %v795, %v795
  %878 = vrot.lane.b32.xlu0 %v876, 96
  %v879 = vpop.permute.xlu0 %878
  %v881 = vsel %vm70, %v879, 0
  %883 = vmatpush.bf16.msra.mxu0 0
  %884 = vmatpush.bf16.msra.mxu0 0
  %885 = vmatpush.bf16.msra.mxu0 0
  %886 = vmatpush.bf16.msra.mxu0 0
  %887 = vmatpush.bf16.msra.mxu0 0
  %888 = vmatpush.bf16.msra.mxu0 0
  %889 = vmatpush.bf16.msra.mxu0 %v178
  %890 = vmatpush.bf16.msra.mxu0 %v177
  %891 = vmatmul.bf16.gmra.mxu0 %v881
  %v892 = vpop.f32.mrf.mxu0
  %v893 = vadd.f32 %v167, %v892
  %v894 = vpop.f32.mrf.mxu0
  %895 = vdwg.mxu0
  %v896 = vadd.f32 %v873, %v893
  %v897 = vxor.u32 %v896, 2147483648
  %v898 = vmul.f32 %v897, 1.442695
  %v899 = vpow.pop %v898
  %v900 = vadd.f32 %v899, 1.0
  %v901 = vrcp.pop %v900
  %v902 = vmul.f32 %v900, %v901
  %v903 = vsub.f32 1.0, %v902
  %v904 = vmul.f32 %v901, %v903
  %v905 = vadd.f32 %v901, %v904
  %vm906 = vweird.f32 %v900
  %vm907 = vweird.f32 %v901
  %vm908 = vmor %vm906, %vm907
  %v909 = vsel %vm908, %v901, %v905
  %v910 = vand.u32 2147483647, %v900
  %vm911 = vcmp.eq.f32.partialorder %v910, 8.507059e+37
  %v912 = vand.u32 %v900, 2147483648
  %v913 = vor.u32 1.1754944e-38, %v912
  %v914 = vsel %vm911, %v913, %v909
  %v915 = vmul.f32 1.0, %v914
  %917 = vrot.lane.b32.xlu0 %v893, 64
  %v918 = vpop.permute.xlu0 %917
  %v920 = vmul.f32 %v915, %v918
  %922 = vrot.lane.b32.xlu0 %v920, 64
  %v923 = vpop.permute.xlu0 %922
  %v925 = vadd.f32 %v873, %v923
  %v926 = vtanh.pop %v925
  %v927 = vsub.f32 1.0, %v915
  %929 = vrot.lane.b32.xlu0 %v926, 96
  %v930 = vpop.permute.xlu0 %929
  %v932 = vmul.f32 %v927, %v930
  %v933 = vmul.f32 %v915, %v795
  %v934 = vadd.f32 %v932, %v933
  %936 = vrot.lane.b32.xlu0 %v934, 96
  %v937 = vpop.permute.xlu0 %936
  %s939 = scalar_lea.vmem %s6, 20
  %940 = vst.msk [vmem:[%s939] sm:$0xf] %vm244, %v937
  %s941 = scalar_lea.vmem %s0, 24
  %v942 = vld [vmem:[%s941] sm:$0xf]
  %943 = vmatpush.bf16.msra.mxu0 0
  %944 = vmatpush.bf16.msra.mxu0 0
  %945 = vmatpush.bf16.msra.mxu0 0
  %946 = vmatpush.bf16.msra.mxu0 0
  %947 = vmatpush.bf16.msra.mxu0 0
  %948 = vmatpush.bf16.msra.mxu0 0
  %949 = vmatpush.bf16.msra.mxu0 %v67
  %950 = vmatpush.bf16.msra.mxu0 %v66
  %951 = vmatmul.bf16.gmra.mxu0 %v861
  %v952 = vpop.f32.mrf.mxu0
  %v953 = vadd.f32 %v56, %v952
  %v954 = vpop.f32.mrf.mxu0
  %955 = vdwg.mxu0
  %v956 = vadd.f32 %v942, %v953
  %v957 = vxor.u32 %v956, 2147483648
  %v958 = vmul.f32 %v957, 1.442695
  %v959 = vpow.pop %v958
  %v960 = vadd.f32 %v959, 1.0
  %v961 = vrcp.pop %v960
  %v962 = vmul.f32 %v960, %v961
  %v963 = vsub.f32 1.0, %v962
  %v964 = vmul.f32 %v961, %v963
  %v965 = vadd.f32 %v961, %v964
  %vm966 = vweird.f32 %v960
  %vm967 = vweird.f32 %v961
  %vm968 = vmor %vm966, %vm967
  %v969 = vsel %vm968, %v961, %v965
  %v970 = vand.u32 2147483647, %v960
  %vm971 = vcmp.eq.f32.partialorder %v970, 8.507059e+37
  %v972 = vand.u32 %v960, 2147483648
  %v973 = vor.u32 1.1754944e-38, %v972
  %v974 = vsel %vm971, %v973, %v969
  %v975 = vmul.f32 1.0, %v974
  %977 = vrot.lane.b32.xlu0 %v953, 64
  %v978 = vpop.permute.xlu0 %977
  %v980 = vmul.f32 %v975, %v978
  %982 = vrot.lane.b32.xlu0 %v980, 64
  %v983 = vpop.permute.xlu0 %982
  %v985 = vadd.f32 %v942, %v983
  %v986 = vtanh.pop %v985
  %v987 = vsub.f32 1.0, %v975
  %989 = vrot.lane.b32.xlu0 %v986, 96
  %v990 = vpop.permute.xlu0 %989
  %v992 = vmul.f32 %v987, %v990
  %v993 = vmul.f32 %v975, %v855
  %v994 = vadd.f32 %v992, %v993
  %v995 = vpack.c.bf16 %v994, %v994
  %997 = vrot.lane.b32.xlu0 %v995, 96
  %v998 = vpop.permute.xlu0 %997
  %v1000 = vsel %vm70, %v998, 0
  %1002 = vmatpush.bf16.msra.mxu0 0
  %1003 = vmatpush.bf16.msra.mxu0 0
  %1004 = vmatpush.bf16.msra.mxu0 0
  %1005 = vmatpush.bf16.msra.mxu0 0
  %1006 = vmatpush.bf16.msra.mxu0 0
  %1007 = vmatpush.bf16.msra.mxu0 0
  %1008 = vmatpush.bf16.msra.mxu0 %v146
  %1009 = vmatpush.bf16.msra.mxu0 %v145
  %1010 = vmatmul.bf16.gmra.mxu0 %v1000
  %v1011 = vpop.f32.mrf.mxu0
  %v1012 = vadd.f32 %v132, %v1011
  %v1013 = vpop.f32.mrf.mxu0
  %1014 = vdwg.mxu0
  %v1015 = vpack.c.bf16 %v934, %v934
  %1017 = vrot.lane.b32.xlu0 %v1015, 96
  %v1018 = vpop.permute.xlu0 %1017
  %v1020 = vsel %vm70, %v1018, 0
  %1022 = vmatpush.bf16.msra.mxu0 0
  %1023 = vmatpush.bf16.msra.mxu0 0
  %1024 = vmatpush.bf16.msra.mxu0 0
  %1025 = vmatpush.bf16.msra.mxu0 0
  %1026 = vmatpush.bf16.msra.mxu0 0
  %1027 = vmatpush.bf16.msra.mxu0 0
  %1028 = vmatpush.bf16.msra.mxu0 %v178
  %1029 = vmatpush.bf16.msra.mxu0 %v177
  %1030 = vmatmul.bf16.gmra.mxu0 %v1020
  %v1031 = vpop.f32.mrf.mxu0
  %v1032 = vadd.f32 %v167, %v1031
  %v1033 = vpop.f32.mrf.mxu0
  %1034 = vdwg.mxu0
  %v1035 = vadd.f32 %v1012, %v1032
  %v1036 = vxor.u32 %v1035, 2147483648
  %v1037 = vmul.f32 %v1036, 1.442695
  %v1038 = vpow.pop %v1037
  %v1039 = vadd.f32 %v1038, 1.0
  %v1040 = vrcp.pop %v1039
  %v1041 = vmul.f32 %v1039, %v1040
  %v1042 = vsub.f32 1.0, %v1041
  %v1043 = vmul.f32 %v1040, %v1042
  %v1044 = vadd.f32 %v1040, %v1043
  %vm1045 = vweird.f32 %v1039
  %vm1046 = vweird.f32 %v1040
  %vm1047 = vmor %vm1045, %vm1046
  %v1048 = vsel %vm1047, %v1040, %v1044
  %v1049 = vand.u32 2147483647, %v1039
  %vm1050 = vcmp.eq.f32.partialorder %v1049, 8.507059e+37
  %v1051 = vand.u32 %v1039, 2147483648
  %v1052 = vor.u32 1.1754944e-38, %v1051
  %v1053 = vsel %vm1050, %v1052, %v1048
  %v1054 = vmul.f32 1.0, %v1053
  %1056 = vrot.lane.b32.xlu0 %v1032, 64
  %v1057 = vpop.permute.xlu0 %1056
  %v1059 = vmul.f32 %v1054, %v1057
  %1061 = vrot.lane.b32.xlu0 %v1059, 64
  %v1062 = vpop.permute.xlu0 %1061
  %v1064 = vadd.f32 %v1012, %v1062
  %v1065 = vtanh.pop %v1064
  %v1066 = vsub.f32 1.0, %v1054
  %1068 = vrot.lane.b32.xlu0 %v1065, 96
  %v1069 = vpop.permute.xlu0 %1068
  %v1071 = vmul.f32 %v1066, %v1069
  %v1072 = vmul.f32 %v1054, %v934
  %v1073 = vadd.f32 %v1071, %v1072
  %1075 = vrot.lane.b32.xlu0 %v1073, 96
  %v1076 = vpop.permute.xlu0 %1075
  %s1078 = scalar_lea.vmem %s6, 24
  %1079 = vst.msk [vmem:[%s1078] sm:$0xf] %vm244, %v1076
  %s1080 = scalar_lea.vmem %s0, 28
  %v1081 = vld [vmem:[%s1080] sm:$0xf]
  %1082 = vmatpush.bf16.msra.mxu0 0
  %1083 = vmatpush.bf16.msra.mxu0 0
  %1084 = vmatpush.bf16.msra.mxu0 0
  %1085 = vmatpush.bf16.msra.mxu0 0
  %1086 = vmatpush.bf16.msra.mxu0 0
  %1087 = vmatpush.bf16.msra.mxu0 0
  %1088 = vmatpush.bf16.msra.mxu0 %v67
  %1089 = vmatpush.bf16.msra.mxu0 %v66
  %1090 = vmatmul.bf16.gmra.mxu0 %v1000
  %v1091 = vpop.f32.mrf.mxu0
  %v1092 = vadd.f32 %v56, %v1091
  %v1093 = vpop.f32.mrf.mxu0
  %1094 = vdwg.mxu0
  %v1095 = vadd.f32 %v1081, %v1092
  %v1096 = vxor.u32 %v1095, 2147483648
  %v1097 = vmul.f32 %v1096, 1.442695
  %v1098 = vpow.pop %v1097
  %v1099 = vadd.f32 %v1098, 1.0
  %v1100 = vrcp.pop %v1099
  %v1101 = vmul.f32 %v1099, %v1100
  %v1102 = vsub.f32 1.0, %v1101
  %v1103 = vmul.f32 %v1100, %v1102
  %v1104 = vadd.f32 %v1100, %v1103
  %vm1105 = vweird.f32 %v1099
  %vm1106 = vweird.f32 %v1100
  %vm1107 = vmor %vm1105, %vm1106
  %v1108 = vsel %vm1107, %v1100, %v1104
  %v1109 = vand.u32 2147483647, %v1099
  %vm1110 = vcmp.eq.f32.partialorder %v1109, 8.507059e+37
  %v1111 = vand.u32 %v1099, 2147483648
  %v1112 = vor.u32 1.1754944e-38, %v1111
  %v1113 = vsel %vm1110, %v1112, %v1108
  %v1114 = vmul.f32 1.0, %v1113
  %1116 = vrot.lane.b32.xlu0 %v1092, 64
  %v1117 = vpop.permute.xlu0 %1116
  %v1119 = vmul.f32 %v1114, %v1117
  %1121 = vrot.lane.b32.xlu0 %v1119, 64
  %v1122 = vpop.permute.xlu0 %1121
  %v1124 = vadd.f32 %v1081, %v1122
  %v1125 = vtanh.pop %v1124
  %v1126 = vsub.f32 1.0, %v1114
  %1128 = vrot.lane.b32.xlu0 %v1125, 96
  %v1129 = vpop.permute.xlu0 %1128
  %v1131 = vmul.f32 %v1126, %v1129
  %v1132 = vmul.f32 %v1114, %v994
  %v1133 = vadd.f32 %v1131, %v1132
  %v1134 = vpack.c.bf16 %v1133, %v1133
  %1136 = vrot.lane.b32.xlu0 %v1134, 96
  %v1137 = vpop.permute.xlu0 %1136
  %v1139 = vsel %vm70, %v1137, 0
  %1141 = vmatpush.bf16.msra.mxu0 0
  %1142 = vmatpush.bf16.msra.mxu0 0
  %1143 = vmatpush.bf16.msra.mxu0 0
  %1144 = vmatpush.bf16.msra.mxu0 0
  %1145 = vmatpush.bf16.msra.mxu0 0
  %1146 = vmatpush.bf16.msra.mxu0 0
  %1147 = vmatpush.bf16.msra.mxu0 %v146
  %1148 = vmatpush.bf16.msra.mxu0 %v145
  %1149 = vmatmul.bf16.gmra.mxu0 %v1139
  %v1150 = vpop.f32.mrf.mxu0
  %v1151 = vadd.f32 %v132, %v1150
  %v1152 = vpop.f32.mrf.mxu0
  %1153 = vdwg.mxu0
  %v1154 = vpack.c.bf16 %v1073, %v1073
  %1156 = vrot.lane.b32.xlu0 %v1154, 96
  %v1157 = vpop.permute.xlu0 %1156
  %v1159 = vsel %vm70, %v1157, 0
  %1161 = vmatpush.bf16.msra.mxu0 0
  %1162 = vmatpush.bf16.msra.mxu0 0
  %1163 = vmatpush.bf16.msra.mxu0 0
  %1164 = vmatpush.bf16.msra.mxu0 0
  %1165 = vmatpush.bf16.msra.mxu0 0
  %1166 = vmatpush.bf16.msra.mxu0 0
  %1167 = vmatpush.bf16.msra.mxu0 %v178
  %1168 = vmatpush.bf16.msra.mxu0 %v177
  %1169 = vmatmul.bf16.gmra.mxu0 %v1159
  %v1170 = vpop.f32.mrf.mxu0
  %v1171 = vadd.f32 %v167, %v1170
  %v1172 = vpop.f32.mrf.mxu0
  %1173 = vdwg.mxu0
  %v1174 = vadd.f32 %v1151, %v1171
  %v1175 = vxor.u32 %v1174, 2147483648
  %v1176 = vmul.f32 %v1175, 1.442695
  %v1177 = vpow.pop %v1176
  %v1178 = vadd.f32 %v1177, 1.0
  %v1179 = vrcp.pop %v1178
  %v1180 = vmul.f32 %v1178, %v1179
  %v1181 = vsub.f32 1.0, %v1180
  %v1182 = vmul.f32 %v1179, %v1181
  %v1183 = vadd.f32 %v1179, %v1182
  %vm1184 = vweird.f32 %v1178
  %vm1185 = vweird.f32 %v1179
  %vm1186 = vmor %vm1184, %vm1185
  %v1187 = vsel %vm1186, %v1179, %v1183
  %v1188 = vand.u32 2147483647, %v1178
  %vm1189 = vcmp.eq.f32.partialorder %v1188, 8.507059e+37
  %v1190 = vand.u32 %v1178, 2147483648
  %v1191 = vor.u32 1.1754944e-38, %v1190
  %v1192 = vsel %vm1189, %v1191, %v1187
  %v1193 = vmul.f32 1.0, %v1192
  %1195 = vrot.lane.b32.xlu0 %v1171, 64
  %v1196 = vpop.permute.xlu0 %1195
  %v1198 = vmul.f32 %v1193, %v1196
  %1200 = vrot.lane.b32.xlu0 %v1198, 64
  %v1201 = vpop.permute.xlu0 %1200
  %v1203 = vadd.f32 %v1151, %v1201
  %v1204 = vtanh.pop %v1203
  %v1205 = vsub.f32 1.0, %v1193
  %1207 = vrot.lane.b32.xlu0 %v1204, 96
  %v1208 = vpop.permute.xlu0 %1207
  %v1210 = vmul.f32 %v1205, %v1208
  %v1211 = vmul.f32 %v1193, %v1073
  %v1212 = vadd.f32 %v1210, %v1211
  %1214 = vrot.lane.b32.xlu0 %v1212, 96
  %v1215 = vpop.permute.xlu0 %1214
  %s1217 = scalar_lea.vmem %s6, 28
  %1218 = vst.msk [vmem:[%s1217] sm:$0xf] %vm244, %v1215
  %1220 = vrot.lane.b32.xlu0 %v1133, 96
  %v1221 = vpop.permute.xlu0 %1220
  %1223 = vst.msk [vmem:[#allocation2] sm:$0xf] %vm244, %v1221
  %1224 = vst.msk [vmem:[%s51] sm:$0xf] %vm244, %v1215
  // Predicated region
  $region30: #{_forward_core.7} parent=0 // pred_check
    _
  $region31: #{_forward_core.7} parent=0 // pred_check_branch
    %1226 = sbr.rel (0) target = $region33
  $region32: #{_forward_core.7} parent=0 // pred_region
    _
  $region33: #{_forward_core.7} parent=0 // pred_fallthru
    _
  // Predicated region
  $region34: #{_forward_core.7} parent=0 // pred_check
    _
  $region35: #{_forward_core.7} parent=0 // pred_check_branch
    %1228 = sbr.rel (0) target = $region37
  $region36: #{_forward_core.7} parent=0 // pred_region
    _
  $region37: #{_forward_core.7} parent=0 // pred_fallthru
    _

// kernel: _forward_core.11
$region0: #{_forward_core.11}
  #allocation0 [shape = 'u32[]', space=smem, size = 0x4, offset = 0x4, fixed_abs, tag = 'smem constant byte address 0x4 - core index']
  #allocation1 [shape = 'u32[72,128]{1,0:T(1,128)}', space=vmem, size = 0x9000, scoped, tag = 'internal scratch']
  #allocation2 [shape = 'f32[1,1]{1,0:T(1,128)S(1)}', space=vmem, size = 0x200, scoped, tag = 'scoped memory for _forward_core.11']
  %s0 = inlined_call_operand.vmem [shape: f32[88,16], index: 0, kind: input, shape index: {}]
  %s1 = inlined_call_operand.vmem [shape: f32[88,1], index: 1, kind: input, shape index: {}]
  %s2 = inlined_call_operand.vmem [shape: f32[88,1], index: 2, kind: input, shape index: {}]
  %s3 = inlined_call_operand.vmem [shape: bf16[16,8], index: 3, kind: input, shape index: {}]
  %s4 = inlined_call_operand.vmem [shape: f32[1,8], index: 4, kind: input, shape index: {}]
  %s5 = inlined_call_operand.vmem [shape: f32[1,8], index: 5, kind: input, shape index: {}]
  %s6 = inlined_call_operand.<no memory space> [shape: f32[1,1], index: 6, kind: input, shape index: {}]
  %s7 = inlined_call_operand.hbm [shape: f32[1,1], index: 7, kind: output, shape index: {}]
  %s8 = sld [smem:[#allocation0]]
  $region38: #{_forward_core.11} parent=0
    _
  %s10 = ssub.s32 1, %s8
  %s11 = scalar_select 0, %s10, %s8
  %v12 = vstv %s6
  %13 = vst [vmem:[#allocation2] sm:$0x1] %v12
  $region1: #{_forward_core.11} parent=0
    #allocation3 [shape = 'u8[512]{0}', space=vmem, size = 0x400, scoped, tag = 'output window, operand 0, single buffered']
    #allocation4 [shape = 's32[1]{0}', space=sflag, size = 0x4, scoped, tag = 'scoped memory for _forward_core.11']
    %14 = vsyncpa [#allocation4], 0
    // Predicated region
    $region2: #{_forward_core.11} parent=1 // pred_check
      _
    $region3: #{_forward_core.11} parent=1 // pred_check_branch
      %16 = sbr.rel (0) target = $region5
    $region4: #{_forward_core.11} parent=1 // pred_region
      _
    $region5: #{_forward_core.11} parent=1 // pred_fallthru
      _
    // Predicated region
    $region6: #{_forward_core.11} parent=1 // pred_check
      _
    $region7: #{_forward_core.11} parent=1 // pred_check_branch
      %18 = sbr.rel (0) target = $region9
    $region8: #{_forward_core.11} parent=1 // pred_region
      _
    $region9: #{_forward_core.11} parent=1 // pred_fallthru
      _
    // Predicated region
    $region10: #{_forward_core.11} parent=1 // pred_check
      _
    $region11: #{_forward_core.11} parent=1 // pred_check_branch
      %20 = sbr.rel (0) target = $region13
    $region12: #{_forward_core.11} parent=1 // pred_region
      _
    $region13: #{_forward_core.11} parent=1 // pred_fallthru
      _
    // Predicated region
    $region14: #{_forward_core.11} parent=1 // pred_check
      _
    $region15: #{_forward_core.11} parent=1 // pred_check_branch
      %22 = sbr.rel (0) target = $region17
    $region16: #{_forward_core.11} parent=1 // pred_region
      _
    $region17: #{_forward_core.11} parent=1 // pred_fallthru
      _
    // Predicated region
    $region18: #{_forward_core.11} parent=1 // pred_check
      _
    $region19: #{_forward_core.11} parent=1 // pred_check_branch
      %24 = sbr.rel (0) target = $region21
    $region20: #{_forward_core.11} parent=1 // pred_region
      _
    $region21: #{_forward_core.11} parent=1 // pred_fallthru
      _
    // Predicated region
    $region22: #{_forward_core.11} parent=1 // pred_check
      _
    $region23: #{_forward_core.11} parent=1 // pred_check_branch
      %26 = sbr.rel (0) target = $region25
    $region24: #{_forward_core.11} parent=1 // pred_region
      _
    $region25: #{_forward_core.11} parent=1 // pred_fallthru
      _
    // Predicated region
    $region26: #{_forward_core.11} parent=1 // pred_check
      _
    $region27: #{_forward_core.11} parent=1 // pred_check_branch
      %28 = sbr.rel (0) target = $region29
    $region28: #{_forward_core.11} parent=1 // pred_region
      _
    $region29: #{_forward_core.11} parent=1 // pred_fallthru
      _
    %v30 = vld [vmem:[%s1] sm:$0xff]
    %v31 = vld [vmem:[%s1 + $0x8] sm:$0xff]
    %v32 = vld [vmem:[%s1 + $0x10] sm:$0xff]
    %v33 = vld [vmem:[%s1 + $0x18] sm:$0xff]
    %v34 = vld [vmem:[%s1 + $0x20] sm:$0xff]
    %v35 = vld [vmem:[%s1 + $0x28] sm:$0xff]
    %v36 = vld [vmem:[%s1 + $0x30] sm:$0xff]
    %v37 = vld [vmem:[%s1 + $0x38] sm:$0xff]
    %v38 = vld [vmem:[%s1 + $0x40] sm:$0xff]
    %v39 = vld [vmem:[%s1 + $0x48] sm:$0xff]
    %v40 = vld [vmem:[%s1 + $0x50] sm:$0xff]
    %v41 = vld [vmem:[%s0] sm:$0xff]
    %v42 = vld [vmem:[%s0 + $0x8] sm:$0xff]
    %v43 = vld [vmem:[%s0 + $0x10] sm:$0xff]
    %v44 = vld [vmem:[%s0 + $0x18] sm:$0xff]
    %v45 = vld [vmem:[%s0 + $0x20] sm:$0xff]
    %v46 = vld [vmem:[%s0 + $0x28] sm:$0xff]
    %v47 = vld [vmem:[%s0 + $0x30] sm:$0xff]
    %v48 = vld [vmem:[%s0 + $0x38] sm:$0xff]
    %v49 = vld [vmem:[%s0 + $0x40] sm:$0xff]
    %v50 = vld [vmem:[%s0 + $0x48] sm:$0xff]
    %v51 = vld [vmem:[%s0 + $0x50] sm:$0xff]
    %53 = vset.pattern.permute.xlu0 0
    %54 = vperm.xlu0 %53, %v30
    %v55 = vpop.permute.xlu0 %54
    %58 = vset.pattern.permute.xlu0 0
    %59 = vperm.xlu0 %58, %v31
    %v60 = vpop.permute.xlu0 %59
    %63 = vset.pattern.permute.xlu0 0
    %64 = vperm.xlu0 %63, %v32
    %v65 = vpop.permute.xlu0 %64
    %68 = vset.pattern.permute.xlu0 0
    %69 = vperm.xlu0 %68, %v33
    %v70 = vpop.permute.xlu0 %69
    %73 = vset.pattern.permute.xlu0 0
    %74 = vperm.xlu0 %73, %v34
    %v75 = vpop.permute.xlu0 %74
    %78 = vset.pattern.permute.xlu0 0
    %79 = vperm.xlu0 %78, %v35
    %v80 = vpop.permute.xlu0 %79
    %83 = vset.pattern.permute.xlu0 0
    %84 = vperm.xlu0 %83, %v36
    %v85 = vpop.permute.xlu0 %84
    %88 = vset.pattern.permute.xlu0 0
    %89 = vperm.xlu0 %88, %v37
    %v90 = vpop.permute.xlu0 %89
    %93 = vset.pattern.permute.xlu0 0
    %94 = vperm.xlu0 %93, %v38
    %v95 = vpop.permute.xlu0 %94
    %98 = vset.pattern.permute.xlu0 0
    %99 = vperm.xlu0 %98, %v39
    %v100 = vpop.permute.xlu0 %99
    %103 = vset.pattern.permute.xlu0 0
    %104 = vperm.xlu0 %103, %v40
    %v105 = vpop.permute.xlu0 %104
    %v107 = vmul.f32 %v41, %v55
    %v108 = vmul.f32 %v42, %v60
    %v109 = vmul.f32 %v43, %v65
    %v110 = vmul.f32 %v44, %v70
    %v111 = vmul.f32 %v45, %v75
    %v112 = vmul.f32 %v46, %v80
    %v113 = vmul.f32 %v47, %v85
    %v114 = vmul.f32 %v48, %v90
    %v115 = vmul.f32 %v49, %v95
    %v116 = vmul.f32 %v50, %v100
    %v117 = vmul.f32 %v51, %v105
    %v118 = vpack.c.bf16 %v108, %v107
    %v119 = vpack.c.bf16 %v110, %v109
    %v120 = vpack.c.bf16 %v112, %v111
    %v121 = vpack.c.bf16 %v114, %v113
    %v122 = vpack.c.bf16 %v116, %v115
    %v123 = vpack.c.bf16 %v117, %v117
    %v124 = vld [vmem:[%s3] sm:$0xf]
    %v125 = vld [vmem:[%s3 + $0x4] sm:$0xf]
    %v126 = vld [vmem:[%s4] sm:$0x1]
    %v128 = vperm.slane %v126, 0
    %v132 = vunpack.c.l.b16 %v124
    %v133 = vunpack.c.l.b16 %v125
    %v134 = vpack.c.b16 %v133, %v132
    %vm136 = vcmask 130048
    %v138 = vsel %vm136, %v118, 0
    %v141 = vsel %vm136, %v119, 0
    %v144 = vsel %vm136, %v120, 0
    %v147 = vsel %vm136, %v121, 0
    %v150 = vsel %vm136, %v122, 0
    %v153 = vsel %vm136, %v123, 0
    %155 = vmatpush.bf16.msra.mxu0 0
    %156 = vmatpush.bf16.msra.mxu0 0
    %157 = vmatpush.bf16.msra.mxu0 0
    %158 = vmatpush.bf16.msra.mxu0 0
    %159 = vmatpush.bf16.msra.mxu0 0
    %160 = vmatpush.bf16.msra.mxu0 0
    %161 = vmatpush.bf16.msra.mxu0 0
    %162 = vmatpush.bf16.msra.mxu0 %v134
    %163 = vmatmul.bf16.gmra.mxu0 %v138
    %v164 = vpop.f32.mrf.mxu0
    %v165 = vadd.f32 %v128, %v164
    %v166 = vpop.f32.mrf.mxu0
    %v167 = vadd.f32 %v128, %v166
    %168 = vmatmul.bf16.gmra.mxu0 %v141
    %v169 = vpop.f32.mrf.mxu0
    %v170 = vadd.f32 %v128, %v169
    %v171 = vpop.f32.mrf.mxu0
    %v172 = vadd.f32 %v128, %v171
    %173 = vmatmul.bf16.gmra.mxu0 %v144
    %v174 = vpop.f32.mrf.mxu0
    %v175 = vadd.f32 %v128, %v174
    %v176 = vpop.f32.mrf.mxu0
    %v177 = vadd.f32 %v128, %v176
    %178 = vmatmul.bf16.gmra.mxu0 %v147
    %v179 = vpop.f32.mrf.mxu0
    %v180 = vadd.f32 %v128, %v179
    %v181 = vpop.f32.mrf.mxu0
    %v182 = vadd.f32 %v128, %v181
    %183 = vmatmul.bf16.gmra.mxu0 %v150
    %v184 = vpop.f32.mrf.mxu0
    %v185 = vadd.f32 %v128, %v184
    %v186 = vpop.f32.mrf.mxu0
    %v187 = vadd.f32 %v128, %v186
    %188 = vmatmul.bf16.gmra.mxu0 %v153
    %v189 = vpop.f32.mrf.mxu0
    %v190 = vadd.f32 %v128, %v189
    %v191 = vpop.f32.mrf.mxu0
    %192 = vdwg.mxu0
    %v193 = vmax.f32 %v165, 0.0
    %v194 = vmax.f32 %v167, 0.0
    %v195 = vmax.f32 %v170, 0.0
    %v196 = vmax.f32 %v172, 0.0
    %v197 = vmax.f32 %v175, 0.0
    %v198 = vmax.f32 %v177, 0.0
    %v199 = vmax.f32 %v180, 0.0
    %v200 = vmax.f32 %v182, 0.0
    %v201 = vmax.f32 %v185, 0.0
    %v202 = vmax.f32 %v187, 0.0
    %v203 = vmax.f32 %v190, 0.0
    %v204 = vld [vmem:[%s5] sm:$0x1]
    %v206 = vperm.slane %v204, 0
    %v208 = vmul.f32 %v193, %v206
    %v209 = vmul.f32 %v194, %v206
    %v210 = vmul.f32 %v195, %v206
    %v211 = vmul.f32 %v196, %v206
    %v212 = vmul.f32 %v197, %v206
    %v213 = vmul.f32 %v198, %v206
    %v214 = vmul.f32 %v199, %v206
    %v215 = vmul.f32 %v200, %v206
    %v216 = vmul.f32 %v201, %v206
    %v217 = vmul.f32 %v202, %v206
    %v218 = vmul.f32 %v203, %v206
    %vm219 = vcmask 64512
    %v220 = vsel %vm219, %v208, 0.0
    %221 = vadd.xlane.f32.xlu0 %v220
    %v222 = vpop.xlane.xlu0 %221
    %v223 = vsel %vm219, %v209, 0.0
    %224 = vadd.xlane.f32.xlu0 %v223
    %v225 = vpop.xlane.xlu0 %224
    %v226 = vsel %vm219, %v210, 0.0
    %227 = vadd.xlane.f32.xlu0 %v226
    %v228 = vpop.xlane.xlu0 %227
    %v229 = vsel %vm219, %v211, 0.0
    %230 = vadd.xlane.f32.xlu0 %v229
    %v231 = vpop.xlane.xlu0 %230
    %v232 = vsel %vm219, %v212, 0.0
    %233 = vadd.xlane.f32.xlu0 %v232
    %v234 = vpop.xlane.xlu0 %233
    %v235 = vsel %vm219, %v213, 0.0
    %236 = vadd.xlane.f32.xlu0 %v235
    %v237 = vpop.xlane.xlu0 %236
    %v238 = vsel %vm219, %v214, 0.0
    %239 = vadd.xlane.f32.xlu0 %v238
    %v240 = vpop.xlane.xlu0 %239
    %v241 = vsel %vm219, %v215, 0.0
    %242 = vadd.xlane.f32.xlu0 %v241
    %v243 = vpop.xlane.xlu0 %242
    %v244 = vsel %vm219, %v216, 0.0
    %245 = vadd.xlane.f32.xlu0 %v244
    %v246 = vpop.xlane.xlu0 %245
    %v247 = vsel %vm219, %v217, 0.0
    %248 = vadd.xlane.f32.xlu0 %v247
    %v249 = vpop.xlane.xlu0 %248
    %v250 = vsel %vm219, %v218, 0.0
    %251 = vadd.xlane.f32.xlu0 %v250
    %v252 = vpop.xlane.xlu0 %251
    %v253 = vld [vmem:[#allocation2] sm:$0x1]
    %v255 = vperm.slane %v253, 0
    %v257 = vadd.f32 %v222, %v255
    %v258 = vadd.f32 %v225, %v255
    %v259 = vadd.f32 %v228, %v255
    %v260 = vadd.f32 %v231, %v255
    %v261 = vadd.f32 %v234, %v255
    %v262 = vadd.f32 %v237, %v255
    %v263 = vadd.f32 %v240, %v255
    %v264 = vadd.f32 %v243, %v255
    %v265 = vadd.f32 %v246, %v255
    %v266 = vadd.f32 %v249, %v255
    %v267 = vadd.f32 %v252, %v255
    %v268 = vxor.u32 %v257, 2147483648
    %v269 = vxor.u32 %v258, 2147483648
    %v270 = vxor.u32 %v259, 2147483648
    %v271 = vxor.u32 %v260, 2147483648
    %v272 = vxor.u32 %v261, 2147483648
    %v273 = vxor.u32 %v262, 2147483648
    %v274 = vxor.u32 %v263, 2147483648
    %v275 = vxor.u32 %v264, 2147483648
    %v276 = vxor.u32 %v265, 2147483648
    %v277 = vxor.u32 %v266, 2147483648
    %v278 = vxor.u32 %v267, 2147483648
    %v279 = vmul.f32 %v268, 1.442695
    %v280 = vpow.pop %v279
    %v281 = vmul.f32 %v269, 1.442695
    %v282 = vpow.pop %v281
    %v283 = vmul.f32 %v270, 1.442695
    %v284 = vpow.pop %v283
    %v285 = vmul.f32 %v271, 1.442695
    %v286 = vpow.pop %v285
    %v287 = vmul.f32 %v272, 1.442695
    %v288 = vpow.pop %v287
    %v289 = vmul.f32 %v273, 1.442695
    %v290 = vpow.pop %v289
    %v291 = vmul.f32 %v274, 1.442695
    %v292 = vpow.pop %v291
    %v293 = vmul.f32 %v275, 1.442695
    %v294 = vpow.pop %v293
    %v295 = vmul.f32 %v276, 1.442695
    %v296 = vpow.pop %v295
    %v297 = vmul.f32 %v277, 1.442695
    %v298 = vpow.pop %v297
    %v299 = vmul.f32 %v278, 1.442695
    %v300 = vpow.pop %v299
    %v301 = vadd.f32 %v280, 1.0
    %v302 = vadd.f32 %v282, 1.0
    %v303 = vadd.f32 %v284, 1.0
    %v304 = vadd.f32 %v286, 1.0
    %v305 = vadd.f32 %v288, 1.0
    %v306 = vadd.f32 %v290, 1.0
    %v307 = vadd.f32 %v292, 1.0
    %v308 = vadd.f32 %v294, 1.0
    %v309 = vadd.f32 %v296, 1.0
    %v310 = vadd.f32 %v298, 1.0
    %v311 = vadd.f32 %v300, 1.0
    %v312 = vrcp.pop %v301
    %v313 = vmul.f32 %v301, %v312
    %v314 = vsub.f32 1.0, %v313
    %v315 = vmul.f32 %v312, %v314
    %v316 = vadd.f32 %v312, %v315
    %vm317 = vweird.f32 %v301
    %vm318 = vweird.f32 %v312
    %vm319 = vmor %vm317, %vm318
    %v320 = vsel %vm319, %v312, %v316
    %v321 = vand.u32 2147483647, %v301
    %vm322 = vcmp.eq.f32.partialorder %v321, 8.507059e+37
    %v323 = vand.u32 %v301, 2147483648
    %v324 = vor.u32 1.1754944e-38, %v323
    %v325 = vsel %vm322, %v324, %v320
    %v326 = vmul.f32 1.0, %v325
    %v327 = vrcp.pop %v302
    %v328 = vmul.f32 %v302, %v327
    %v329 = vsub.f32 1.0, %v328
    %v330 = vmul.f32 %v327, %v329
    %v331 = vadd.f32 %v327, %v330
    %vm332 = vweird.f32 %v302
    %vm333 = vweird.f32 %v327
    %vm334 = vmor %vm332, %vm333
    %v335 = vsel %vm334, %v327, %v331
    %v336 = vand.u32 2147483647, %v302
    %vm337 = vcmp.eq.f32.partialorder %v336, 8.507059e+37
    %v338 = vand.u32 %v302, 2147483648
    %v339 = vor.u32 1.1754944e-38, %v338
    %v340 = vsel %vm337, %v339, %v335
    %v341 = vmul.f32 1.0, %v340
    %v342 = vrcp.pop %v303
    %v343 = vmul.f32 %v303, %v342
    %v344 = vsub.f32 1.0, %v343
    %v345 = vmul.f32 %v342, %v344
    %v346 = vadd.f32 %v342, %v345
    %vm347 = vweird.f32 %v303
    %vm348 = vweird.f32 %v342
    %vm349 = vmor %vm347, %vm348
    %v350 = vsel %vm349, %v342, %v346
    %v351 = vand.u32 2147483647, %v303
    %vm352 = vcmp.eq.f32.partialorder %v351, 8.507059e+37
    %v353 = vand.u32 %v303, 2147483648
    %v354 = vor.u32 1.1754944e-38, %v353
    %v355 = vsel %vm352, %v354, %v350
    %v356 = vmul.f32 1.0, %v355
    %v357 = vrcp.pop %v304
    %v358 = vmul.f32 %v304, %v357
    %v359 = vsub.f32 1.0, %v358
    %v360 = vmul.f32 %v357, %v359
    %v361 = vadd.f32 %v357, %v360
    %vm362 = vweird.f32 %v304
    %vm363 = vweird.f32 %v357
    %vm364 = vmor %vm362, %vm363
    %v365 = vsel %vm364, %v357, %v361
    %v366 = vand.u32 2147483647, %v304
    %vm367 = vcmp.eq.f32.partialorder %v366, 8.507059e+37
    %v368 = vand.u32 %v304, 2147483648
    %v369 = vor.u32 1.1754944e-38, %v368
    %v370 = vsel %vm367, %v369, %v365
    %v371 = vmul.f32 1.0, %v370
    %v372 = vrcp.pop %v305
    %v373 = vmul.f32 %v305, %v372
    %v374 = vsub.f32 1.0, %v373
    %v375 = vmul.f32 %v372, %v374
    %v376 = vadd.f32 %v372, %v375
    %vm377 = vweird.f32 %v305
    %vm378 = vweird.f32 %v372
    %vm379 = vmor %vm377, %vm378
    %v380 = vsel %vm379, %v372, %v376
    %v381 = vand.u32 2147483647, %v305
    %vm382 = vcmp.eq.f32.partialorder %v381, 8.507059e+37
    %v383 = vand.u32 %v305, 2147483648
    %v384 = vor.u32 1.1754944e-38, %v383
    %v385 = vsel %vm382, %v384, %v380
    %v386 = vmul.f32 1.0, %v385
    %v387 = vrcp.pop %v306
    %v388 = vmul.f32 %v306, %v387
    %v389 = vsub.f32 1.0, %v388
    %v390 = vmul.f32 %v387, %v389
    %v391 = vadd.f32 %v387, %v390
    %vm392 = vweird.f32 %v306
    %vm393 = vweird.f32 %v387
    %vm394 = vmor %vm392, %vm393
    %v395 = vsel %vm394, %v387, %v391
    %v396 = vand.u32 2147483647, %v306
    %vm397 = vcmp.eq.f32.partialorder %v396, 8.507059e+37
    %v398 = vand.u32 %v306, 2147483648
    %v399 = vor.u32 1.1754944e-38, %v398
    %v400 = vsel %vm397, %v399, %v395
    %v401 = vmul.f32 1.0, %v400
    %v402 = vrcp.pop %v307
    %v403 = vmul.f32 %v307, %v402
    %v404 = vsub.f32 1.0, %v403
    %v405 = vmul.f32 %v402, %v404
    %v406 = vadd.f32 %v402, %v405
    %vm407 = vweird.f32 %v307
    %vm408 = vweird.f32 %v402
    %vm409 = vmor %vm407, %vm408
    %v410 = vsel %vm409, %v402, %v406
    %v411 = vand.u32 2147483647, %v307
    %vm412 = vcmp.eq.f32.partialorder %v411, 8.507059e+37
    %v413 = vand.u32 %v307, 2147483648
    %v414 = vor.u32 1.1754944e-38, %v413
    %v415 = vsel %vm412, %v414, %v410
    %v416 = vmul.f32 1.0, %v415
    %v417 = vrcp.pop %v308
    %v418 = vmul.f32 %v308, %v417
    %v419 = vsub.f32 1.0, %v418
    %v420 = vmul.f32 %v417, %v419
    %v421 = vadd.f32 %v417, %v420
    %vm422 = vweird.f32 %v308
    %vm423 = vweird.f32 %v417
    %vm424 = vmor %vm422, %vm423
    %v425 = vsel %vm424, %v417, %v421
    %v426 = vand.u32 2147483647, %v308
    %vm427 = vcmp.eq.f32.partialorder %v426, 8.507059e+37
    %v428 = vand.u32 %v308, 2147483648
    %v429 = vor.u32 1.1754944e-38, %v428
    %v430 = vsel %vm427, %v429, %v425
    %v431 = vmul.f32 1.0, %v430
    %v432 = vrcp.pop %v309
    %v433 = vmul.f32 %v309, %v432
    %v434 = vsub.f32 1.0, %v433
    %v435 = vmul.f32 %v432, %v434
    %v436 = vadd.f32 %v432, %v435
    %vm437 = vweird.f32 %v309
    %vm438 = vweird.f32 %v432
    %vm439 = vmor %vm437, %vm438
    %v440 = vsel %vm439, %v432, %v436
    %v441 = vand.u32 2147483647, %v309
    %vm442 = vcmp.eq.f32.partialorder %v441, 8.507059e+37
    %v443 = vand.u32 %v309, 2147483648
    %v444 = vor.u32 1.1754944e-38, %v443
    %v445 = vsel %vm442, %v444, %v440
    %v446 = vmul.f32 1.0, %v445
    %v447 = vrcp.pop %v310
    %v448 = vmul.f32 %v310, %v447
    %v449 = vsub.f32 1.0, %v448
    %v450 = vmul.f32 %v447, %v449
    %v451 = vadd.f32 %v447, %v450
    %vm452 = vweird.f32 %v310
    %vm453 = vweird.f32 %v447
    %vm454 = vmor %vm452, %vm453
    %v455 = vsel %vm454, %v447, %v451
    %v456 = vand.u32 2147483647, %v310
    %vm457 = vcmp.eq.f32.partialorder %v456, 8.507059e+37
    %v458 = vand.u32 %v310, 2147483648
    %v459 = vor.u32 1.1754944e-38, %v458
    %v460 = vsel %vm457, %v459, %v455
    %v461 = vmul.f32 1.0, %v460
    %v462 = vrcp.pop %v311
    %v463 = vmul.f32 %v311, %v462
    %v464 = vsub.f32 1.0, %v463
    %v465 = vmul.f32 %v462, %v464
    %v466 = vadd.f32 %v462, %v465
    %vm467 = vweird.f32 %v311
    %vm468 = vweird.f32 %v462
    %vm469 = vmor %vm467, %vm468
    %v470 = vsel %vm469, %v462, %v466
    %v471 = vand.u32 2147483647, %v311
    %vm472 = vcmp.eq.f32.partialorder %v471, 8.507059e+37
    %v473 = vand.u32 %v311, 2147483648
    %v474 = vor.u32 1.1754944e-38, %v473
    %v475 = vsel %vm472, %v474, %v470
    %v476 = vmul.f32 1.0, %v475
    %v477 = vmul.f32 %v326, %v30
    %v478 = vmul.f32 %v341, %v31
    %v479 = vmul.f32 %v356, %v32
    %v480 = vmul.f32 %v371, %v33
    %v481 = vmul.f32 %v386, %v34
    %v482 = vmul.f32 %v401, %v35
    %v483 = vmul.f32 %v416, %v36
    %v484 = vmul.f32 %v431, %v37
    %v485 = vmul.f32 %v446, %v38
    %v486 = vmul.f32 %v461, %v39
    %v487 = vmul.f32 %v476, %v40
    %v488 = vld [vmem:[%s2] sm:$0xff]
    %v489 = vld [vmem:[%s2 + $0x8] sm:$0xff]
    %v490 = vld [vmem:[%s2 + $0x10] sm:$0xff]
    %v491 = vld [vmem:[%s2 + $0x18] sm:$0xff]
    %v492 = vld [vmem:[%s2 + $0x20] sm:$0xff]
    %v493 = vld [vmem:[%s2 + $0x28] sm:$0xff]
    %v494 = vld [vmem:[%s2 + $0x30] sm:$0xff]
    %v495 = vld [vmem:[%s2 + $0x38] sm:$0xff]
    %v496 = vld [vmem:[%s2 + $0x40] sm:$0xff]
    %v497 = vld [vmem:[%s2 + $0x48] sm:$0xff]
    %v498 = vld [vmem:[%s2 + $0x50] sm:$0xff]
    %v499 = vmul.f32 %v488, %v30
    %v500 = vmul.f32 %v489, %v31
    %v501 = vmul.f32 %v490, %v32
    %v502 = vmul.f32 %v491, %v33
    %v503 = vmul.f32 %v492, %v34
    %v504 = vmul.f32 %v493, %v35
    %v505 = vmul.f32 %v494, %v36
    %v506 = vmul.f32 %v495, %v37
    %v507 = vmul.f32 %v496, %v38
    %v508 = vmul.f32 %v497, %v39
    %v509 = vmul.f32 %v498, %v40
    %v510 = vlog2.pop %v477
    %v511 = vmul.f32 %v510, 0.6931472
    %v512 = vlog2.pop %v478
    %v513 = vmul.f32 %v512, 0.6931472
    %v514 = vlog2.pop %v479
    %v515 = vmul.f32 %v514, 0.6931472
    %v516 = vlog2.pop %v480
    %v517 = vmul.f32 %v516, 0.6931472
    %v518 = vlog2.pop %v481
    %v519 = vmul.f32 %v518, 0.6931472
    %v520 = vlog2.pop %v482
    %v521 = vmul.f32 %v520, 0.6931472
    %v522 = vlog2.pop %v483
    %v523 = vmul.f32 %v522, 0.6931472
    %v524 = vlog2.pop %v484
    %v525 = vmul.f32 %v524, 0.6931472
    %v526 = vlog2.pop %v485
    %v527 = vmul.f32 %v526, 0.6931472
    %v528 = vlog2.pop %v486
    %v529 = vmul.f32 %v528, 0.6931472
    %v530 = vlog2.pop %v487
    %v531 = vmul.f32 %v530, 0.6931472
    %v532 = vmax.f32 %v511, -100.0
    %v533 = vmax.f32 %v513, -100.0
    %v534 = vmax.f32 %v515, -100.0
    %v535 = vmax.f32 %v517, -100.0
    %v536 = vmax.f32 %v519, -100.0
    %v537 = vmax.f32 %v521, -100.0
    %v538 = vmax.f32 %v523, -100.0
    %v539 = vmax.f32 %v525, -100.0
    %v540 = vmax.f32 %v527, -100.0
    %v541 = vmax.f32 %v529, -100.0
    %v542 = vmax.f32 %v531, -100.0
    %v543 = vsub.f32 1.0, %v477
    %v544 = vsub.f32 1.0, %v478
    %v545 = vsub.f32 1.0, %v479
    %v546 = vsub.f32 1.0, %v480
    %v547 = vsub.f32 1.0, %v481
    %v548 = vsub.f32 1.0, %v482
    %v549 = vsub.f32 1.0, %v483
    %v550 = vsub.f32 1.0, %v484
    %v551 = vsub.f32 1.0, %v485
    %v552 = vsub.f32 1.0, %v486
    %v553 = vsub.f32 1.0, %v487
    %v554 = vlog2.pop %v543
    %v555 = vmul.f32 %v554, 0.6931472
    %v556 = vlog2.pop %v544
    %v557 = vmul.f32 %v556, 0.6931472
    %v558 = vlog2.pop %v545
    %v559 = vmul.f32 %v558, 0.6931472
    %v560 = vlog2.pop %v546
    %v561 = vmul.f32 %v560, 0.6931472
    %v562 = vlog2.pop %v547
    %v563 = vmul.f32 %v562, 0.6931472
    %v564 = vlog2.pop %v548
    %v565 = vmul.f32 %v564, 0.6931472
    %v566 = vlog2.pop %v549
    %v567 = vmul.f32 %v566, 0.6931472
    %v568 = vlog2.pop %v550
    %v569 = vmul.f32 %v568, 0.6931472
    %v570 = vlog2.pop %v551
    %v571 = vmul.f32 %v570, 0.6931472
    %v572 = vlog2.pop %v552
    %v573 = vmul.f32 %v572, 0.6931472
    %v574 = vlog2.pop %v553
    %v575 = vmul.f32 %v574, 0.6931472
    %v576 = vmax.f32 %v555, -100.0
    %v577 = vmax.f32 %v557, -100.0
    %v578 = vmax.f32 %v559, -100.0
    %v579 = vmax.f32 %v561, -100.0
    %v580 = vmax.f32 %v563, -100.0
    %v581 = vmax.f32 %v565, -100.0
    %v582 = vmax.f32 %v567, -100.0
    %v583 = vmax.f32 %v569, -100.0
    %v584 = vmax.f32 %v571, -100.0
    %v585 = vmax.f32 %v573, -100.0
    %v586 = vmax.f32 %v575, -100.0
    %v587 = vmul.f32 %v499, %v532
    %v588 = vmul.f32 %v500, %v533
    %v589 = vmul.f32 %v501, %v534
    %v590 = vmul.f32 %v502, %v535
    %v591 = vmul.f32 %v503, %v536
    %v592 = vmul.f32 %v504, %v537
    %v593 = vmul.f32 %v505, %v538
    %v594 = vmul.f32 %v506, %v539
    %v595 = vmul.f32 %v507, %v540
    %v596 = vmul.f32 %v508, %v541
    %v597 = vmul.f32 %v509, %v542
    %v598 = vsub.f32 1.0, %v499
    %v599 = vsub.f32 1.0, %v500
    %v600 = vsub.f32 1.0, %v501
    %v601 = vsub.f32 1.0, %v502
    %v602 = vsub.f32 1.0, %v503
    %v603 = vsub.f32 1.0, %v504
    %v604 = vsub.f32 1.0, %v505
    %v605 = vsub.f32 1.0, %v506
    %v606 = vsub.f32 1.0, %v507
    %v607 = vsub.f32 1.0, %v508
    %v608 = vsub.f32 1.0, %v509
    %v609 = vmul.f32 %v598, %v576
    %v610 = vmul.f32 %v599, %v577
    %v611 = vmul.f32 %v600, %v578
    %v612 = vmul.f32 %v601, %v579
    %v613 = vmul.f32 %v602, %v580
    %v614 = vmul.f32 %v603, %v581
    %v615 = vmul.f32 %v604, %v582
    %v616 = vmul.f32 %v605, %v583
    %v617 = vmul.f32 %v606, %v584
    %v618 = vmul.f32 %v607, %v585
    %v619 = vmul.f32 %v608, %v586
    %v620 = vadd.f32 %v587, %v609
    %v621 = vadd.f32 %v588, %v610
    %v622 = vadd.f32 %v589, %v611
    %v623 = vadd.f32 %v590, %v612
    %v624 = vadd.f32 %v591, %v613
    %v625 = vadd.f32 %v592, %v614
    %v626 = vadd.f32 %v593, %v615
    %v627 = vadd.f32 %v594, %v616
    %v628 = vadd.f32 %v595, %v617
    %v629 = vadd.f32 %v596, %v618
    %v630 = vadd.f32 %v597, %v619
    %v631 = vsub.f32 0.0, %v620
    %v632 = vsub.f32 0.0, %v621
    %v633 = vsub.f32 0.0, %v622
    %v634 = vsub.f32 0.0, %v623
    %v635 = vsub.f32 0.0, %v624
    %v636 = vsub.f32 0.0, %v625
    %v637 = vsub.f32 0.0, %v626
    %v638 = vsub.f32 0.0, %v627
    %v639 = vsub.f32 0.0, %v628
    %v640 = vsub.f32 0.0, %v629
    %v641 = vsub.f32 0.0, %v630
    %vm642 = vcmask 7168
    %v643 = vsel %vm642, %v631, 0.0
    %v644 = vsel %vm642, %v632, 0.0
    %v645 = vadd.f32 %v643, %v644
    %v646 = vsel %vm642, %v633, 0.0
    %v647 = vadd.f32 %v645, %v646
    %v648 = vsel %vm642, %v634, 0.0
    %v649 = vadd.f32 %v647, %v648
    %v650 = vsel %vm642, %v635, 0.0
    %v651 = vadd.f32 %v649, %v650
    %v652 = vsel %vm642, %v636, 0.0
    %v653 = vadd.f32 %v651, %v652
    %v654 = vsel %vm642, %v637, 0.0
    %v655 = vadd.f32 %v653, %v654
    %v656 = vsel %vm642, %v638, 0.0
    %v657 = vadd.f32 %v655, %v656
    %v658 = vsel %vm642, %v639, 0.0
    %v659 = vadd.f32 %v657, %v658
    %v660 = vsel %vm642, %v640, 0.0
    %v661 = vadd.f32 %v659, %v660
    %v662 = vsel %vm642, %v641, 0.0
    %v663 = vadd.f32 %v661, %v662
    %664 = vadd.xlane.f32.xlu0 %v663
    %v665 = vpop.xlane.xlu0 %664
    %v666 = vrot.slane %v665, 4
    %v667 = vadd.f32 %v665, %v666
    %v668 = vrot.slane %v667, 2
    %v669 = vadd.f32 %v667, %v668
    %v670 = vrot.slane %v669, 1
    %v671 = vadd.f32 %v669, %v670
    %s672 = vtos %v671
    %s673 = smul.f32 %s672, 0.011363637
    %v674 = vstv %s673
    %vm675 = vcmask 0
    %676 = vst.msk [vmem:[#allocation3] sm:$0x1] %vm675, %v674
    // Predicated region
    $region30: #{_forward_core.11} parent=1 // pred_check
      _
    $region31: #{_forward_core.11} parent=1 // pred_check_branch
      %678 = sbr.rel (0) target = $region33
    $region32: #{_forward_core.11} parent=1 // pred_region
      %680 = vsyncadd [#allocation4], 0
      %s682 = sshll.u32 [#allocation3], 4
      %s683 = int_to_ptr.vmem [resolvable:$true] %s682
      %s684 = sshll.u32 %s7, 4
      %s685 = int_to_ptr.hbm [resolvable:$true] %s684
      %687 = dma.vmem_to_hbm [thread:$0]  %s683, 16, %s685, [#allocation4]
    $region33: #{_forward_core.11} parent=1 // pred_fallthru
      _
    // Predicated region
    $region34: #{_forward_core.11} parent=1 // pred_check
      _
    $region35: #{_forward_core.11} parent=1 // pred_check_branch
      %689 = sbr.rel (0) target = $region37
    $region36: #{_forward_core.11} parent=1 // pred_region
      %691 = dma.done [#allocation4], 16
    $region37: #{_forward_core.11} parent=1 // pred_fallthru
      _
    %692 = vsyncpa [#allocation4], 1

// kernel: _forward_core.10
$region0: #{_forward_core.10}
  #allocation0 [shape = 'u32[]', space=smem, size = 0x4, offset = 0x4, fixed_abs, tag = 'smem constant byte address 0x4 - core index']
  #allocation1 [shape = 'u32[72,128]{1,0:T(1,128)}', space=vmem, size = 0x9000, scoped, tag = 'internal scratch']
  #allocation2 [shape = 'f32[2,22,16]{2,1,0:T(8,128)}', space=vmem, size = 0x6000, scoped, tag = 'scratch operand']
  %s0 = inlined_call_operand.vmem [shape: f32[4,22,48], index: 0, kind: input, shape index: {}]
  %s1 = inlined_call_operand.vmem [shape: f32[2,22,16], index: 1, kind: input, shape index: {}]
  %s2 = inlined_call_operand.vmem [shape: bf16[2,16,48], index: 2, kind: input, shape index: {}]
  %s3 = inlined_call_operand.vmem [shape: f32[2,1,48], index: 3, kind: input, shape index: {}]
  %s4 = inlined_call_operand.vmem [shape: bf16[1,16,48], index: 4, kind: input, shape index: {}]
  %s5 = inlined_call_operand.vmem [shape: f32[1,1,48], index: 5, kind: input, shape index: {}]
  %s6 = inlined_call_operand.vmem [shape: f32[4,22,16], index: 6, kind: output, shape index: {}]
  %s7 = sld [smem:[#allocation0]]
  $region38: #{_forward_core.10} parent=0
    _
  %s9 = ssub.s32 1, %s7
  %s10 = scalar_select 0, %s9, %s7
  // Predicated region
  $region2: #{_forward_core.10} parent=0 // pred_check
    _
  $region3: #{_forward_core.10} parent=0 // pred_check_branch
    %12 = sbr.rel (0) target = $region5
  $region4: #{_forward_core.10} parent=0 // pred_region
    _
  $region5: #{_forward_core.10} parent=0 // pred_fallthru
    _
  // Predicated region
  $region6: #{_forward_core.10} parent=0 // pred_check
    _
  $region7: #{_forward_core.10} parent=0 // pred_check_branch
    %14 = sbr.rel (0) target = $region9
  $region8: #{_forward_core.10} parent=0 // pred_region
    _
  $region9: #{_forward_core.10} parent=0 // pred_fallthru
    _
  // Predicated region
  $region10: #{_forward_core.10} parent=0 // pred_check
    _
  $region11: #{_forward_core.10} parent=0 // pred_check_branch
    %16 = sbr.rel (0) target = $region13
  $region12: #{_forward_core.10} parent=0 // pred_region
    _
  $region13: #{_forward_core.10} parent=0 // pred_fallthru
    _
  // Predicated region
  $region14: #{_forward_core.10} parent=0 // pred_check
    _
  $region15: #{_forward_core.10} parent=0 // pred_check_branch
    %18 = sbr.rel (0) target = $region17
  $region16: #{_forward_core.10} parent=0 // pred_region
    _
  $region17: #{_forward_core.10} parent=0 // pred_fallthru
    _
  // Predicated region
  $region18: #{_forward_core.10} parent=0 // pred_check
    _
  $region19: #{_forward_core.10} parent=0 // pred_check_branch
    %20 = sbr.rel (0) target = $region21
  $region20: #{_forward_core.10} parent=0 // pred_region
    _
  $region21: #{_forward_core.10} parent=0 // pred_fallthru
    _
  // Predicated region
  $region22: #{_forward_core.10} parent=0 // pred_check
    _
  $region23: #{_forward_core.10} parent=0 // pred_check_branch
    %22 = sbr.rel (0) target = $region25
  $region24: #{_forward_core.10} parent=0 // pred_region
    _
  $region25: #{_forward_core.10} parent=0 // pred_fallthru
    _
  %p24 = scmp.eq.s32.totalorder 0, 0
  // Predicated region
  $region26: #{_forward_core.10} parent=0 // pred_check
    %p25 = pneg %p24
  $region27: #{_forward_core.10} parent=0 // pred_check_branch
    %27 = sbr.rel (%p25) target = $region29
  $region28: #{_forward_core.10} parent=0 // pred_region
    %v28 = vld [vmem:[%s1] sm:$0xff]
    %v29 = vld [vmem:[%s1 + $0x8] sm:$0xff]
    %v30 = vld [vmem:[%s1 + $0x10] sm:$0x3f]
    %v31 = vld [vmem:[%s1 + $0x18] sm:$0xff]
    %v32 = vld [vmem:[%s1 + $0x20] sm:$0xff]
    %v33 = vld [vmem:[%s1 + $0x28] sm:$0x3f]
    %vm34 = vcmask 130048
    %35 = vst.msk [vmem:[#allocation2] sm:$0xff] %vm34, %v28
    %36 = vst.msk [vmem:[#allocation2 + $0x8] sm:$0xff] %vm34, %v29
    %vm37 = vcmask 128000
    %38 = vst.msk [vmem:[#allocation2 + $0x10] sm:$0x3f] %vm37, %v30
    %39 = vst.msk [vmem:[#allocation2 + $0x18] sm:$0xff] %vm34, %v31
    %40 = vst.msk [vmem:[#allocation2 + $0x20] sm:$0xff] %vm34, %v32
    %41 = vst.msk [vmem:[#allocation2 + $0x28] sm:$0x3f] %vm37, %v33
  $region29: #{_forward_core.10} parent=0 // pred_fallthru
    _
  %v42 = vld [vmem:[%s2] sm:$0xf]
  %v43 = vld [vmem:[%s2 + $0x4] sm:$0xf]
  %s44 = scalar_lea.vmem %s2, 8
  %v45 = vld [vmem:[%s44] sm:$0xf]
  %v46 = vld [vmem:[%s44 + $0x4] sm:$0xf]
  %v47 = vld [vmem:[%s3] sm:$0x1]
  %s48 = scalar_lea.vmem %s3, 1
  %v49 = vld [vmem:[%s48] sm:$0x1]
  %v50 = vld [vmem:[%s4] sm:$0xf]
  %v51 = vld [vmem:[%s4 + $0x4] sm:$0xf]
  %v52 = vld [vmem:[%s5] sm:$0x1]
  %v53 = vld [vmem:[#allocation2] sm:$0xff]
  %v54 = vld [vmem:[#allocation2 + $0x8] sm:$0xff]
  %v55 = vld [vmem:[#allocation2 + $0x10] sm:$0x3f]
  %s56 = scalar_lea.vmem [#allocation2], 24
  %v57 = vld [vmem:[%s56] sm:$0xff]
  %v58 = vld [vmem:[%s56 + $0x8] sm:$0xff]
  %v59 = vld [vmem:[%s56 + $0x10] sm:$0x3f]
  %v60 = vld [vmem:[%s0] sm:$0xff]
  %v61 = vld [vmem:[%s0 + $0x8] sm:$0xff]
  %v62 = vld [vmem:[%s0 + $0x10] sm:$0x3f]
  %v63 = vpack.c.bf16 %v54, %v53
  %v64 = vpack.c.bf16 %v55, %v55
  %v66 = vperm.slane %v47, 0
  %v70 = vunpack.c.l.b16 %v42
  %v71 = vunpack.c.l.b16 %v43
  %v72 = vpack.c.b16 %v71, %v70
  %vm74 = vcmask 130048
  %v76 = vsel %vm74, %v63, 0
  %v79 = vsel %vm74, %v64, 0
  %81 = vmatpush.bf16.msra.mxu0 0
  %82 = vmatpush.bf16.msra.mxu0 0
  %83 = vmatpush.bf16.msra.mxu0 0
  %84 = vmatpush.bf16.msra.mxu0 0
  %85 = vmatpush.bf16.msra.mxu0 0
  %86 = vmatpush.bf16.msra.mxu0 0
  %87 = vmatpush.bf16.msra.mxu0 0
  %88 = vmatpush.bf16.msra.mxu0 %v72
  %89 = vmatmul.bf16.gmra.mxu0 %v76
  %v90 = vpop.f32.mrf.mxu0
  %v91 = vadd.f32 %v66, %v90
  %v92 = vpop.f32.mrf.mxu0
  %v93 = vadd.f32 %v66, %v92
  %94 = vmatmul.bf16.gmra.mxu0 %v79
  %v95 = vpop.f32.mrf.mxu0
  %v96 = vadd.f32 %v66, %v95
  %v97 = vpop.f32.mrf.mxu0
  %98 = vdwg.mxu0
  %v99 = vadd.f32 %v60, %v91
  %v100 = vadd.f32 %v61, %v93
  %v101 = vadd.f32 %v62, %v96
  %v102 = vxor.u32 %v99, 2147483648
  %v103 = vxor.u32 %v100, 2147483648
  %v104 = vxor.u32 %v101, 2147483648
  %v105 = vmul.f32 %v102, 1.442695
  %v106 = vpow.pop %v105
  %v107 = vmul.f32 %v103, 1.442695
  %v108 = vpow.pop %v107
  %v109 = vmul.f32 %v104, 1.442695
  %v110 = vpow.pop %v109
  %v111 = vadd.f32 %v106, 1.0
  %v112 = vadd.f32 %v108, 1.0
  %v113 = vadd.f32 %v110, 1.0
  %v114 = vrcp.pop %v111
  %v115 = vmul.f32 %v111, %v114
  %v116 = vsub.f32 1.0, %v115
  %v117 = vmul.f32 %v114, %v116
  %v118 = vadd.f32 %v114, %v117
  %vm119 = vweird.f32 %v111
  %vm120 = vweird.f32 %v114
  %vm121 = vmor %vm119, %vm120
  %v122 = vsel %vm121, %v114, %v118
  %v123 = vand.u32 2147483647, %v111
  %vm124 = vcmp.eq.f32.partialorder %v123, 8.507059e+37
  %v125 = vand.u32 %v111, 2147483648
  %v126 = vor.u32 1.1754944e-38, %v125
  %v127 = vsel %vm124, %v126, %v122
  %v128 = vmul.f32 1.0, %v127
  %v129 = vrcp.pop %v112
  %v130 = vmul.f32 %v112, %v129
  %v131 = vsub.f32 1.0, %v130
  %v132 = vmul.f32 %v129, %v131
  %v133 = vadd.f32 %v129, %v132
  %vm134 = vweird.f32 %v112
  %vm135 = vweird.f32 %v129
  %vm136 = vmor %vm134, %vm135
  %v137 = vsel %vm136, %v129, %v133
  %v138 = vand.u32 2147483647, %v112
  %vm139 = vcmp.eq.f32.partialorder %v138, 8.507059e+37
  %v140 = vand.u32 %v112, 2147483648
  %v141 = vor.u32 1.1754944e-38, %v140
  %v142 = vsel %vm139, %v141, %v137
  %v143 = vmul.f32 1.0, %v142
  %v144 = vrcp.pop %v113
  %v145 = vmul.f32 %v113, %v144
  %v146 = vsub.f32 1.0, %v145
  %v147 = vmul.f32 %v144, %v146
  %v148 = vadd.f32 %v144, %v147
  %vm149 = vweird.f32 %v113
  %vm150 = vweird.f32 %v144
  %vm151 = vmor %vm149, %vm150
  %v152 = vsel %vm151, %v144, %v148
  %v153 = vand.u32 2147483647, %v113
  %vm154 = vcmp.eq.f32.partialorder %v153, 8.507059e+37
  %v155 = vand.u32 %v113, 2147483648
  %v156 = vor.u32 1.1754944e-38, %v155
  %v157 = vsel %vm154, %v156, %v152
  %v158 = vmul.f32 1.0, %v157
  %162 = vrot.lane.b32.xlu0 %v91, 96
  %v163 = vpop.permute.xlu0 %162
  %164 = vrot.lane.b32.xlu0 %v93, 96
  %v165 = vpop.permute.xlu0 %164
  %166 = vrot.lane.b32.xlu0 %v96, 96
  %v167 = vpop.permute.xlu0 %166
  %v171 = vmul.f32 %v128, %v163
  %v172 = vmul.f32 %v143, %v165
  %v173 = vmul.f32 %v158, %v167
  %177 = vrot.lane.b32.xlu0 %v171, 32
  %v178 = vpop.permute.xlu0 %177
  %179 = vrot.lane.b32.xlu0 %v172, 32
  %v180 = vpop.permute.xlu0 %179
  %181 = vrot.lane.b32.xlu0 %v173, 32
  %v182 = vpop.permute.xlu0 %181
  %v186 = vadd.f32 %v60, %v178
  %v187 = vadd.f32 %v61, %v180
  %v188 = vadd.f32 %v62, %v182
  %v189 = vtanh.pop %v186
  %v190 = vtanh.pop %v187
  %v191 = vtanh.pop %v188
  %v192 = vsub.f32 1.0, %v128
  %v193 = vsub.f32 1.0, %v143
  %v194 = vsub.f32 1.0, %v158
  %198 = vrot.lane.b32.xlu0 %v189, 112
  %v199 = vpop.permute.xlu0 %198
  %200 = vrot.lane.b32.xlu0 %v190, 112
  %v201 = vpop.permute.xlu0 %200
  %202 = vrot.lane.b32.xlu0 %v191, 112
  %v203 = vpop.permute.xlu0 %202
  %v207 = vmul.f32 %v192, %v199
  %v208 = vmul.f32 %v193, %v201
  %v209 = vmul.f32 %v194, %v203
  %213 = vrot.lane.b32.xlu0 %v53, 16
  %v214 = vpop.permute.xlu0 %213
  %215 = vrot.lane.b32.xlu0 %v54, 16
  %v216 = vpop.permute.xlu0 %215
  %217 = vrot.lane.b32.xlu0 %v55, 16
  %v218 = vpop.permute.xlu0 %217
  %v222 = vmul.f32 %v128, %v214
  %v223 = vmul.f32 %v143, %v216
  %v224 = vmul.f32 %v158, %v218
  %v225 = vadd.f32 %v207, %v222
  %v226 = vadd.f32 %v208, %v223
  %v227 = vadd.f32 %v209, %v224
  %v228 = vpack.c.bf16 %v226, %v225
  %v229 = vpack.c.bf16 %v227, %v227
  %v231 = vperm.slane %v52, 0
  %235 = vrot.lane.b32.xlu0 %v228, 112
  %v236 = vpop.permute.xlu0 %235
  %237 = vrot.lane.b32.xlu0 %v229, 112
  %v238 = vpop.permute.xlu0 %237
  %v241 = vunpack.c.l.b16 %v50
  %v242 = vunpack.c.l.b16 %v51
  %v243 = vpack.c.b16 %v242, %v241
  %v246 = vsel %vm74, %v236, 0
  %v249 = vsel %vm74, %v238, 0
  %251 = vmatpush.bf16.msra.mxu0 0
  %252 = vmatpush.bf16.msra.mxu0 0
  %253 = vmatpush.bf16.msra.mxu0 0
  %254 = vmatpush.bf16.msra.mxu0 0
  %255 = vmatpush.bf16.msra.mxu0 0
  %256 = vmatpush.bf16.msra.mxu0 0
  %257 = vmatpush.bf16.msra.mxu0 0
  %258 = vmatpush.bf16.msra.mxu0 %v243
  %259 = vmatmul.bf16.gmra.mxu0 %v246
  %v260 = vpop.f32.mrf.mxu0
  %v261 = vadd.f32 %v231, %v260
  %v262 = vpop.f32.mrf.mxu0
  %v263 = vadd.f32 %v231, %v262
  %264 = vmatmul.bf16.gmra.mxu0 %v249
  %v265 = vpop.f32.mrf.mxu0
  %v266 = vadd.f32 %v231, %v265
  %v267 = vpop.f32.mrf.mxu0
  %268 = vdwg.mxu0
  %v269 = vpack.c.bf16 %v58, %v57
  %v270 = vpack.c.bf16 %v59, %v59
  %v272 = vperm.slane %v49, 0
  %v276 = vunpack.c.l.b16 %v45
  %v277 = vunpack.c.l.b16 %v46
  %v278 = vpack.c.b16 %v277, %v276
  %v281 = vsel %vm74, %v269, 0
  %v284 = vsel %vm74, %v270, 0
  %286 = vmatpush.bf16.msra.mxu0 0
  %287 = vmatpush.bf16.msra.mxu0 0
  %288 = vmatpush.bf16.msra.mxu0 0
  %289 = vmatpush.bf16.msra.mxu0 0
  %290 = vmatpush.bf16.msra.mxu0 0
  %291 = vmatpush.bf16.msra.mxu0 0
  %292 = vmatpush.bf16.msra.mxu0 0
  %293 = vmatpush.bf16.msra.mxu0 %v278
  %294 = vmatmul.bf16.gmra.mxu0 %v281
  %v295 = vpop.f32.mrf.mxu0
  %v296 = vadd.f32 %v272, %v295
  %v297 = vpop.f32.mrf.mxu0
  %v298 = vadd.f32 %v272, %v297
  %299 = vmatmul.bf16.gmra.mxu0 %v284
  %v300 = vpop.f32.mrf.mxu0
  %v301 = vadd.f32 %v272, %v300
  %v302 = vpop.f32.mrf.mxu0
  %303 = vdwg.mxu0
  %v304 = vadd.f32 %v261, %v296
  %v305 = vadd.f32 %v263, %v298
  %v306 = vadd.f32 %v266, %v301
  %v307 = vxor.u32 %v304, 2147483648
  %v308 = vxor.u32 %v305, 2147483648
  %v309 = vxor.u32 %v306, 2147483648
  %v310 = vmul.f32 %v307, 1.442695
  %v311 = vpow.pop %v310
  %v312 = vmul.f32 %v308, 1.442695
  %v313 = vpow.pop %v312
  %v314 = vmul.f32 %v309, 1.442695
  %v315 = vpow.pop %v314
  %v316 = vadd.f32 %v311, 1.0
  %v317 = vadd.f32 %v313, 1.0
  %v318 = vadd.f32 %v315, 1.0
  %v319 = vrcp.pop %v316
  %v320 = vmul.f32 %v316, %v319
  %v321 = vsub.f32 1.0, %v320
  %v322 = vmul.f32 %v319, %v321
  %v323 = vadd.f32 %v319, %v322
  %vm324 = vweird.f32 %v316
  %vm325 = vweird.f32 %v319
  %vm326 = vmor %vm324, %vm325
  %v327 = vsel %vm326, %v319, %v323
  %v328 = vand.u32 2147483647, %v316
  %vm329 = vcmp.eq.f32.partialorder %v328, 8.507059e+37
  %v330 = vand.u32 %v316, 2147483648
  %v331 = vor.u32 1.1754944e-38, %v330
  %v332 = vsel %vm329, %v331, %v327
  %v333 = vmul.f32 1.0, %v332
  %v334 = vrcp.pop %v317
  %v335 = vmul.f32 %v317, %v334
  %v336 = vsub.f32 1.0, %v335
  %v337 = vmul.f32 %v334, %v336
  %v338 = vadd.f32 %v334, %v337
  %vm339 = vweird.f32 %v317
  %vm340 = vweird.f32 %v334
  %vm341 = vmor %vm339, %vm340
  %v342 = vsel %vm341, %v334, %v338
  %v343 = vand.u32 2147483647, %v317
  %vm344 = vcmp.eq.f32.partialorder %v343, 8.507059e+37
  %v345 = vand.u32 %v317, 2147483648
  %v346 = vor.u32 1.1754944e-38, %v345
  %v347 = vsel %vm344, %v346, %v342
  %v348 = vmul.f32 1.0, %v347
  %v349 = vrcp.pop %v318
  %v350 = vmul.f32 %v318, %v349
  %v351 = vsub.f32 1.0, %v350
  %v352 = vmul.f32 %v349, %v351
  %v353 = vadd.f32 %v349, %v352
  %vm354 = vweird.f32 %v318
  %vm355 = vweird.f32 %v349
  %vm356 = vmor %vm354, %vm355
  %v357 = vsel %vm356, %v349, %v353
  %v358 = vand.u32 2147483647, %v318
  %vm359 = vcmp.eq.f32.partialorder %v358, 8.507059e+37
  %v360 = vand.u32 %v318, 2147483648
  %v361 = vor.u32 1.1754944e-38, %v360
  %v362 = vsel %vm359, %v361, %v357
  %v363 = vmul.f32 1.0, %v362
  %367 = vrot.lane.b32.xlu0 %v296, 96
  %v368 = vpop.permute.xlu0 %367
  %369 = vrot.lane.b32.xlu0 %v298, 96
  %v370 = vpop.permute.xlu0 %369
  %371 = vrot.lane.b32.xlu0 %v301, 96
  %v372 = vpop.permute.xlu0 %371
  %v376 = vmul.f32 %v333, %v368
  %v377 = vmul.f32 %v348, %v370
  %v378 = vmul.f32 %v363, %v372
  %382 = vrot.lane.b32.xlu0 %v376, 32
  %v383 = vpop.permute.xlu0 %382
  %384 = vrot.lane.b32.xlu0 %v377, 32
  %v385 = vpop.permute.xlu0 %384
  %386 = vrot.lane.b32.xlu0 %v378, 32
  %v387 = vpop.permute.xlu0 %386
  %v391 = vadd.f32 %v261, %v383
  %v392 = vadd.f32 %v263, %v385
  %v393 = vadd.f32 %v266, %v387
  %v394 = vtanh.pop %v391
  %v395 = vtanh.pop %v392
  %v396 = vtanh.pop %v393
  %v397 = vsub.f32 1.0, %v333
  %v398 = vsub.f32 1.0, %v348
  %v399 = vsub.f32 1.0, %v363
  %403 = vrot.lane.b32.xlu0 %v394, 112
  %v404 = vpop.permute.xlu0 %403
  %405 = vrot.lane.b32.xlu0 %v395, 112
  %v406 = vpop.permute.xlu0 %405
  %407 = vrot.lane.b32.xlu0 %v396, 112
  %v408 = vpop.permute.xlu0 %407
  %v412 = vmul.f32 %v397, %v404
  %v413 = vmul.f32 %v398, %v406
  %v414 = vmul.f32 %v399, %v408
  %418 = vrot.lane.b32.xlu0 %v57, 16
  %v419 = vpop.permute.xlu0 %418
  %420 = vrot.lane.b32.xlu0 %v58, 16
  %v421 = vpop.permute.xlu0 %420
  %422 = vrot.lane.b32.xlu0 %v59, 16
  %v423 = vpop.permute.xlu0 %422
  %v427 = vmul.f32 %v333, %v419
  %v428 = vmul.f32 %v348, %v421
  %v429 = vmul.f32 %v363, %v423
  %v430 = vadd.f32 %v412, %v427
  %v431 = vadd.f32 %v413, %v428
  %v432 = vadd.f32 %v414, %v429
  %436 = vrot.lane.b32.xlu0 %v430, 112
  %v437 = vpop.permute.xlu0 %436
  %438 = vrot.lane.b32.xlu0 %v431, 112
  %v439 = vpop.permute.xlu0 %438
  %440 = vrot.lane.b32.xlu0 %v432, 112
  %v441 = vpop.permute.xlu0 %440
  %445 = vst.msk [vmem:[%s6] sm:$0xff] %vm74, %v437
  %446 = vst.msk [vmem:[%s6 + $0x8] sm:$0xff] %vm74, %v439
  %vm447 = vcmask 128000
  %448 = vst.msk [vmem:[%s6 + $0x10] sm:$0x3f] %vm447, %v441
  %s449 = scalar_lea.vmem %s0, 24
  %v450 = vld [vmem:[%s449] sm:$0xff]
  %v451 = vld [vmem:[%s449 + $0x8] sm:$0xff]
  %v452 = vld [vmem:[%s449 + $0x10] sm:$0x3f]
  %453 = vmatpush.bf16.msra.mxu0 0
  %454 = vmatpush.bf16.msra.mxu0 0
  %455 = vmatpush.bf16.msra.mxu0 0
  %456 = vmatpush.bf16.msra.mxu0 0
  %457 = vmatpush.bf16.msra.mxu0 0
  %458 = vmatpush.bf16.msra.mxu0 0
  %459 = vmatpush.bf16.msra.mxu0 0
  %460 = vmatpush.bf16.msra.mxu0 %v72
  %461 = vmatmul.bf16.gmra.mxu0 %v246
  %v462 = vpop.f32.mrf.mxu0
  %v463 = vadd.f32 %v66, %v462
  %v464 = vpop.f32.mrf.mxu0
  %v465 = vadd.f32 %v66, %v464
  %466 = vmatmul.bf16.gmra.mxu0 %v249
  %v467 = vpop.f32.mrf.mxu0
  %v468 = vadd.f32 %v66, %v467
  %v469 = vpop.f32.mrf.mxu0
  %470 = vdwg.mxu0
  %v471 = vadd.f32 %v450, %v463
  %v472 = vadd.f32 %v451, %v465
  %v473 = vadd.f32 %v452, %v468
  %v474 = vxor.u32 %v471, 2147483648
  %v475 = vxor.u32 %v472, 2147483648
  %v476 = vxor.u32 %v473, 2147483648
  %v477 = vmul.f32 %v474, 1.442695
  %v478 = vpow.pop %v477
  %v479 = vmul.f32 %v475, 1.442695
  %v480 = vpow.pop %v479
  %v481 = vmul.f32 %v476, 1.442695
  %v482 = vpow.pop %v481
  %v483 = vadd.f32 %v478, 1.0
  %v484 = vadd.f32 %v480, 1.0
  %v485 = vadd.f32 %v482, 1.0
  %v486 = vrcp.pop %v483
  %v487 = vmul.f32 %v483, %v486
  %v488 = vsub.f32 1.0, %v487
  %v489 = vmul.f32 %v486, %v488
  %v490 = vadd.f32 %v486, %v489
  %vm491 = vweird.f32 %v483
  %vm492 = vweird.f32 %v486
  %vm493 = vmor %vm491, %vm492
  %v494 = vsel %vm493, %v486, %v490
  %v495 = vand.u32 2147483647, %v483
  %vm496 = vcmp.eq.f32.partialorder %v495, 8.507059e+37
  %v497 = vand.u32 %v483, 2147483648
  %v498 = vor.u32 1.1754944e-38, %v497
  %v499 = vsel %vm496, %v498, %v494
  %v500 = vmul.f32 1.0, %v499
  %v501 = vrcp.pop %v484
  %v502 = vmul.f32 %v484, %v501
  %v503 = vsub.f32 1.0, %v502
  %v504 = vmul.f32 %v501, %v503
  %v505 = vadd.f32 %v501, %v504
  %vm506 = vweird.f32 %v484
  %vm507 = vweird.f32 %v501
  %vm508 = vmor %vm506, %vm507
  %v509 = vsel %vm508, %v501, %v505
  %v510 = vand.u32 2147483647, %v484
  %vm511 = vcmp.eq.f32.partialorder %v510, 8.507059e+37
  %v512 = vand.u32 %v484, 2147483648
  %v513 = vor.u32 1.1754944e-38, %v512
  %v514 = vsel %vm511, %v513, %v509
  %v515 = vmul.f32 1.0, %v514
  %v516 = vrcp.pop %v485
  %v517 = vmul.f32 %v485, %v516
  %v518 = vsub.f32 1.0, %v517
  %v519 = vmul.f32 %v516, %v518
  %v520 = vadd.f32 %v516, %v519
  %vm521 = vweird.f32 %v485
  %vm522 = vweird.f32 %v516
  %vm523 = vmor %vm521, %vm522
  %v524 = vsel %vm523, %v516, %v520
  %v525 = vand.u32 2147483647, %v485
  %vm526 = vcmp.eq.f32.partialorder %v525, 8.507059e+37
  %v527 = vand.u32 %v485, 2147483648
  %v528 = vor.u32 1.1754944e-38, %v527
  %v529 = vsel %vm526, %v528, %v524
  %v530 = vmul.f32 1.0, %v529
  %534 = vrot.lane.b32.xlu0 %v463, 96
  %v535 = vpop.permute.xlu0 %534
  %536 = vrot.lane.b32.xlu0 %v465, 96
  %v537 = vpop.permute.xlu0 %536
  %538 = vrot.lane.b32.xlu0 %v468, 96
  %v539 = vpop.permute.xlu0 %538
  %v543 = vmul.f32 %v500, %v535
  %v544 = vmul.f32 %v515, %v537
  %v545 = vmul.f32 %v530, %v539
  %549 = vrot.lane.b32.xlu0 %v543, 32
  %v550 = vpop.permute.xlu0 %549
  %551 = vrot.lane.b32.xlu0 %v544, 32
  %v552 = vpop.permute.xlu0 %551
  %553 = vrot.lane.b32.xlu0 %v545, 32
  %v554 = vpop.permute.xlu0 %553
  %v558 = vadd.f32 %v450, %v550
  %v559 = vadd.f32 %v451, %v552
  %v560 = vadd.f32 %v452, %v554
  %v561 = vtanh.pop %v558
  %v562 = vtanh.pop %v559
  %v563 = vtanh.pop %v560
  %v564 = vsub.f32 1.0, %v500
  %v565 = vsub.f32 1.0, %v515
  %v566 = vsub.f32 1.0, %v530
  %570 = vrot.lane.b32.xlu0 %v561, 112
  %v571 = vpop.permute.xlu0 %570
  %572 = vrot.lane.b32.xlu0 %v562, 112
  %v573 = vpop.permute.xlu0 %572
  %574 = vrot.lane.b32.xlu0 %v563, 112
  %v575 = vpop.permute.xlu0 %574
  %v579 = vmul.f32 %v564, %v571
  %v580 = vmul.f32 %v565, %v573
  %v581 = vmul.f32 %v566, %v575
  %v582 = vmul.f32 %v500, %v225
  %v583 = vmul.f32 %v515, %v226
  %v584 = vmul.f32 %v530, %v227
  %v585 = vadd.f32 %v579, %v582
  %v586 = vadd.f32 %v580, %v583
  %v587 = vadd.f32 %v581, %v584
  %v588 = vpack.c.bf16 %v586, %v585
  %v589 = vpack.c.bf16 %v587, %v587
  %592 = vrot.lane.b32.xlu0 %v588, 112
  %v593 = vpop.permute.xlu0 %592
  %594 = vrot.lane.b32.xlu0 %v589, 112
  %v595 = vpop.permute.xlu0 %594
  %v597 = vsel %vm74, %v593, 0
  %v600 = vsel %vm74, %v595, 0
  %602 = vmatpush.bf16.msra.mxu0 0
  %603 = vmatpush.bf16.msra.mxu0 0
  %604 = vmatpush.bf16.msra.mxu0 0
  %605 = vmatpush.bf16.msra.mxu0 0
  %606 = vmatpush.bf16.msra.mxu0 0
  %607 = vmatpush.bf16.msra.mxu0 0
  %608 = vmatpush.bf16.msra.mxu0 0
  %609 = vmatpush.bf16.msra.mxu0 %v243
  %610 = vmatmul.bf16.gmra.mxu0 %v597
  %v611 = vpop.f32.mrf.mxu0
  %v612 = vadd.f32 %v231, %v611
  %v613 = vpop.f32.mrf.mxu0
  %v614 = vadd.f32 %v231, %v613
  %615 = vmatmul.bf16.gmra.mxu0 %v600
  %v616 = vpop.f32.mrf.mxu0
  %v617 = vadd.f32 %v231, %v616
  %v618 = vpop.f32.mrf.mxu0
  %619 = vdwg.mxu0
  %v620 = vpack.c.bf16 %v431, %v430
  %v621 = vpack.c.bf16 %v432, %v432
  %624 = vrot.lane.b32.xlu0 %v620, 112
  %v625 = vpop.permute.xlu0 %624
  %626 = vrot.lane.b32.xlu0 %v621, 112
  %v627 = vpop.permute.xlu0 %626
  %v629 = vsel %vm74, %v625, 0
  %v632 = vsel %vm74, %v627, 0
  %634 = vmatpush.bf16.msra.mxu0 0
  %635 = vmatpush.bf16.msra.mxu0 0
  %636 = vmatpush.bf16.msra.mxu0 0
  %637 = vmatpush.bf16.msra.mxu0 0
  %638 = vmatpush.bf16.msra.mxu0 0
  %639 = vmatpush.bf16.msra.mxu0 0
  %640 = vmatpush.bf16.msra.mxu0 0
  %641 = vmatpush.bf16.msra.mxu0 %v278
  %642 = vmatmul.bf16.gmra.mxu0 %v629
  %v643 = vpop.f32.mrf.mxu0
  %v644 = vadd.f32 %v272, %v643
  %v645 = vpop.f32.mrf.mxu0
  %v646 = vadd.f32 %v272, %v645
  %647 = vmatmul.bf16.gmra.mxu0 %v632
  %v648 = vpop.f32.mrf.mxu0
  %v649 = vadd.f32 %v272, %v648
  %v650 = vpop.f32.mrf.mxu0
  %651 = vdwg.mxu0
  %v652 = vadd.f32 %v612, %v644
  %v653 = vadd.f32 %v614, %v646
  %v654 = vadd.f32 %v617, %v649
  %v655 = vxor.u32 %v652, 2147483648
  %v656 = vxor.u32 %v653, 2147483648
  %v657 = vxor.u32 %v654, 2147483648
  %v658 = vmul.f32 %v655, 1.442695
  %v659 = vpow.pop %v658
  %v660 = vmul.f32 %v656, 1.442695
  %v661 = vpow.pop %v660
  %v662 = vmul.f32 %v657, 1.442695
  %v663 = vpow.pop %v662
  %v664 = vadd.f32 %v659, 1.0
  %v665 = vadd.f32 %v661, 1.0
  %v666 = vadd.f32 %v663, 1.0
  %v667 = vrcp.pop %v664
  %v668 = vmul.f32 %v664, %v667
  %v669 = vsub.f32 1.0, %v668
  %v670 = vmul.f32 %v667, %v669
  %v671 = vadd.f32 %v667, %v670
  %vm672 = vweird.f32 %v664
  %vm673 = vweird.f32 %v667
  %vm674 = vmor %vm672, %vm673
  %v675 = vsel %vm674, %v667, %v671
  %v676 = vand.u32 2147483647, %v664
  %vm677 = vcmp.eq.f32.partialorder %v676, 8.507059e+37
  %v678 = vand.u32 %v664, 2147483648
  %v679 = vor.u32 1.1754944e-38, %v678
  %v680 = vsel %vm677, %v679, %v675
  %v681 = vmul.f32 1.0, %v680
  %v682 = vrcp.pop %v665
  %v683 = vmul.f32 %v665, %v682
  %v684 = vsub.f32 1.0, %v683
  %v685 = vmul.f32 %v682, %v684
  %v686 = vadd.f32 %v682, %v685
  %vm687 = vweird.f32 %v665
  %vm688 = vweird.f32 %v682
  %vm689 = vmor %vm687, %vm688
  %v690 = vsel %vm689, %v682, %v686
  %v691 = vand.u32 2147483647, %v665
  %vm692 = vcmp.eq.f32.partialorder %v691, 8.507059e+37
  %v693 = vand.u32 %v665, 2147483648
  %v694 = vor.u32 1.1754944e-38, %v693
  %v695 = vsel %vm692, %v694, %v690
  %v696 = vmul.f32 1.0, %v695
  %v697 = vrcp.pop %v666
  %v698 = vmul.f32 %v666, %v697
  %v699 = vsub.f32 1.0, %v698
  %v700 = vmul.f32 %v697, %v699
  %v701 = vadd.f32 %v697, %v700
  %vm702 = vweird.f32 %v666
  %vm703 = vweird.f32 %v697
  %vm704 = vmor %vm702, %vm703
  %v705 = vsel %vm704, %v697, %v701
  %v706 = vand.u32 2147483647, %v666
  %vm707 = vcmp.eq.f32.partialorder %v706, 8.507059e+37
  %v708 = vand.u32 %v666, 2147483648
  %v709 = vor.u32 1.1754944e-38, %v708
  %v710 = vsel %vm707, %v709, %v705
  %v711 = vmul.f32 1.0, %v710
  %715 = vrot.lane.b32.xlu0 %v644, 96
  %v716 = vpop.permute.xlu0 %715
  %717 = vrot.lane.b32.xlu0 %v646, 96
  %v718 = vpop.permute.xlu0 %717
  %719 = vrot.lane.b32.xlu0 %v649, 96
  %v720 = vpop.permute.xlu0 %719
  %v724 = vmul.f32 %v681, %v716
  %v725 = vmul.f32 %v696, %v718
  %v726 = vmul.f32 %v711, %v720
  %730 = vrot.lane.b32.xlu0 %v724, 32
  %v731 = vpop.permute.xlu0 %730
  %732 = vrot.lane.b32.xlu0 %v725, 32
  %v733 = vpop.permute.xlu0 %732
  %734 = vrot.lane.b32.xlu0 %v726, 32
  %v735 = vpop.permute.xlu0 %734
  %v739 = vadd.f32 %v612, %v731
  %v740 = vadd.f32 %v614, %v733
  %v741 = vadd.f32 %v617, %v735
  %v742 = vtanh.pop %v739
  %v743 = vtanh.pop %v740
  %v744 = vtanh.pop %v741
  %v745 = vsub.f32 1.0, %v681
  %v746 = vsub.f32 1.0, %v696
  %v747 = vsub.f32 1.0, %v711
  %751 = vrot.lane.b32.xlu0 %v742, 112
  %v752 = vpop.permute.xlu0 %751
  %753 = vrot.lane.b32.xlu0 %v743, 112
  %v754 = vpop.permute.xlu0 %753
  %755 = vrot.lane.b32.xlu0 %v744, 112
  %v756 = vpop.permute.xlu0 %755
  %v760 = vmul.f32 %v745, %v752
  %v761 = vmul.f32 %v746, %v754
  %v762 = vmul.f32 %v747, %v756
  %v763 = vmul.f32 %v681, %v430
  %v764 = vmul.f32 %v696, %v431
  %v765 = vmul.f32 %v711, %v432
  %v766 = vadd.f32 %v760, %v763
  %v767 = vadd.f32 %v761, %v764
  %v768 = vadd.f32 %v762, %v765
  %772 = vrot.lane.b32.xlu0 %v766, 112
  %v773 = vpop.permute.xlu0 %772
  %774 = vrot.lane.b32.xlu0 %v767, 112
  %v775 = vpop.permute.xlu0 %774
  %776 = vrot.lane.b32.xlu0 %v768, 112
  %v777 = vpop.permute.xlu0 %776
  %s781 = scalar_lea.vmem %s6, 24
  %782 = vst.msk [vmem:[%s781] sm:$0xff] %vm74, %v773
  %783 = vst.msk [vmem:[%s781 + $0x8] sm:$0xff] %vm74, %v775
  %784 = vst.msk [vmem:[%s781 + $0x10] sm:$0x3f] %vm447, %v777
  %s785 = scalar_lea.vmem %s0, 48
  %v786 = vld [vmem:[%s785] sm:$0xff]
  %v787 = vld [vmem:[%s785 + $0x8] sm:$0xff]
  %v788 = vld [vmem:[%s785 + $0x10] sm:$0x3f]
  %789 = vmatpush.bf16.msra.mxu0 0
  %790 = vmatpush.bf16.msra.mxu0 0
  %791 = vmatpush.bf16.msra.mxu0 0
  %792 = vmatpush.bf16.msra.mxu0 0
  %793 = vmatpush.bf16.msra.mxu0 0
  %794 = vmatpush.bf16.msra.mxu0 0
  %795 = vmatpush.bf16.msra.mxu0 0
  %796 = vmatpush.bf16.msra.mxu0 %v72
  %797 = vmatmul.bf16.gmra.mxu0 %v597
  %v798 = vpop.f32.mrf.mxu0
  %v799 = vadd.f32 %v66, %v798
  %v800 = vpop.f32.mrf.mxu0
  %v801 = vadd.f32 %v66, %v800
  %802 = vmatmul.bf16.gmra.mxu0 %v600
  %v803 = vpop.f32.mrf.mxu0
  %v804 = vadd.f32 %v66, %v803
  %v805 = vpop.f32.mrf.mxu0
  %806 = vdwg.mxu0
  %v807 = vadd.f32 %v786, %v799
  %v808 = vadd.f32 %v787, %v801
  %v809 = vadd.f32 %v788, %v804
  %v810 = vxor.u32 %v807, 2147483648
  %v811 = vxor.u32 %v808, 2147483648
  %v812 = vxor.u32 %v809, 2147483648
  %v813 = vmul.f32 %v810, 1.442695
  %v814 = vpow.pop %v813
  %v815 = vmul.f32 %v811, 1.442695
  %v816 = vpow.pop %v815
  %v817 = vmul.f32 %v812, 1.442695
  %v818 = vpow.pop %v817
  %v819 = vadd.f32 %v814, 1.0
  %v820 = vadd.f32 %v816, 1.0
  %v821 = vadd.f32 %v818, 1.0
  %v822 = vrcp.pop %v819
  %v823 = vmul.f32 %v819, %v822
  %v824 = vsub.f32 1.0, %v823
  %v825 = vmul.f32 %v822, %v824
  %v826 = vadd.f32 %v822, %v825
  %vm827 = vweird.f32 %v819
  %vm828 = vweird.f32 %v822
  %vm829 = vmor %vm827, %vm828
  %v830 = vsel %vm829, %v822, %v826
  %v831 = vand.u32 2147483647, %v819
  %vm832 = vcmp.eq.f32.partialorder %v831, 8.507059e+37
  %v833 = vand.u32 %v819, 2147483648
  %v834 = vor.u32 1.1754944e-38, %v833
  %v835 = vsel %vm832, %v834, %v830
  %v836 = vmul.f32 1.0, %v835
  %v837 = vrcp.pop %v820
  %v838 = vmul.f32 %v820, %v837
  %v839 = vsub.f32 1.0, %v838
  %v840 = vmul.f32 %v837, %v839
  %v841 = vadd.f32 %v837, %v840
  %vm842 = vweird.f32 %v820
  %vm843 = vweird.f32 %v837
  %vm844 = vmor %vm842, %vm843
  %v845 = vsel %vm844, %v837, %v841
  %v846 = vand.u32 2147483647, %v820
  %vm847 = vcmp.eq.f32.partialorder %v846, 8.507059e+37
  %v848 = vand.u32 %v820, 2147483648
  %v849 = vor.u32 1.1754944e-38, %v848
  %v850 = vsel %vm847, %v849, %v845
  %v851 = vmul.f32 1.0, %v850
  %v852 = vrcp.pop %v821
  %v853 = vmul.f32 %v821, %v852
  %v854 = vsub.f32 1.0, %v853
  %v855 = vmul.f32 %v852, %v854
  %v856 = vadd.f32 %v852, %v855
  %vm857 = vweird.f32 %v821
  %vm858 = vweird.f32 %v852
  %vm859 = vmor %vm857, %vm858
  %v860 = vsel %vm859, %v852, %v856
  %v861 = vand.u32 2147483647, %v821
  %vm862 = vcmp.eq.f32.partialorder %v861, 8.507059e+37
  %v863 = vand.u32 %v821, 2147483648
  %v864 = vor.u32 1.1754944e-38, %v863
  %v865 = vsel %vm862, %v864, %v860
  %v866 = vmul.f32 1.0, %v865
  %870 = vrot.lane.b32.xlu0 %v799, 96
  %v871 = vpop.permute.xlu0 %870
  %872 = vrot.lane.b32.xlu0 %v801, 96
  %v873 = vpop.permute.xlu0 %872
  %874 = vrot.lane.b32.xlu0 %v804, 96
  %v875 = vpop.permute.xlu0 %874
  %v879 = vmul.f32 %v836, %v871
  %v880 = vmul.f32 %v851, %v873
  %v881 = vmul.f32 %v866, %v875
  %885 = vrot.lane.b32.xlu0 %v879, 32
  %v886 = vpop.permute.xlu0 %885
  %887 = vrot.lane.b32.xlu0 %v880, 32
  %v888 = vpop.permute.xlu0 %887
  %889 = vrot.lane.b32.xlu0 %v881, 32
  %v890 = vpop.permute.xlu0 %889
  %v894 = vadd.f32 %v786, %v886
  %v895 = vadd.f32 %v787, %v888
  %v896 = vadd.f32 %v788, %v890
  %v897 = vtanh.pop %v894
  %v898 = vtanh.pop %v895
  %v899 = vtanh.pop %v896
  %v900 = vsub.f32 1.0, %v836
  %v901 = vsub.f32 1.0, %v851
  %v902 = vsub.f32 1.0, %v866
  %906 = vrot.lane.b32.xlu0 %v897, 112
  %v907 = vpop.permute.xlu0 %906
  %908 = vrot.lane.b32.xlu0 %v898, 112
  %v909 = vpop.permute.xlu0 %908
  %910 = vrot.lane.b32.xlu0 %v899, 112
  %v911 = vpop.permute.xlu0 %910
  %v915 = vmul.f32 %v900, %v907
  %v916 = vmul.f32 %v901, %v909
  %v917 = vmul.f32 %v902, %v911
  %v918 = vmul.f32 %v836, %v585
  %v919 = vmul.f32 %v851, %v586
  %v920 = vmul.f32 %v866, %v587
  %v921 = vadd.f32 %v915, %v918
  %v922 = vadd.f32 %v916, %v919
  %v923 = vadd.f32 %v917, %v920
  %v924 = vpack.c.bf16 %v922, %v921
  %v925 = vpack.c.bf16 %v923, %v923
  %928 = vrot.lane.b32.xlu0 %v924, 112
  %v929 = vpop.permute.xlu0 %928
  %930 = vrot.lane.b32.xlu0 %v925, 112
  %v931 = vpop.permute.xlu0 %930
  %v933 = vsel %vm74, %v929, 0
  %v936 = vsel %vm74, %v931, 0
  %938 = vmatpush.bf16.msra.mxu0 0
  %939 = vmatpush.bf16.msra.mxu0 0
  %940 = vmatpush.bf16.msra.mxu0 0
  %941 = vmatpush.bf16.msra.mxu0 0
  %942 = vmatpush.bf16.msra.mxu0 0
  %943 = vmatpush.bf16.msra.mxu0 0
  %944 = vmatpush.bf16.msra.mxu0 0
  %945 = vmatpush.bf16.msra.mxu0 %v243
  %946 = vmatmul.bf16.gmra.mxu0 %v933
  %v947 = vpop.f32.mrf.mxu0
  %v948 = vadd.f32 %v231, %v947
  %v949 = vpop.f32.mrf.mxu0
  %v950 = vadd.f32 %v231, %v949
  %951 = vmatmul.bf16.gmra.mxu0 %v936
  %v952 = vpop.f32.mrf.mxu0
  %v953 = vadd.f32 %v231, %v952
  %v954 = vpop.f32.mrf.mxu0
  %955 = vdwg.mxu0
  %v956 = vpack.c.bf16 %v767, %v766
  %v957 = vpack.c.bf16 %v768, %v768
  %960 = vrot.lane.b32.xlu0 %v956, 112
  %v961 = vpop.permute.xlu0 %960
  %962 = vrot.lane.b32.xlu0 %v957, 112
  %v963 = vpop.permute.xlu0 %962
  %v965 = vsel %vm74, %v961, 0
  %v968 = vsel %vm74, %v963, 0
  %970 = vmatpush.bf16.msra.mxu0 0
  %971 = vmatpush.bf16.msra.mxu0 0
  %972 = vmatpush.bf16.msra.mxu0 0
  %973 = vmatpush.bf16.msra.mxu0 0
  %974 = vmatpush.bf16.msra.mxu0 0
  %975 = vmatpush.bf16.msra.mxu0 0
  %976 = vmatpush.bf16.msra.mxu0 0
  %977 = vmatpush.bf16.msra.mxu0 %v278
  %978 = vmatmul.bf16.gmra.mxu0 %v965
  %v979 = vpop.f32.mrf.mxu0
  %v980 = vadd.f32 %v272, %v979
  %v981 = vpop.f32.mrf.mxu0
  %v982 = vadd.f32 %v272, %v981
  %983 = vmatmul.bf16.gmra.mxu0 %v968
  %v984 = vpop.f32.mrf.mxu0
  %v985 = vadd.f32 %v272, %v984
  %v986 = vpop.f32.mrf.mxu0
  %987 = vdwg.mxu0
  %v988 = vadd.f32 %v948, %v980
  %v989 = vadd.f32 %v950, %v982
  %v990 = vadd.f32 %v953, %v985
  %v991 = vxor.u32 %v988, 2147483648
  %v992 = vxor.u32 %v989, 2147483648
  %v993 = vxor.u32 %v990, 2147483648
  %v994 = vmul.f32 %v991, 1.442695
  %v995 = vpow.pop %v994
  %v996 = vmul.f32 %v992, 1.442695
  %v997 = vpow.pop %v996
  %v998 = vmul.f32 %v993, 1.442695
  %v999 = vpow.pop %v998
  %v1000 = vadd.f32 %v995, 1.0
  %v1001 = vadd.f32 %v997, 1.0
  %v1002 = vadd.f32 %v999, 1.0
  %v1003 = vrcp.pop %v1000
  %v1004 = vmul.f32 %v1000, %v1003
  %v1005 = vsub.f32 1.0, %v1004
  %v1006 = vmul.f32 %v1003, %v1005
  %v1007 = vadd.f32 %v1003, %v1006
  %vm1008 = vweird.f32 %v1000
  %vm1009 = vweird.f32 %v1003
  %vm1010 = vmor %vm1008, %vm1009
  %v1011 = vsel %vm1010, %v1003, %v1007
  %v1012 = vand.u32 2147483647, %v1000
  %vm1013 = vcmp.eq.f32.partialorder %v1012, 8.507059e+37
  %v1014 = vand.u32 %v1000, 2147483648
  %v1015 = vor.u32 1.1754944e-38, %v1014
  %v1016 = vsel %vm1013, %v1015, %v1011
  %v1017 = vmul.f32 1.0, %v1016
  %v1018 = vrcp.pop %v1001
  %v1019 = vmul.f32 %v1001, %v1018
  %v1020 = vsub.f32 1.0, %v1019
  %v1021 = vmul.f32 %v1018, %v1020
  %v1022 = vadd.f32 %v1018, %v1021
  %vm1023 = vweird.f32 %v1001
  %vm1024 = vweird.f32 %v1018
  %vm1025 = vmor %vm1023, %vm1024
  %v1026 = vsel %vm1025, %v1018, %v1022
  %v1027 = vand.u32 2147483647, %v1001
  %vm1028 = vcmp.eq.f32.partialorder %v1027, 8.507059e+37
  %v1029 = vand.u32 %v1001, 2147483648
  %v1030 = vor.u32 1.1754944e-38, %v1029
  %v1031 = vsel %vm1028, %v1030, %v1026
  %v1032 = vmul.f32 1.0, %v1031
  %v1033 = vrcp.pop %v1002
  %v1034 = vmul.f32 %v1002, %v1033
  %v1035 = vsub.f32 1.0, %v1034
  %v1036 = vmul.f32 %v1033, %v1035
  %v1037 = vadd.f32 %v1033, %v1036
  %vm1038 = vweird.f32 %v1002
  %vm1039 = vweird.f32 %v1033
  %vm1040 = vmor %vm1038, %vm1039
  %v1041 = vsel %vm1040, %v1033, %v1037
  %v1042 = vand.u32 2147483647, %v1002
  %vm1043 = vcmp.eq.f32.partialorder %v1042, 8.507059e+37
  %v1044 = vand.u32 %v1002, 2147483648
  %v1045 = vor.u32 1.1754944e-38, %v1044
  %v1046 = vsel %vm1043, %v1045, %v1041
  %v1047 = vmul.f32 1.0, %v1046
  %1051 = vrot.lane.b32.xlu0 %v980, 96
  %v1052 = vpop.permute.xlu0 %1051
  %1053 = vrot.lane.b32.xlu0 %v982, 96
  %v1054 = vpop.permute.xlu0 %1053
  %1055 = vrot.lane.b32.xlu0 %v985, 96
  %v1056 = vpop.permute.xlu0 %1055
  %v1060 = vmul.f32 %v1017, %v1052
  %v1061 = vmul.f32 %v1032, %v1054
  %v1062 = vmul.f32 %v1047, %v1056
  %1066 = vrot.lane.b32.xlu0 %v1060, 32
  %v1067 = vpop.permute.xlu0 %1066
  %1068 = vrot.lane.b32.xlu0 %v1061, 32
  %v1069 = vpop.permute.xlu0 %1068
  %1070 = vrot.lane.b32.xlu0 %v1062, 32
  %v1071 = vpop.permute.xlu0 %1070
  %v1075 = vadd.f32 %v948, %v1067
  %v1076 = vadd.f32 %v950, %v1069
  %v1077 = vadd.f32 %v953, %v1071
  %v1078 = vtanh.pop %v1075
  %v1079 = vtanh.pop %v1076
  %v1080 = vtanh.pop %v1077
  %v1081 = vsub.f32 1.0, %v1017
  %v1082 = vsub.f32 1.0, %v1032
  %v1083 = vsub.f32 1.0, %v1047
  %1087 = vrot.lane.b32.xlu0 %v1078, 112
  %v1088 = vpop.permute.xlu0 %1087
  %1089 = vrot.lane.b32.xlu0 %v1079, 112
  %v1090 = vpop.permute.xlu0 %1089
  %1091 = vrot.lane.b32.xlu0 %v1080, 112
  %v1092 = vpop.permute.xlu0 %1091
  %v1096 = vmul.f32 %v1081, %v1088
  %v1097 = vmul.f32 %v1082, %v1090
  %v1098 = vmul.f32 %v1083, %v1092
  %v1099 = vmul.f32 %v1017, %v766
  %v1100 = vmul.f32 %v1032, %v767
  %v1101 = vmul.f32 %v1047, %v768
  %v1102 = vadd.f32 %v1096, %v1099
  %v1103 = vadd.f32 %v1097, %v1100
  %v1104 = vadd.f32 %v1098, %v1101
  %1108 = vrot.lane.b32.xlu0 %v1102, 112
  %v1109 = vpop.permute.xlu0 %1108
  %1110 = vrot.lane.b32.xlu0 %v1103, 112
  %v1111 = vpop.permute.xlu0 %1110
  %1112 = vrot.lane.b32.xlu0 %v1104, 112
  %v1113 = vpop.permute.xlu0 %1112
  %s1117 = scalar_lea.vmem %s6, 48
  %1118 = vst.msk [vmem:[%s1117] sm:$0xff] %vm74, %v1109
  %1119 = vst.msk [vmem:[%s1117 + $0x8] sm:$0xff] %vm74, %v1111
  %1120 = vst.msk [vmem:[%s1117 + $0x10] sm:$0x3f] %vm447, %v1113
  %s1121 = scalar_lea.vmem %s0, 72
  %v1122 = vld [vmem:[%s1121] sm:$0xff]
  %v1123 = vld [vmem:[%s1121 + $0x8] sm:$0xff]
  %v1124 = vld [vmem:[%s1121 + $0x10] sm:$0x3f]
  %1125 = vmatpush.bf16.msra.mxu0 0
  %1126 = vmatpush.bf16.msra.mxu0 0
  %1127 = vmatpush.bf16.msra.mxu0 0
  %1128 = vmatpush.bf16.msra.mxu0 0
  %1129 = vmatpush.bf16.msra.mxu0 0
  %1130 = vmatpush.bf16.msra.mxu0 0
  %1131 = vmatpush.bf16.msra.mxu0 0
  %1132 = vmatpush.bf16.msra.mxu0 %v72
  %1133 = vmatmul.bf16.gmra.mxu0 %v933
  %v1134 = vpop.f32.mrf.mxu0
  %v1135 = vadd.f32 %v66, %v1134
  %v1136 = vpop.f32.mrf.mxu0
  %v1137 = vadd.f32 %v66, %v1136
  %1138 = vmatmul.bf16.gmra.mxu0 %v936
  %v1139 = vpop.f32.mrf.mxu0
  %v1140 = vadd.f32 %v66, %v1139
  %v1141 = vpop.f32.mrf.mxu0
  %1142 = vdwg.mxu0
  %v1143 = vadd.f32 %v1122, %v1135
  %v1144 = vadd.f32 %v1123, %v1137
  %v1145 = vadd.f32 %v1124, %v1140
  %v1146 = vxor.u32 %v1143, 2147483648
  %v1147 = vxor.u32 %v1144, 2147483648
  %v1148 = vxor.u32 %v1145, 2147483648
  %v1149 = vmul.f32 %v1146, 1.442695
  %v1150 = vpow.pop %v1149
  %v1151 = vmul.f32 %v1147, 1.442695
  %v1152 = vpow.pop %v1151
  %v1153 = vmul.f32 %v1148, 1.442695
  %v1154 = vpow.pop %v1153
  %v1155 = vadd.f32 %v1150, 1.0
  %v1156 = vadd.f32 %v1152, 1.0
  %v1157 = vadd.f32 %v1154, 1.0
  %v1158 = vrcp.pop %v1155
  %v1159 = vmul.f32 %v1155, %v1158
  %v1160 = vsub.f32 1.0, %v1159
  %v1161 = vmul.f32 %v1158, %v1160
  %v1162 = vadd.f32 %v1158, %v1161
  %vm1163 = vweird.f32 %v1155
  %vm1164 = vweird.f32 %v1158
  %vm1165 = vmor %vm1163, %vm1164
  %v1166 = vsel %vm1165, %v1158, %v1162
  %v1167 = vand.u32 2147483647, %v1155
  %vm1168 = vcmp.eq.f32.partialorder %v1167, 8.507059e+37
  %v1169 = vand.u32 %v1155, 2147483648
  %v1170 = vor.u32 1.1754944e-38, %v1169
  %v1171 = vsel %vm1168, %v1170, %v1166
  %v1172 = vmul.f32 1.0, %v1171
  %v1173 = vrcp.pop %v1156
  %v1174 = vmul.f32 %v1156, %v1173
  %v1175 = vsub.f32 1.0, %v1174
  %v1176 = vmul.f32 %v1173, %v1175
  %v1177 = vadd.f32 %v1173, %v1176
  %vm1178 = vweird.f32 %v1156
  %vm1179 = vweird.f32 %v1173
  %vm1180 = vmor %vm1178, %vm1179
  %v1181 = vsel %vm1180, %v1173, %v1177
  %v1182 = vand.u32 2147483647, %v1156
  %vm1183 = vcmp.eq.f32.partialorder %v1182, 8.507059e+37
  %v1184 = vand.u32 %v1156, 2147483648
  %v1185 = vor.u32 1.1754944e-38, %v1184
  %v1186 = vsel %vm1183, %v1185, %v1181
  %v1187 = vmul.f32 1.0, %v1186
  %v1188 = vrcp.pop %v1157
  %v1189 = vmul.f32 %v1157, %v1188
  %v1190 = vsub.f32 1.0, %v1189
  %v1191 = vmul.f32 %v1188, %v1190
  %v1192 = vadd.f32 %v1188, %v1191
  %vm1193 = vweird.f32 %v1157
  %vm1194 = vweird.f32 %v1188
  %vm1195 = vmor %vm1193, %vm1194
  %v1196 = vsel %vm1195, %v1188, %v1192
  %v1197 = vand.u32 2147483647, %v1157
  %vm1198 = vcmp.eq.f32.partialorder %v1197, 8.507059e+37
  %v1199 = vand.u32 %v1157, 2147483648
  %v1200 = vor.u32 1.1754944e-38, %v1199
  %v1201 = vsel %vm1198, %v1200, %v1196
  %v1202 = vmul.f32 1.0, %v1201
  %1206 = vrot.lane.b32.xlu0 %v1135, 96
  %v1207 = vpop.permute.xlu0 %1206
  %1208 = vrot.lane.b32.xlu0 %v1137, 96
  %v1209 = vpop.permute.xlu0 %1208
  %1210 = vrot.lane.b32.xlu0 %v1140, 96
  %v1211 = vpop.permute.xlu0 %1210
  %v1215 = vmul.f32 %v1172, %v1207
  %v1216 = vmul.f32 %v1187, %v1209
  %v1217 = vmul.f32 %v1202, %v1211
  %1221 = vrot.lane.b32.xlu0 %v1215, 32
  %v1222 = vpop.permute.xlu0 %1221
  %1223 = vrot.lane.b32.xlu0 %v1216, 32
  %v1224 = vpop.permute.xlu0 %1223
  %1225 = vrot.lane.b32.xlu0 %v1217, 32
  %v1226 = vpop.permute.xlu0 %1225
  %v1230 = vadd.f32 %v1122, %v1222
  %v1231 = vadd.f32 %v1123, %v1224
  %v1232 = vadd.f32 %v1124, %v1226
  %v1233 = vtanh.pop %v1230
  %v1234 = vtanh.pop %v1231
  %v1235 = vtanh.pop %v1232
  %v1236 = vsub.f32 1.0, %v1172
  %v1237 = vsub.f32 1.0, %v1187
  %v1238 = vsub.f32 1.0, %v1202
  %1242 = vrot.lane.b32.xlu0 %v1233, 112
  %v1243 = vpop.permute.xlu0 %1242
  %1244 = vrot.lane.b32.xlu0 %v1234, 112
  %v1245 = vpop.permute.xlu0 %1244
  %1246 = vrot.lane.b32.xlu0 %v1235, 112
  %v1247 = vpop.permute.xlu0 %1246
  %v1251 = vmul.f32 %v1236, %v1243
  %v1252 = vmul.f32 %v1237, %v1245
  %v1253 = vmul.f32 %v1238, %v1247
  %v1254 = vmul.f32 %v1172, %v921
  %v1255 = vmul.f32 %v1187, %v922
  %v1256 = vmul.f32 %v1202, %v923
  %v1257 = vadd.f32 %v1251, %v1254
  %v1258 = vadd.f32 %v1252, %v1255
  %v1259 = vadd.f32 %v1253, %v1256
  %v1260 = vpack.c.bf16 %v1258, %v1257
  %v1261 = vpack.c.bf16 %v1259, %v1259
  %1264 = vrot.lane.b32.xlu0 %v1260, 112
  %v1265 = vpop.permute.xlu0 %1264
  %1266 = vrot.lane.b32.xlu0 %v1261, 112
  %v1267 = vpop.permute.xlu0 %1266
  %v1269 = vsel %vm74, %v1265, 0
  %v1272 = vsel %vm74, %v1267, 0
  %1274 = vmatpush.bf16.msra.mxu0 0
  %1275 = vmatpush.bf16.msra.mxu0 0
  %1276 = vmatpush.bf16.msra.mxu0 0
  %1277 = vmatpush.bf16.msra.mxu0 0
  %1278 = vmatpush.bf16.msra.mxu0 0
  %1279 = vmatpush.bf16.msra.mxu0 0
  %1280 = vmatpush.bf16.msra.mxu0 0
  %1281 = vmatpush.bf16.msra.mxu0 %v243
  %1282 = vmatmul.bf16.gmra.mxu0 %v1269
  %v1283 = vpop.f32.mrf.mxu0
  %v1284 = vadd.f32 %v231, %v1283
  %v1285 = vpop.f32.mrf.mxu0
  %v1286 = vadd.f32 %v231, %v1285
  %1287 = vmatmul.bf16.gmra.mxu0 %v1272
  %v1288 = vpop.f32.mrf.mxu0
  %v1289 = vadd.f32 %v231, %v1288
  %v1290 = vpop.f32.mrf.mxu0
  %1291 = vdwg.mxu0
  %v1292 = vpack.c.bf16 %v1103, %v1102
  %v1293 = vpack.c.bf16 %v1104, %v1104
  %1296 = vrot.lane.b32.xlu0 %v1292, 112
  %v1297 = vpop.permute.xlu0 %1296
  %1298 = vrot.lane.b32.xlu0 %v1293, 112
  %v1299 = vpop.permute.xlu0 %1298
  %v1301 = vsel %vm74, %v1297, 0
  %v1304 = vsel %vm74, %v1299, 0
  %1306 = vmatpush.bf16.msra.mxu0 0
  %1307 = vmatpush.bf16.msra.mxu0 0
  %1308 = vmatpush.bf16.msra.mxu0 0
  %1309 = vmatpush.bf16.msra.mxu0 0
  %1310 = vmatpush.bf16.msra.mxu0 0
  %1311 = vmatpush.bf16.msra.mxu0 0
  %1312 = vmatpush.bf16.msra.mxu0 0
  %1313 = vmatpush.bf16.msra.mxu0 %v278
  %1314 = vmatmul.bf16.gmra.mxu0 %v1301
  %v1315 = vpop.f32.mrf.mxu0
  %v1316 = vadd.f32 %v272, %v1315
  %v1317 = vpop.f32.mrf.mxu0
  %v1318 = vadd.f32 %v272, %v1317
  %1319 = vmatmul.bf16.gmra.mxu0 %v1304
  %v1320 = vpop.f32.mrf.mxu0
  %v1321 = vadd.f32 %v272, %v1320
  %v1322 = vpop.f32.mrf.mxu0
  %1323 = vdwg.mxu0
  %v1324 = vadd.f32 %v1284, %v1316
  %v1325 = vadd.f32 %v1286, %v1318
  %v1326 = vadd.f32 %v1289, %v1321
  %v1327 = vxor.u32 %v1324, 2147483648
  %v1328 = vxor.u32 %v1325, 2147483648
  %v1329 = vxor.u32 %v1326, 2147483648
  %v1330 = vmul.f32 %v1327, 1.442695
  %v1331 = vpow.pop %v1330
  %v1332 = vmul.f32 %v1328, 1.442695
  %v1333 = vpow.pop %v1332
  %v1334 = vmul.f32 %v1329, 1.442695
  %v1335 = vpow.pop %v1334
  %v1336 = vadd.f32 %v1331, 1.0
  %v1337 = vadd.f32 %v1333, 1.0
  %v1338 = vadd.f32 %v1335, 1.0
  %v1339 = vrcp.pop %v1336
  %v1340 = vmul.f32 %v1336, %v1339
  %v1341 = vsub.f32 1.0, %v1340
  %v1342 = vmul.f32 %v1339, %v1341
  %v1343 = vadd.f32 %v1339, %v1342
  %vm1344 = vweird.f32 %v1336
  %vm1345 = vweird.f32 %v1339
  %vm1346 = vmor %vm1344, %vm1345
  %v1347 = vsel %vm1346, %v1339, %v1343
  %v1348 = vand.u32 2147483647, %v1336
  %vm1349 = vcmp.eq.f32.partialorder %v1348, 8.507059e+37
  %v1350 = vand.u32 %v1336, 2147483648
  %v1351 = vor.u32 1.1754944e-38, %v1350
  %v1352 = vsel %vm1349, %v1351, %v1347
  %v1353 = vmul.f32 1.0, %v1352
  %v1354 = vrcp.pop %v1337
  %v1355 = vmul.f32 %v1337, %v1354
  %v1356 = vsub.f32 1.0, %v1355
  %v1357 = vmul.f32 %v1354, %v1356
  %v1358 = vadd.f32 %v1354, %v1357
  %vm1359 = vweird.f32 %v1337
  %vm1360 = vweird.f32 %v1354
  %vm1361 = vmor %vm1359, %vm1360
  %v1362 = vsel %vm1361, %v1354, %v1358
  %v1363 = vand.u32 2147483647, %v1337
  %vm1364 = vcmp.eq.f32.partialorder %v1363, 8.507059e+37
  %v1365 = vand.u32 %v1337, 2147483648
  %v1366 = vor.u32 1.1754944e-38, %v1365
  %v1367 = vsel %vm1364, %v1366, %v1362
  %v1368 = vmul.f32 1.0, %v1367
  %v1369 = vrcp.pop %v1338
  %v1370 = vmul.f32 %v1338, %v1369
  %v1371 = vsub.f32 1.0, %v1370
  %v1372 = vmul.f32 %v1369, %v1371
  %v1373 = vadd.f32 %v1369, %v1372
  %vm1374 = vweird.f32 %v1338
  %vm1375 = vweird.f32 %v1369
  %vm1376 = vmor %vm1374, %vm1375
  %v1377 = vsel %vm1376, %v1369, %v1373
  %v1378 = vand.u32 2147483647, %v1338
  %vm1379 = vcmp.eq.f32.partialorder %v1378, 8.507059e+37
  %v1380 = vand.u32 %v1338, 2147483648
  %v1381 = vor.u32 1.1754944e-38, %v1380
  %v1382 = vsel %vm1379, %v1381, %v1377
  %v1383 = vmul.f32 1.0, %v1382
  %1387 = vrot.lane.b32.xlu0 %v1316, 96
  %v1388 = vpop.permute.xlu0 %1387
  %1389 = vrot.lane.b32.xlu0 %v1318, 96
  %v1390 = vpop.permute.xlu0 %1389
  %1391 = vrot.lane.b32.xlu0 %v1321, 96
  %v1392 = vpop.permute.xlu0 %1391
  %v1396 = vmul.f32 %v1353, %v1388
  %v1397 = vmul.f32 %v1368, %v1390
  %v1398 = vmul.f32 %v1383, %v1392
  %1402 = vrot.lane.b32.xlu0 %v1396, 32
  %v1403 = vpop.permute.xlu0 %1402
  %1404 = vrot.lane.b32.xlu0 %v1397, 32
  %v1405 = vpop.permute.xlu0 %1404
  %1406 = vrot.lane.b32.xlu0 %v1398, 32
  %v1407 = vpop.permute.xlu0 %1406
  %v1411 = vadd.f32 %v1284, %v1403
  %v1412 = vadd.f32 %v1286, %v1405
  %v1413 = vadd.f32 %v1289, %v1407
  %v1414 = vtanh.pop %v1411
  %v1415 = vtanh.pop %v1412
  %v1416 = vtanh.pop %v1413
  %v1417 = vsub.f32 1.0, %v1353
  %v1418 = vsub.f32 1.0, %v1368
  %v1419 = vsub.f32 1.0, %v1383
  %1423 = vrot.lane.b32.xlu0 %v1414, 112
  %v1424 = vpop.permute.xlu0 %1423
  %1425 = vrot.lane.b32.xlu0 %v1415, 112
  %v1426 = vpop.permute.xlu0 %1425
  %1427 = vrot.lane.b32.xlu0 %v1416, 112
  %v1428 = vpop.permute.xlu0 %1427
  %v1432 = vmul.f32 %v1417, %v1424
  %v1433 = vmul.f32 %v1418, %v1426
  %v1434 = vmul.f32 %v1419, %v1428
  %v1435 = vmul.f32 %v1353, %v1102
  %v1436 = vmul.f32 %v1368, %v1103
  %v1437 = vmul.f32 %v1383, %v1104
  %v1438 = vadd.f32 %v1432, %v1435
  %v1439 = vadd.f32 %v1433, %v1436
  %v1440 = vadd.f32 %v1434, %v1437
  %1444 = vrot.lane.b32.xlu0 %v1438, 112
  %v1445 = vpop.permute.xlu0 %1444
  %1446 = vrot.lane.b32.xlu0 %v1439, 112
  %v1447 = vpop.permute.xlu0 %1446
  %1448 = vrot.lane.b32.xlu0 %v1440, 112
  %v1449 = vpop.permute.xlu0 %1448
  %s1453 = scalar_lea.vmem %s6, 72
  %1454 = vst.msk [vmem:[%s1453] sm:$0xff] %vm74, %v1445
  %1455 = vst.msk [vmem:[%s1453 + $0x8] sm:$0xff] %vm74, %v1447
  %1456 = vst.msk [vmem:[%s1453 + $0x10] sm:$0x3f] %vm447, %v1449
  %1460 = vrot.lane.b32.xlu0 %v1257, 112
  %v1461 = vpop.permute.xlu0 %1460
  %1462 = vrot.lane.b32.xlu0 %v1258, 112
  %v1463 = vpop.permute.xlu0 %1462
  %1464 = vrot.lane.b32.xlu0 %v1259, 112
  %v1465 = vpop.permute.xlu0 %1464
  %1469 = vst.msk [vmem:[#allocation2] sm:$0xff] %vm74, %v1461
  %1470 = vst.msk [vmem:[#allocation2 + $0x8] sm:$0xff] %vm74, %v1463
  %1471 = vst.msk [vmem:[#allocation2 + $0x10] sm:$0x3f] %vm447, %v1465
  %1472 = vst.msk [vmem:[%s56] sm:$0xff] %vm74, %v1445
  %1473 = vst.msk [vmem:[%s56 + $0x8] sm:$0xff] %vm74, %v1447
  %1474 = vst.msk [vmem:[%s56 + $0x10] sm:$0x3f] %vm447, %v1449
  // Predicated region
  $region30: #{_forward_core.10} parent=0 // pred_check
    _
  $region31: #{_forward_core.10} parent=0 // pred_check_branch
    %1476 = sbr.rel (0) target = $region33
  $region32: #{_forward_core.10} parent=0 // pred_region
    _
  $region33: #{_forward_core.10} parent=0 // pred_fallthru
    _
  // Predicated region
  $region34: #{_forward_core.10} parent=0 // pred_check
    _
  $region35: #{_forward_core.10} parent=0 // pred_check_branch
    %1478 = sbr.rel (0) target = $region37
  $region36: #{_forward_core.10} parent=0 // pred_region
    _
  $region37: #{_forward_core.10} parent=0 // pred_fallthru
    _

</llo_original>
